<compile_context>
chip_gen: v5e
topology: v5e:2x2
jax: 0.10.0
libtpu: 0.0.40
codegen_flags: <defaults>
</compile_context>

<pallas_src>
import math
import functools

import jax
import jax.numpy as jnp
from jax.experimental import pallas as pl
from jax.experimental.pallas import tpu as pltpu


# ------------------------------ hardware-aware limits --------------------------
@functools.lru_cache(maxsize=None)
def _vmem_limit():
    """Generation-aware scoped-VMEM limit with headroom for Mosaic scratch."""
    cap = 64 * 1024 * 1024  # conservative default (v7x per-TC VMEM)
    try:
        info = pltpu.get_tpu_info()
        cap = int(getattr(info, "vmem_capacity_bytes", cap))
    except Exception:
        pass
    # leave ~26 MiB for internal scratch + double-buffered I/O blocks; cap at 96 MiB
    return int(min(max(cap - 26 * 1024 * 1024, 32 * 1024 * 1024), 96 * 1024 * 1024))


def _pick_tm(m, bytes_per_row, vmem_limit):
    """Largest M-tile (divisor of m) whose double-buffered I/O tiles fit."""
    budget = vmem_limit // 2
    best = m
    for t in (2048, 1024, 512, 256, 128, 64, 32, 16, 8):
        if t <= m and m % t == 0:
            best = t
            if t * bytes_per_row <= budget:
                return t
    return best


def _pick_tq(s, n_streams, vmem_limit):
    """Query-tile size: keep the per-stream scores scratch within ~1/3 of VMEM."""
    budget = max(vmem_limit // 3, 2 * 1024 * 1024)
    best = s
    for t in (512, 256, 128, 64, 32, 16, 8):
        if t <= s and s % t == 0:
            best = t
            if n_streams * t * s * 4 <= budget:
                return t
    return best


# ----------------------------- fused batched linear projections ----------------
def _multi_proj_kernel(w_ref, b_ref, *refs, n_proj):
    # w_ref: (n_proj, d_in, d_out) bf16 (resident);  b_ref: (n_proj, 1, d_out) f32
    # refs = (x_0..x_{n-1}, o_0..o_{n-1});  x_p: (tm, d_in), o_p: (tm, d_out)
    for p in range(n_proj):
        x = refs[p][...].astype(jnp.bfloat16)
        acc = jnp.dot(x, w_ref[p], preferred_element_type=jnp.float32) + b_ref[p]
        refs[n_proj + p][...] = acc.astype(refs[n_proj + p].dtype)


def multi_linear(xs, w, b, out_dtype):
    """ys[p] = xs[p] @ w[p] + b[p] for all p, in ONE fused, M-tiled pallas_call.

    w is pre-stacked/pre-transposed (n_proj, d_in, d_out) bf16; b is
    (n_proj, 1, d_out) f32.  No per-call activation stacking; weights stay
    resident across the M grid axis.
    """
    n_proj = len(xs)
    M, d_in = xs[0].shape
    d_out = w.shape[-1]
    vlim = _vmem_limit()
    bytes_per_row = (2 * sum(x.dtype.itemsize * d_in for x in xs)
                     + 2 * n_proj * d_out * jnp.dtype(out_dtype).itemsize)
    tm = _pick_tm(M, bytes_per_row, vlim)
    kernel = functools.partial(_multi_proj_kernel, n_proj=n_proj)
    x_specs = [pl.BlockSpec((tm, d_in), lambda m: (m, 0)) for _ in range(n_proj)]
    o_specs = [pl.BlockSpec((tm, d_out), lambda m: (m, 0)) for _ in range(n_proj)]
    return pl.pallas_call(
        kernel,
        grid=(M // tm,),
        in_specs=[pl.BlockSpec((n_proj, d_in, d_out), lambda m: (0, 0, 0)),
                  pl.BlockSpec((n_proj, 1, d_out), lambda m: (0, 0, 0))] + x_specs,
        out_specs=o_specs,
        out_shape=[jax.ShapeDtypeStruct((M, d_out), out_dtype)] * n_proj,
        compiler_params=pltpu.CompilerParams(
            dimension_semantics=("parallel",),
            vmem_limit_bytes=vlim),
    )(w, b, *xs)


# ----------------------------------- attention ---------------------------------
def _attn_kernel(gamma_ref, mask_ref, qm_ref, qc_ref, km_ref, kc_ref,
                 vm_ref, vc_ref, om_ref, oc_ref, scores_ref, *,
                 d_k, n_heads, atten_type, zero_pad):
    f32, bf16 = jnp.float32, jnp.bfloat16
    h, dk = n_heads, d_k
    Tq, S = mask_ref.shape
    n_streams = scores_ref.shape[0]
    inv_sqrt = 1.0 / math.sqrt(dk)
    neg = jnp.float32(-1e32)
    qi = pl.program_id(1)

    mask_f = mask_ref[...]                                     # (Tq, S) f32
    mask_bool = mask_f != 0.0
    row = jax.lax.broadcasted_iota(jnp.int32, (Tq, S), 0) + qi * Tq
    col = jax.lax.broadcasted_iota(jnp.int32, (Tq, S), 1)
    pos = jnp.abs(col - row).astype(f32)                       # |x1 - x2|

    # strict lower-triangular ones: (p @ tri)[i,j] = sum_{a>j} p[i,a]
    # == disttotal - distcum, computed on the otherwise-idle MXU in f32.
    ta = jax.lax.broadcasted_iota(jnp.int32, (S, S), 0)
    tb = jax.lax.broadcasted_iota(jnp.int32, (S, S), 1)
    tri = (ta > tb).astype(f32)

    def mm(a, b):          # a @ b        (bf16 MXU, f32 accumulate)
        return jnp.dot(a.astype(bf16), b.astype(bf16), preferred_element_type=f32)

    def mm_nt(a, b):       # a @ b.T      (no explicit transpose)
        return jax.lax.dot_general(
            a.astype(bf16), b.astype(bf16),
            dimension_numbers=(((1,), (1,)), ((), ())),
            preferred_element_type=f32)

    def hs(x, hh):         # static lane slice, head hh
        return x[:, hh * dk:(hh + 1) * dk]

    # ---- phase 1: raw per-stream scores -> VMEM scratch -----------------------
    qm = qm_ref[...]
    qc = qc_ref[...]
    km = km_ref[...]
    kc = kc_ref[...]
    if atten_type == "w2":
        for hh in range(h):
            qm_h, km_h = hs(qm, hh), hs(km, hh)                 # bf16
            qc_h = hs(qc, hh).astype(f32)
            kc_h = hs(kc, hh).astype(f32)
            qm_f, km_f = qm_h.astype(f32), km_h.astype(f32)
            m1 = jnp.sum(qm_f * qm_f, axis=-1, keepdims=True)   # (Tq, 1)
            m2 = jnp.sum(km_f * km_f, axis=-1, keepdims=True)   # (S, 1)
            ret = -2.0 * mm_nt(qm_h, km_h) + m1 + m2.T
            c1 = jnp.sum(qc_h, axis=-1, keepdims=True)
            c2 = jnp.sum(kc_h, axis=-1, keepdims=True)
            sq_q = jnp.sqrt(jnp.maximum(qc_h, 1e-24))
            sq_k = jnp.sqrt(jnp.maximum(kc_h, 1e-24))
            cov_ret = -2.0 * mm_nt(sq_q, sq_k) + c1 + c2.T
            scores_ref[hh] = -(ret + cov_ret) * inv_sqrt
    else:  # "dp": mean streams [0,h), cov streams [h,2h)
        for hh in range(h):
            scores_ref[hh] = mm_nt(hs(qm, hh), hs(km, hh)) * inv_sqrt
            scores_ref[h + hh] = mm_nt(hs(qc, hh), hs(kc, hh)) * inv_sqrt

    # ---- phase 2: distance/forgetting adjusted softmax, one stream at a time --
    # fori_loop bounds live ranges: peak VMEM is O(Tq*S), not O(n_streams*Tq*S).
    def _stream_body(s, carry):
        sc = scores_ref[s]                                      # (Tq, S) f32
        g = gamma_ref[s]                                        # -softplus(gamma)
        # "no-grad" masked softmax (heuristic only -> approx reciprocal is fine)
        s1 = jnp.where(mask_bool, sc, neg)
        s1 = s1 - jnp.max(s1, axis=-1, keepdims=True)
        e1 = jnp.exp(s1)
        inv1 = pl.reciprocal(jnp.sum(e1, axis=-1, keepdims=True), approx=True)
        p = e1 * inv1 * mask_f
        rest = jnp.dot(p, tri, preferred_element_type=f32)      # disttotal - distcum
        dist = jnp.sqrt(jnp.maximum(rest * pos, 0.0))
        # exp(dist * g) <= 1 since g <= 0, dist >= 0: upper 1e5 clip is dead code
        total_effect = jnp.maximum(jnp.exp(dist * g), 1e-5)
        # adjusted softmax (exact reciprocal for the real attention weights)
        s2 = jnp.where(mask_bool, sc * total_effect, neg)
        s2 = s2 - jnp.max(s2, axis=-1, keepdims=True)
        e2 = jnp.exp(s2)
        inv2 = pl.reciprocal(jnp.sum(e2, axis=-1, keepdims=True))
        scores_ref[s] = e2 * inv2
        return carry

    jax.lax.fori_loop(0, n_streams, _stream_body, 0)

    # ---- phase 3: attention-weighted values, concat to a lane-dense block -----
    vm = vm_ref[...]
    vc = vc_ref[...]
    out_m, out_c = [], []
    for hh in range(h):
        if atten_type == "w2":
            a = scores_ref[hh]
            out_m.append(mm(a, hs(vm, hh)))
            out_c.append(mm(a * a, hs(vc, hh)))
        else:
            out_m.append(mm(scores_ref[hh], hs(vm, hh)))
            out_c.append(mm(scores_ref[h + hh], hs(vc, hh)))
    om_ref[...] = jnp.concatenate(out_m, axis=-1).astype(om_ref.dtype)
    oc_ref[...] = jnp.concatenate(out_c, axis=-1).astype(oc_ref.dtype)

    if zero_pad:
        # equivalent to zeroing the first attention row before the AV matmul
        @pl.when(qi == 0)
        def _zero_first_row():
            om_ref[0:1, :] = jnp.zeros((1, om_ref.shape[-1]), om_ref.dtype)
            oc_ref[0:1, :] = jnp.zeros((1, oc_ref.shape[-1]), oc_ref.dtype)


def _attention_pallas(qm, qc, km, kc, vm, vc, mask, g_stream,
                      d_k, n_heads, atten_type, zero_pad):
    bs_, S, d_model = qm.shape
    n_streams = g_stream.shape[0]
    vlim = _vmem_limit()
    tq = _pick_tq(S, n_streams, vlim)
    kernel = functools.partial(_attn_kernel, d_k=d_k, n_heads=n_heads,
                               atten_type=atten_type, zero_pad=zero_pad)
    q_spec = pl.BlockSpec((None, tq, d_model), lambda b, i: (b, i, 0))
    kv_spec = pl.BlockSpec((None, S, d_model), lambda b, i: (b, 0, 0))
    mask2d = mask.reshape(mask.shape[-2], mask.shape[-1]).astype(jnp.float32)
    return pl.pallas_call(
        kernel,
        grid=(bs_, S // tq),
        in_specs=[
            pl.BlockSpec(memory_space=pltpu.MemorySpace.SMEM),   # -softplus(gamma)
            pl.BlockSpec((tq, S), lambda b, i: (i, 0)),          # mask (shared)
            q_spec, q_spec, kv_spec, kv_spec, kv_spec, kv_spec,
        ],
        out_specs=[q_spec, q_spec],
        out_shape=[jax.ShapeDtypeStruct((bs_, S, d_model), jnp.bfloat16)] * 2,
        scratch_shapes=[pltpu.VMEM((n_streams, tq, S), jnp.float32)],
        compiler_params=pltpu.CompilerParams(
            dimension_semantics=("parallel", "parallel"),
            vmem_limit_bytes=vlim),
    )(g_stream.astype(jnp.float32), mask2d, qm, qc, km, kc, vm, vc)


# ----------------------------------- module wrapper -----------------------------
def init_params(key, d_model, n_heads, kq_same):
    """Torch-equivalent init.  Projection weights are stored pre-transposed to
    (d_in, d_out), pre-stacked per fused pallas_call and pre-cast to bf16."""
    def xavier(k, shape, fan_in, fan_out):
        bound = math.sqrt(6.0 / (fan_in + fan_out))
        return jax.random.uniform(k, shape, jnp.float32, -bound, bound)

    names = ["v_mean", "v_cov", "k_mean", "k_cov", "out_mean", "out_cov"]
    if not kq_same:
        names += ["q_mean", "q_cov"]
    keys = jax.random.split(key, len(names) + 1)
    w = {n: xavier(k, (d_model, d_model), d_model, d_model)
         for k, n in zip(keys[:-1], names)}

    if kq_same:
        in_order = ["k_mean", "k_cov", "k_mean", "k_cov", "v_mean", "v_cov"]
    else:
        in_order = ["k_mean", "k_cov", "q_mean", "q_cov", "v_mean", "v_cov"]
    return {
        "in_proj_w": jnp.stack([w[n] for n in in_order]).astype(jnp.bfloat16),
        "in_proj_b": jnp.zeros((6, 1, d_model), jnp.float32),
        "out_proj_w": jnp.stack([w["out_mean"], w["out_cov"]]).astype(jnp.bfloat16),
        "out_proj_b": jnp.zeros((2, 1, d_model), jnp.float32),
        "gammas": xavier(keys[-1], (n_heads, 1, 1), 1, n_heads),
    }


def multi_head_attention(params, q_mean, q_cov, k_mean, k_cov, v_mean, v_cov,
                         mask, atten_type, zero_pad, *, d_model, n_heads, kq_same):
    bs_, seq, _ = q_mean.shape
    d_k = d_model // n_heads
    M = bs_ * seq

    def flat(x):
        return x.reshape(M, d_model)

    def unflat(x):
        return x.reshape(bs_, seq, d_model)

    # all six input projections in one fused, M-tiled pallas_call (bf16 out)
    km, kc, qm, qc, vm, vc = multi_linear(
        [flat(k_mean), flat(k_cov), flat(q_mean), flat(q_cov),
         flat(v_mean), flat(v_cov)],
        params["in_proj_w"], params["in_proj_b"], out_dtype=jnp.bfloat16)

    # hoist -softplus(gamma); one scalar per score stream (SMEM in the kernel)
    gamma_neg = -jax.nn.softplus(params["gammas"].astype(jnp.float32).reshape(n_heads))
    if atten_type == "w2":
        g_stream = gamma_neg                       # one W2 stream per head
    else:  # "dp": mean streams then cov streams share the per-head gamma
        g_stream = jnp.concatenate([gamma_neg, gamma_neg])

    # TODO(synk): nn.Dropout on attention probabilities is identity (eval mode).
    om, oc = _attention_pallas(unflat(qm), unflat(qc), unflat(km), unflat(kc),
                               unflat(vm), unflat(vc), mask, g_stream,
                               d_k, n_heads, atten_type, zero_pad)

    # both output projections in one fused pallas_call (f32 module outputs)
    out_m, out_c = multi_linear(
        [om.reshape(M, d_model), oc.reshape(M, d_model)],
        params["out_proj_w"], params["out_proj_b"], out_dtype=jnp.float32)
    return unflat(out_m), unflat(out_c)


if __name__ == "__main__":
    bs, seq, d_model, n_heads = 2, 16, 64, 2
    kq_same = False

    key = jax.random.PRNGKey(0)
    pkey, k0, k1, k2, k3, k4, k5 = jax.random.split(key, 7)
    params = init_params(pkey, d_model, n_heads, kq_same)

    shape = (bs, seq, d_model)
    q_mean = jax.random.normal(k0, shape, jnp.float32)
    q_cov = jax.random.normal(k1, shape, jnp.float32)
    k_mean = jax.random.normal(k2, shape, jnp.float32)
    k_cov = jax.random.normal(k3, shape, jnp.float32)
    v_mean = jax.random.normal(k4, shape, jnp.float32)
    v_cov = jax.random.normal(k5, shape, jnp.float32)

    # causal mask (lower triangular incl. diagonal), (seq, seq)
    mask = jnp.tril(jnp.ones((seq, seq), jnp.float32))

    fwd = jax.jit(multi_head_attention,
                  static_argnames=("atten_type", "zero_pad", "d_model",
                                   "n_heads", "kq_same"))

    out_m_w2, out_c_w2 = fwd(params, q_mean, q_cov, k_mean, k_cov, v_mean, v_cov,
                             mask, "w2", True, d_model=d_model,
                             n_heads=n_heads, kq_same=kq_same)
    out_m_dp, out_c_dp = fwd(params, q_mean, q_cov, k_mean, k_cov, v_mean, v_cov,
                             mask, "dp", True, d_model=d_model,
                             n_heads=n_heads, kq_same=kq_same)

    jax.block_until_ready((out_m_w2, out_c_w2, out_m_dp, out_c_dp))
    assert out_m_w2.shape == (bs, seq, d_model) and out_c_w2.shape == (bs, seq, d_model)
    assert out_m_dp.shape == (bs, seq, d_model) and out_c_dp.shape == (bs, seq, d_model)
    assert bool(jnp.all(jnp.isfinite(out_m_w2))) and bool(jnp.all(jnp.isfinite(out_c_w2)))
    assert bool(jnp.all(jnp.isfinite(out_m_dp))) and bool(jnp.all(jnp.isfinite(out_c_dp)))
    print("KERNEL_OK")
</pallas_src>

<mosaic_0001>
module attributes {stable_mosaic.version = 11 : i64} {
  func.func @_multi_proj_kernel(%arg0: i32, %arg1: memref<6x64x64xbf16, #tpu.memory_space<vmem>>, %arg2: memref<6x1x64xf32, #tpu.memory_space<vmem>>, %arg3: memref<32x64xf32, #tpu.memory_space<vmem>>, %arg4: memref<32x64xf32, #tpu.memory_space<vmem>>, %arg5: memref<32x64xf32, #tpu.memory_space<vmem>>, %arg6: memref<32x64xf32, #tpu.memory_space<vmem>>, %arg7: memref<32x64xf32, #tpu.memory_space<vmem>>, %arg8: memref<32x64xf32, #tpu.memory_space<vmem>>, %arg9: memref<32x64xbf16, #tpu.memory_space<vmem>>, %arg10: memref<32x64xbf16, #tpu.memory_space<vmem>>, %arg11: memref<32x64xbf16, #tpu.memory_space<vmem>>, %arg12: memref<32x64xbf16, #tpu.memory_space<vmem>>, %arg13: memref<32x64xbf16, #tpu.memory_space<vmem>>, %arg14: memref<32x64xbf16, #tpu.memory_space<vmem>>) attributes {dimension_semantics = [#tpu.dimension_semantics<parallel>], iteration_bounds = array<i64: 1>, scalar_prefetch = 0 : i64, scratch_operands = 0 : i64, tpu.core_type = #tpu.core_type<tc>, window_params = [{pipeline_mode = #tpu.pipeline_mode<synchronous>, transform_indices = @transform_0, window_bounds = array<i64: 6, 64, 64>}, {pipeline_mode = #tpu.pipeline_mode<synchronous>, transform_indices = @transform_1, window_bounds = array<i64: 6, 1, 64>}, {transform_indices = @transform_2, window_bounds = array<i64: 32, 64>}, {transform_indices = @transform_3, window_bounds = array<i64: 32, 64>}, {transform_indices = @transform_4, window_bounds = array<i64: 32, 64>}, {transform_indices = @transform_5, window_bounds = array<i64: 32, 64>}, {transform_indices = @transform_6, window_bounds = array<i64: 32, 64>}, {transform_indices = @transform_7, window_bounds = array<i64: 32, 64>}, {transform_indices = @transform_8, window_bounds = array<i64: 32, 64>}, {transform_indices = @transform_9, window_bounds = array<i64: 32, 64>}, {transform_indices = @transform_10, window_bounds = array<i64: 32, 64>}, {transform_indices = @transform_11, window_bounds = array<i64: 32, 64>}, {transform_indices = @transform_12, window_bounds = array<i64: 32, 64>}, {transform_indices = @transform_13, window_bounds = array<i64: 32, 64>}]} {
    %c0 = arith.constant 0 : index
    %c0_0 = arith.constant 0 : index
    %0 = vector.load %arg3[%c0, %c0_0] : memref<32x64xf32, #tpu.memory_space<vmem>>, vector<32x64xf32>
    %1 = arith.truncf %0 : vector<32x64xf32> to vector<32x64xbf16>
    %c0_1 = arith.constant 0 : index
    %c0_2 = arith.constant 0 : index
    %c0_3 = arith.constant 0 : index
    %2 = vector.load %arg1[%c0_1, %c0_2, %c0_3] : memref<6x64x64xbf16, #tpu.memory_space<vmem>>, vector<1x64x64xbf16>
    %3 = vector.shape_cast %2 : vector<1x64x64xbf16> to vector<64x64xbf16>
    %cst = arith.constant dense<0.000000e+00> : vector<32x64xf32>
    %4 = tpu.matmul %1, %3, %cst {dimension_numbers = #tpu.dot_dimension_numbers<[1], [0], [0], [1], [0, 0, 1, 1], [], []>} : vector<32x64xbf16>, vector<64x64xbf16>, vector<32x64xf32> -> vector<32x64xf32>
    %c0_4 = arith.constant 0 : index
    %c0_5 = arith.constant 0 : index
    %c0_6 = arith.constant 0 : index
    %5 = vector.load %arg2[%c0_4, %c0_5, %c0_6] : memref<6x1x64xf32, #tpu.memory_space<vmem>>, vector<1x1x64xf32>
    %6 = vector.shape_cast %5 : vector<1x1x64xf32> to vector<1x64xf32>
    %7 = vector.broadcast %6 : vector<1x64xf32> to vector<32x64xf32>
    %8 = arith.addf %4, %7 : vector<32x64xf32>
    %9 = arith.truncf %8 : vector<32x64xf32> to vector<32x64xbf16>
    %c0_7 = arith.constant 0 : index
    %c0_8 = arith.constant 0 : index
    %10 = vector.load %arg9[%c0_7, %c0_8] : memref<32x64xbf16, #tpu.memory_space<vmem>>, vector<32x64xbf16>
    tpu.vector_store %arg9[%c0_7, %c0_8], %9 {strides = array<i32>} : memref<32x64xbf16, #tpu.memory_space<vmem>>, vector<32x64xbf16>,
    %c0_9 = arith.constant 0 : index
    %c0_10 = arith.constant 0 : index
    %11 = vector.load %arg4[%c0_9, %c0_10] : memref<32x64xf32, #tpu.memory_space<vmem>>, vector<32x64xf32>
    %12 = arith.truncf %11 : vector<32x64xf32> to vector<32x64xbf16>
    %c1 = arith.constant 1 : index
    %c0_11 = arith.constant 0 : index
    %c0_12 = arith.constant 0 : index
    %13 = vector.load %arg1[%c1, %c0_11, %c0_12] : memref<6x64x64xbf16, #tpu.memory_space<vmem>>, vector<1x64x64xbf16>
    %14 = vector.shape_cast %13 : vector<1x64x64xbf16> to vector<64x64xbf16>
    %cst_13 = arith.constant dense<0.000000e+00> : vector<32x64xf32>
    %15 = tpu.matmul %12, %14, %cst_13 {dimension_numbers = #tpu.dot_dimension_numbers<[1], [0], [0], [1], [0, 0, 1, 1], [], []>} : vector<32x64xbf16>, vector<64x64xbf16>, vector<32x64xf32> -> vector<32x64xf32>
    %c1_14 = arith.constant 1 : index
    %c0_15 = arith.constant 0 : index
    %c0_16 = arith.constant 0 : index
    %16 = vector.load %arg2[%c1_14, %c0_15, %c0_16] : memref<6x1x64xf32, #tpu.memory_space<vmem>>, vector<1x1x64xf32>
    %17 = vector.shape_cast %16 : vector<1x1x64xf32> to vector<1x64xf32>
    %18 = vector.broadcast %17 : vector<1x64xf32> to vector<32x64xf32>
    %19 = arith.addf %15, %18 : vector<32x64xf32>
    %20 = arith.truncf %19 : vector<32x64xf32> to vector<32x64xbf16>
    %c0_17 = arith.constant 0 : index
    %c0_18 = arith.constant 0 : index
    %21 = vector.load %arg10[%c0_17, %c0_18] : memref<32x64xbf16, #tpu.memory_space<vmem>>, vector<32x64xbf16>
    tpu.vector_store %arg10[%c0_17, %c0_18], %20 {strides = array<i32>} : memref<32x64xbf16, #tpu.memory_space<vmem>>, vector<32x64xbf16>,
    %c0_19 = arith.constant 0 : index
    %c0_20 = arith.constant 0 : index
    %22 = vector.load %arg5[%c0_19, %c0_20] : memref<32x64xf32, #tpu.memory_space<vmem>>, vector<32x64xf32>
    %23 = arith.truncf %22 : vector<32x64xf32> to vector<32x64xbf16>
    %c2 = arith.constant 2 : index
    %c0_21 = arith.constant 0 : index
    %c0_22 = arith.constant 0 : index
    %24 = vector.load %arg1[%c2, %c0_21, %c0_22] : memref<6x64x64xbf16, #tpu.memory_space<vmem>>, vector<1x64x64xbf16>
    %25 = vector.shape_cast %24 : vector<1x64x64xbf16> to vector<64x64xbf16>
    %cst_23 = arith.constant dense<0.000000e+00> : vector<32x64xf32>
    %26 = tpu.matmul %23, %25, %cst_23 {dimension_numbers = #tpu.dot_dimension_numbers<[1], [0], [0], [1], [0, 0, 1, 1], [], []>} : vector<32x64xbf16>, vector<64x64xbf16>, vector<32x64xf32> -> vector<32x64xf32>
    %c2_24 = arith.constant 2 : index
    %c0_25 = arith.constant 0 : index
    %c0_26 = arith.constant 0 : index
    %27 = vector.load %arg2[%c2_24, %c0_25, %c0_26] : memref<6x1x64xf32, #tpu.memory_space<vmem>>, vector<1x1x64xf32>
    %28 = vector.shape_cast %27 : vector<1x1x64xf32> to vector<1x64xf32>
    %29 = vector.broadcast %28 : vector<1x64xf32> to vector<32x64xf32>
    %30 = arith.addf %26, %29 : vector<32x64xf32>
    %31 = arith.truncf %30 : vector<32x64xf32> to vector<32x64xbf16>
    %c0_27 = arith.constant 0 : index
    %c0_28 = arith.constant 0 : index
    %32 = vector.load %arg11[%c0_27, %c0_28] : memref<32x64xbf16, #tpu.memory_space<vmem>>, vector<32x64xbf16>
    tpu.vector_store %arg11[%c0_27, %c0_28], %31 {strides = array<i32>} : memref<32x64xbf16, #tpu.memory_space<vmem>>, vector<32x64xbf16>,
    %c0_29 = arith.constant 0 : index
    %c0_30 = arith.constant 0 : index
    %33 = vector.load %arg6[%c0_29, %c0_30] : memref<32x64xf32, #tpu.memory_space<vmem>>, vector<32x64xf32>
    %34 = arith.truncf %33 : vector<32x64xf32> to vector<32x64xbf16>
    %c3 = arith.constant 3 : index
    %c0_31 = arith.constant 0 : index
    %c0_32 = arith.constant 0 : index
    %35 = vector.load %arg1[%c3, %c0_31, %c0_32] : memref<6x64x64xbf16, #tpu.memory_space<vmem>>, vector<1x64x64xbf16>
    %36 = vector.shape_cast %35 : vector<1x64x64xbf16> to vector<64x64xbf16>
    %cst_33 = arith.constant dense<0.000000e+00> : vector<32x64xf32>
    %37 = tpu.matmul %34, %36, %cst_33 {dimension_numbers = #tpu.dot_dimension_numbers<[1], [0], [0], [1], [0, 0, 1, 1], [], []>} : vector<32x64xbf16>, vector<64x64xbf16>, vector<32x64xf32> -> vector<32x64xf32>
    %c3_34 = arith.constant 3 : index
    %c0_35 = arith.constant 0 : index
    %c0_36 = arith.constant 0 : index
    %38 = vector.load %arg2[%c3_34, %c0_35, %c0_36] : memref<6x1x64xf32, #tpu.memory_space<vmem>>, vector<1x1x64xf32>
    %39 = vector.shape_cast %38 : vector<1x1x64xf32> to vector<1x64xf32>
    %40 = vector.broadcast %39 : vector<1x64xf32> to vector<32x64xf32>
    %41 = arith.addf %37, %40 : vector<32x64xf32>
    %42 = arith.truncf %41 : vector<32x64xf32> to vector<32x64xbf16>
    %c0_37 = arith.constant 0 : index
    %c0_38 = arith.constant 0 : index
    %43 = vector.load %arg12[%c0_37, %c0_38] : memref<32x64xbf16, #tpu.memory_space<vmem>>, vector<32x64xbf16>
    tpu.vector_store %arg12[%c0_37, %c0_38], %42 {strides = array<i32>} : memref<32x64xbf16, #tpu.memory_space<vmem>>, vector<32x64xbf16>,
    %c0_39 = arith.constant 0 : index
    %c0_40 = arith.constant 0 : index
    %44 = vector.load %arg7[%c0_39, %c0_40] : memref<32x64xf32, #tpu.memory_space<vmem>>, vector<32x64xf32>
    %45 = arith.truncf %44 : vector<32x64xf32> to vector<32x64xbf16>
    %c4 = arith.constant 4 : index
    %c0_41 = arith.constant 0 : index
    %c0_42 = arith.constant 0 : index
    %46 = vector.load %arg1[%c4, %c0_41, %c0_42] : memref<6x64x64xbf16, #tpu.memory_space<vmem>>, vector<1x64x64xbf16>
    %47 = vector.shape_cast %46 : vector<1x64x64xbf16> to vector<64x64xbf16>
    %cst_43 = arith.constant dense<0.000000e+00> : vector<32x64xf32>
    %48 = tpu.matmul %45, %47, %cst_43 {dimension_numbers = #tpu.dot_dimension_numbers<[1], [0], [0], [1], [0, 0, 1, 1], [], []>} : vector<32x64xbf16>, vector<64x64xbf16>, vector<32x64xf32> -> vector<32x64xf32>
    %c4_44 = arith.constant 4 : index
    %c0_45 = arith.constant 0 : index
    %c0_46 = arith.constant 0 : index
    %49 = vector.load %arg2[%c4_44, %c0_45, %c0_46] : memref<6x1x64xf32, #tpu.memory_space<vmem>>, vector<1x1x64xf32>
    %50 = vector.shape_cast %49 : vector<1x1x64xf32> to vector<1x64xf32>
    %51 = vector.broadcast %50 : vector<1x64xf32> to vector<32x64xf32>
    %52 = arith.addf %48, %51 : vector<32x64xf32>
    %53 = arith.truncf %52 : vector<32x64xf32> to vector<32x64xbf16>
    %c0_47 = arith.constant 0 : index
    %c0_48 = arith.constant 0 : index
    %54 = vector.load %arg13[%c0_47, %c0_48] : memref<32x64xbf16, #tpu.memory_space<vmem>>, vector<32x64xbf16>
    tpu.vector_store %arg13[%c0_47, %c0_48], %53 {strides = array<i32>} : memref<32x64xbf16, #tpu.memory_space<vmem>>, vector<32x64xbf16>,
    %c0_49 = arith.constant 0 : index
    %c0_50 = arith.constant 0 : index
    %55 = vector.load %arg8[%c0_49, %c0_50] : memref<32x64xf32, #tpu.memory_space<vmem>>, vector<32x64xf32>
    %56 = arith.truncf %55 : vector<32x64xf32> to vector<32x64xbf16>
    %c5 = arith.constant 5 : index
    %c0_51 = arith.constant 0 : index
    %c0_52 = arith.constant 0 : index
    %57 = vector.load %arg1[%c5, %c0_51, %c0_52] : memref<6x64x64xbf16, #tpu.memory_space<vmem>>, vector<1x64x64xbf16>
    %58 = vector.shape_cast %57 : vector<1x64x64xbf16> to vector<64x64xbf16>
    %cst_53 = arith.constant dense<0.000000e+00> : vector<32x64xf32>
    %59 = tpu.matmul %56, %58, %cst_53 {dimension_numbers = #tpu.dot_dimension_numbers<[1], [0], [0], [1], [0, 0, 1, 1], [], []>} : vector<32x64xbf16>, vector<64x64xbf16>, vector<32x64xf32> -> vector<32x64xf32>
    %c5_54 = arith.constant 5 : index
    %c0_55 = arith.constant 0 : index
    %c0_56 = arith.constant 0 : index
    %60 = vector.load %arg2[%c5_54, %c0_55, %c0_56] : memref<6x1x64xf32, #tpu.memory_space<vmem>>, vector<1x1x64xf32>
    %61 = vector.shape_cast %60 : vector<1x1x64xf32> to vector<1x64xf32>
    %62 = vector.broadcast %61 : vector<1x64xf32> to vector<32x64xf32>
    %63 = arith.addf %59, %62 : vector<32x64xf32>
    %64 = arith.truncf %63 : vector<32x64xf32> to vector<32x64xbf16>
    %c0_57 = arith.constant 0 : index
    %c0_58 = arith.constant 0 : index
    %65 = vector.load %arg14[%c0_57, %c0_58] : memref<32x64xbf16, #tpu.memory_space<vmem>>, vector<32x64xbf16>
    tpu.vector_store %arg14[%c0_57, %c0_58], %64 {strides = array<i32>} : memref<32x64xbf16, #tpu.memory_space<vmem>>, vector<32x64xbf16>,
    return
  }
  func.func @transform_0(%arg0: i32) -> (i32, i32, i32) {
    %c0_i32 = arith.constant 0 : i32
    %c0_i32_0 = arith.constant 0 : i32
    %c0_i32_1 = arith.constant 0 : i32
    %c0_i32_2 = arith.constant 0 : i32
    return %c0_i32, %c0_i32_0, %c0_i32_1 : i32, i32, i32
  }
  func.func @transform_1(%arg0: i32) -> (i32, i32, i32) {
    %c0_i32 = arith.constant 0 : i32
    %c0_i32_0 = arith.constant 0 : i32
    %c0_i32_1 = arith.constant 0 : i32
    %c0_i32_2 = arith.constant 0 : i32
    return %c0_i32, %c0_i32_0, %c0_i32_1 : i32, i32, i32
  }
  func.func @transform_2(%arg0: i32) -> (i32, i32) {
    %c0_i32 = arith.constant 0 : i32
    %c0_i32_0 = arith.constant 0 : i32
    return %arg0, %c0_i32 : i32, i32
  }
  func.func @transform_3(%arg0: i32) -> (i32, i32) {
    %c0_i32 = arith.constant 0 : i32
    %c0_i32_0 = arith.constant 0 : i32
    return %arg0, %c0_i32 : i32, i32
  }
  func.func @transform_4(%arg0: i32) -> (i32, i32) {
    %c0_i32 = arith.constant 0 : i32
    %c0_i32_0 = arith.constant 0 : i32
    return %arg0, %c0_i32 : i32, i32
  }
  func.func @transform_5(%arg0: i32) -> (i32, i32) {
    %c0_i32 = arith.constant 0 : i32
    %c0_i32_0 = arith.constant 0 : i32
    return %arg0, %c0_i32 : i32, i32
  }
  func.func @transform_6(%arg0: i32) -> (i32, i32) {
    %c0_i32 = arith.constant 0 : i32
    %c0_i32_0 = arith.constant 0 : i32
    return %arg0, %c0_i32 : i32, i32
  }
  func.func @transform_7(%arg0: i32) -> (i32, i32) {
    %c0_i32 = arith.constant 0 : i32
    %c0_i32_0 = arith.constant 0 : i32
    return %arg0, %c0_i32 : i32, i32
  }
  func.func @transform_8(%arg0: i32) -> (i32, i32) {
    %c0_i32 = arith.constant 0 : i32
    %c0_i32_0 = arith.constant 0 : i32
    return %arg0, %c0_i32 : i32, i32
  }
  func.func @transform_9(%arg0: i32) -> (i32, i32) {
    %c0_i32 = arith.constant 0 : i32
    %c0_i32_0 = arith.constant 0 : i32
    return %arg0, %c0_i32 : i32, i32
  }
  func.func @transform_10(%arg0: i32) -> (i32, i32) {
    %c0_i32 = arith.constant 0 : i32
    %c0_i32_0 = arith.constant 0 : i32
    return %arg0, %c0_i32 : i32, i32
  }
  func.func @transform_11(%arg0: i32) -> (i32, i32) {
    %c0_i32 = arith.constant 0 : i32
    %c0_i32_0 = arith.constant 0 : i32
    return %arg0, %c0_i32 : i32, i32
  }
  func.func @transform_12(%arg0: i32) -> (i32, i32) {
    %c0_i32 = arith.constant 0 : i32
    %c0_i32_0 = arith.constant 0 : i32
    return %arg0, %c0_i32 : i32, i32
  }
  func.func @transform_13(%arg0: i32) -> (i32, i32) {
    %c0_i32 = arith.constant 0 : i32
    %c0_i32_0 = arith.constant 0 : i32
    return %arg0, %c0_i32 : i32, i32
  }
}

module attributes {stable_mosaic.version = 11 : i64} {
  func.func @_multi_proj_kernel(%arg0: i32, %arg1: memref<2x64x64xbf16, #tpu.memory_space<vmem>>, %arg2: memref<2x1x64xf32, #tpu.memory_space<vmem>>, %arg3: memref<32x64xbf16, #tpu.memory_space<vmem>>, %arg4: memref<32x64xbf16, #tpu.memory_space<vmem>>, %arg5: memref<32x64xf32, #tpu.memory_space<vmem>>, %arg6: memref<32x64xf32, #tpu.memory_space<vmem>>) attributes {dimension_semantics = [#tpu.dimension_semantics<parallel>], iteration_bounds = array<i64: 1>, scalar_prefetch = 0 : i64, scratch_operands = 0 : i64, tpu.core_type = #tpu.core_type<tc>, window_params = [{pipeline_mode = #tpu.pipeline_mode<synchronous>, transform_indices = @transform_0, window_bounds = array<i64: 2, 64, 64>}, {pipeline_mode = #tpu.pipeline_mode<synchronous>, transform_indices = @transform_1, window_bounds = array<i64: 2, 1, 64>}, {transform_indices = @transform_2, window_bounds = array<i64: 32, 64>}, {transform_indices = @transform_3, window_bounds = array<i64: 32, 64>}, {transform_indices = @transform_4, window_bounds = array<i64: 32, 64>}, {transform_indices = @transform_5, window_bounds = array<i64: 32, 64>}]} {
    %c0 = arith.constant 0 : index
    %c0_0 = arith.constant 0 : index
    %0 = vector.load %arg3[%c0, %c0_0] : memref<32x64xbf16, #tpu.memory_space<vmem>>, vector<32x64xbf16>
    %c0_1 = arith.constant 0 : index
    %c0_2 = arith.constant 0 : index
    %c0_3 = arith.constant 0 : index
    %1 = vector.load %arg1[%c0_1, %c0_2, %c0_3] : memref<2x64x64xbf16, #tpu.memory_space<vmem>>, vector<1x64x64xbf16>
    %2 = vector.shape_cast %1 : vector<1x64x64xbf16> to vector<64x64xbf16>
    %cst = arith.constant dense<0.000000e+00> : vector<32x64xf32>
    %3 = tpu.matmul %0, %2, %cst {dimension_numbers = #tpu.dot_dimension_numbers<[1], [0], [0], [1], [0, 0, 1, 1], [], []>} : vector<32x64xbf16>, vector<64x64xbf16>, vector<32x64xf32> -> vector<32x64xf32>
    %c0_4 = arith.constant 0 : index
    %c0_5 = arith.constant 0 : index
    %c0_6 = arith.constant 0 : index
    %4 = vector.load %arg2[%c0_4, %c0_5, %c0_6] : memref<2x1x64xf32, #tpu.memory_space<vmem>>, vector<1x1x64xf32>
    %5 = vector.shape_cast %4 : vector<1x1x64xf32> to vector<1x64xf32>
    %6 = vector.broadcast %5 : vector<1x64xf32> to vector<32x64xf32>
    %7 = arith.addf %3, %6 : vector<32x64xf32>
    %c0_7 = arith.constant 0 : index
    %c0_8 = arith.constant 0 : index
    %8 = vector.load %arg5[%c0_7, %c0_8] : memref<32x64xf32, #tpu.memory_space<vmem>>, vector<32x64xf32>
    tpu.vector_store %arg5[%c0_7, %c0_8], %7 {strides = array<i32>} : memref<32x64xf32, #tpu.memory_space<vmem>>, vector<32x64xf32>,
    %c0_9 = arith.constant 0 : index
    %c0_10 = arith.constant 0 : index
    %9 = vector.load %arg4[%c0_9, %c0_10] : memref<32x64xbf16, #tpu.memory_space<vmem>>, vector<32x64xbf16>
    %c1 = arith.constant 1 : index
    %c0_11 = arith.constant 0 : index
    %c0_12 = arith.constant 0 : index
    %10 = vector.load %arg1[%c1, %c0_11, %c0_12] : memref<2x64x64xbf16, #tpu.memory_space<vmem>>, vector<1x64x64xbf16>
    %11 = vector.shape_cast %10 : vector<1x64x64xbf16> to vector<64x64xbf16>
    %cst_13 = arith.constant dense<0.000000e+00> : vector<32x64xf32>
    %12 = tpu.matmul %9, %11, %cst_13 {dimension_numbers = #tpu.dot_dimension_numbers<[1], [0], [0], [1], [0, 0, 1, 1], [], []>} : vector<32x64xbf16>, vector<64x64xbf16>, vector<32x64xf32> -> vector<32x64xf32>
    %c1_14 = arith.constant 1 : index
    %c0_15 = arith.constant 0 : index
    %c0_16 = arith.constant 0 : index
    %13 = vector.load %arg2[%c1_14, %c0_15, %c0_16] : memref<2x1x64xf32, #tpu.memory_space<vmem>>, vector<1x1x64xf32>
    %14 = vector.shape_cast %13 : vector<1x1x64xf32> to vector<1x64xf32>
    %15 = vector.broadcast %14 : vector<1x64xf32> to vector<32x64xf32>
    %16 = arith.addf %12, %15 : vector<32x64xf32>
    %c0_17 = arith.constant 0 : index
    %c0_18 = arith.constant 0 : index
    %17 = vector.load %arg6[%c0_17, %c0_18] : memref<32x64xf32, #tpu.memory_space<vmem>>, vector<32x64xf32>
    tpu.vector_store %arg6[%c0_17, %c0_18], %16 {strides = array<i32>} : memref<32x64xf32, #tpu.memory_space<vmem>>, vector<32x64xf32>,
    return
  }
  func.func @transform_0(%arg0: i32) -> (i32, i32, i32) {
    %c0_i32 = arith.constant 0 : i32
    %c0_i32_0 = arith.constant 0 : i32
    %c0_i32_1 = arith.constant 0 : i32
    %c0_i32_2 = arith.constant 0 : i32
    return %c0_i32, %c0_i32_0, %c0_i32_1 : i32, i32, i32
  }
  func.func @transform_1(%arg0: i32) -> (i32, i32, i32) {
    %c0_i32 = arith.constant 0 : i32
    %c0_i32_0 = arith.constant 0 : i32
    %c0_i32_1 = arith.constant 0 : i32
    %c0_i32_2 = arith.constant 0 : i32
    return %c0_i32, %c0_i32_0, %c0_i32_1 : i32, i32, i32
  }
  func.func @transform_2(%arg0: i32) -> (i32, i32) {
    %c0_i32 = arith.constant 0 : i32
    %c0_i32_0 = arith.constant 0 : i32
    return %arg0, %c0_i32 : i32, i32
  }
  func.func @transform_3(%arg0: i32) -> (i32, i32) {
    %c0_i32 = arith.constant 0 : i32
    %c0_i32_0 = arith.constant 0 : i32
    return %arg0, %c0_i32 : i32, i32
  }
  func.func @transform_4(%arg0: i32) -> (i32, i32) {
    %c0_i32 = arith.constant 0 : i32
    %c0_i32_0 = arith.constant 0 : i32
    return %arg0, %c0_i32 : i32, i32
  }
  func.func @transform_5(%arg0: i32) -> (i32, i32) {
    %c0_i32 = arith.constant 0 : i32
    %c0_i32_0 = arith.constant 0 : i32
    return %arg0, %c0_i32 : i32, i32
  }
}

module attributes {stable_mosaic.version = 11 : i64} {
  func.func @_attn_kernel(%arg0: i32, %arg1: i32, %arg2: memref<2xf32, #tpu.memory_space<smem>>, %arg3: memref<16x16xf32, #tpu.memory_space<vmem>>, %arg4: memref<1x16x64xbf16, #tpu.memory_space<vmem>>, %arg5: memref<1x16x64xbf16, #tpu.memory_space<vmem>>, %arg6: memref<1x16x64xbf16, #tpu.memory_space<vmem>>, %arg7: memref<1x16x64xbf16, #tpu.memory_space<vmem>>, %arg8: memref<1x16x64xbf16, #tpu.memory_space<vmem>>, %arg9: memref<1x16x64xbf16, #tpu.memory_space<vmem>>, %arg10: memref<1x16x64xbf16, #tpu.memory_space<vmem>>, %arg11: memref<1x16x64xbf16, #tpu.memory_space<vmem>>, %arg12: memref<2x16x16xf32, #tpu.memory_space<vmem>>) attributes {dimension_semantics = [#tpu.dimension_semantics<parallel>, #tpu.dimension_semantics<parallel>], iteration_bounds = array<i64: 2, 1>, scalar_prefetch = 0 : i64, scratch_operands = 1 : i64, tpu.core_type = #tpu.core_type<tc>, window_params = [{transform_indices = @transform_0, window_bounds = array<i64: 2>}, {transform_indices = @transform_1, window_bounds = array<i64: 16, 16>}, {transform_indices = @transform_2, window_bounds = array<i64: 1, 16, 64>}, {transform_indices = @transform_3, window_bounds = array<i64: 1, 16, 64>}, {transform_indices = @transform_4, window_bounds = array<i64: 1, 16, 64>}, {transform_indices = @transform_5, window_bounds = array<i64: 1, 16, 64>}, {transform_indices = @transform_6, window_bounds = array<i64: 1, 16, 64>}, {transform_indices = @transform_7, window_bounds = array<i64: 1, 16, 64>}, {transform_indices = @transform_8, window_bounds = array<i64: 1, 16, 64>}, {transform_indices = @transform_9, window_bounds = array<i64: 1, 16, 64>}]} {
    %c0 = arith.constant 0 : index
    %c0_0 = arith.constant 0 : index
    %0 = vector.load %arg3[%c0, %c0_0] : memref<16x16xf32, #tpu.memory_space<vmem>>, vector<16x16xf32>
    %cst = arith.constant 0.000000e+00 : f32
    %1 = vector.broadcast %cst : f32 to vector<16x16xf32>
    %2 = arith.cmpf one, %0, %1 : vector<16x16xf32>
    %3 = tpu.iota {dimensions = array<i32: 0>} : vector<16x16xi32>
    %c16_i32 = arith.constant 16 : i32
    %4 = arith.muli %arg1, %c16_i32 : i32
    %5 = vector.broadcast %4 : i32 to vector<16x16xi32>
    %6 = arith.addi %3, %5 : vector<16x16xi32>
    %7 = tpu.iota {dimensions = array<i32: 1>} : vector<16x16xi32>
    %8 = arith.subi %7, %6 : vector<16x16xi32>
    %9 = math.absi %8 : vector<16x16xi32>
    %10 = arith.sitofp %9 : vector<16x16xi32> to vector<16x16xf32>
    %11 = tpu.iota {dimensions = array<i32: 0>} : vector<16x16xi32>
    %12 = tpu.iota {dimensions = array<i32: 1>} : vector<16x16xi32>
    %13 = arith.cmpi sgt, %11, %12 : vector<16x16xi32>
    %14 = arith.extui %13 : vector<16x16xi1> to vector<16x16xi32>
    %15 = arith.sitofp %14 : vector<16x16xi32> to vector<16x16xf32>
    %c0_1 = arith.constant 0 : index
    %c0_2 = arith.constant 0 : index
    %c0_3 = arith.constant 0 : index
    %16 = vector.load %arg4[%c0_1, %c0_2, %c0_3] : memref<1x16x64xbf16, #tpu.memory_space<vmem>>, vector<1x16x64xbf16>
    %17 = vector.shape_cast %16 : vector<1x16x64xbf16> to vector<16x64xbf16>
    %c0_4 = arith.constant 0 : index
    %c0_5 = arith.constant 0 : index
    %c0_6 = arith.constant 0 : index
    %18 = vector.load %arg5[%c0_4, %c0_5, %c0_6] : memref<1x16x64xbf16, #tpu.memory_space<vmem>>, vector<1x16x64xbf16>
    %19 = vector.shape_cast %18 : vector<1x16x64xbf16> to vector<16x64xbf16>
    %c0_7 = arith.constant 0 : index
    %c0_8 = arith.constant 0 : index
    %c0_9 = arith.constant 0 : index
    %20 = vector.load %arg6[%c0_7, %c0_8, %c0_9] : memref<1x16x64xbf16, #tpu.memory_space<vmem>>, vector<1x16x64xbf16>
    %21 = vector.shape_cast %20 : vector<1x16x64xbf16> to vector<16x64xbf16>
    %c0_10 = arith.constant 0 : index
    %c0_11 = arith.constant 0 : index
    %c0_12 = arith.constant 0 : index
    %22 = vector.load %arg7[%c0_10, %c0_11, %c0_12] : memref<1x16x64xbf16, #tpu.memory_space<vmem>>, vector<1x16x64xbf16>
    %23 = vector.shape_cast %22 : vector<1x16x64xbf16> to vector<16x64xbf16>
    %24 = vector.extract_strided_slice %17 {offsets = [0, 0], sizes = [16, 32], strides = [1, 1]} : vector<16x64xbf16> to vector<16x32xbf16>
    %25 = vector.extract_strided_slice %21 {offsets = [0, 0], sizes = [16, 32], strides = [1, 1]} : vector<16x64xbf16> to vector<16x32xbf16>
    %26 = vector.extract_strided_slice %19 {offsets = [0, 0], sizes = [16, 32], strides = [1, 1]} : vector<16x64xbf16> to vector<16x32xbf16>
    %27 = arith.extf %26 : vector<16x32xbf16> to vector<16x32xf32>
    %28 = vector.extract_strided_slice %23 {offsets = [0, 0], sizes = [16, 32], strides = [1, 1]} : vector<16x64xbf16> to vector<16x32xbf16>
    %29 = arith.extf %28 : vector<16x32xbf16> to vector<16x32xf32>
    %30 = arith.extf %24 : vector<16x32xbf16> to vector<16x32xf32>
    %31 = arith.extf %25 : vector<16x32xbf16> to vector<16x32xf32>
    %32 = arith.mulf %30, %30 : vector<16x32xf32>
    %cst_13 = arith.constant dense<0.000000e+00> : vector<16xf32>
    %33 = vector.multi_reduction <add>, %32, %cst_13 [1] : vector<16x32xf32> to vector<16xf32>
    %34 = vector.shape_cast %33 : vector<16xf32> to vector<16x1xf32>
    %35 = arith.mulf %31, %31 : vector<16x32xf32>
    %cst_14 = arith.constant dense<0.000000e+00> : vector<16xf32>
    %36 = vector.multi_reduction <add>, %35, %cst_14 [1] : vector<16x32xf32> to vector<16xf32>
    %37 = vector.shape_cast %36 : vector<16xf32> to vector<16x1xf32>
    %cst_15 = arith.constant dense<0.000000e+00> : vector<16x16xf32>
    %38 = tpu.matmul %24, %25, %cst_15 {dimension_numbers = #tpu.dot_dimension_numbers<[1], [1], [0], [0], [0, 0, 1, 0], [], []>} : vector<16x32xbf16>, vector<16x32xbf16>, vector<16x16xf32> -> vector<16x16xf32>
    %cst_16 = arith.constant -2.000000e+00 : f32
    %39 = vector.broadcast %cst_16 : f32 to vector<16x16xf32>
    %40 = arith.mulf %39, %38 : vector<16x16xf32>
    %41 = vector.broadcast %34 : vector<16x1xf32> to vector<16x16xf32>
    %42 = arith.addf %40, %41 : vector<16x16xf32>
    %43 = tpu.transpose %37, [1, 0] : vector<16x1xf32> -> vector<1x16xf32>
    %44 = vector.broadcast %43 : vector<1x16xf32> to vector<16x16xf32>
    %45 = arith.addf %42, %44 : vector<16x16xf32>
    %cst_17 = arith.constant dense<0.000000e+00> : vector<16xf32>
    %46 = vector.multi_reduction <add>, %27, %cst_17 [1] : vector<16x32xf32> to vector<16xf32>
    %47 = vector.shape_cast %46 : vector<16xf32> to vector<16x1xf32>
    %cst_18 = arith.constant dense<0.000000e+00> : vector<16xf32>
    %48 = vector.multi_reduction <add>, %29, %cst_18 [1] : vector<16x32xf32> to vector<16xf32>
    %49 = vector.shape_cast %48 : vector<16xf32> to vector<16x1xf32>
    %cst_19 = arith.constant 1.000000e-24 : f32
    %50 = vector.broadcast %cst_19 : f32 to vector<16x32xf32>
    %51 = arith.maximumf %27, %50 : vector<16x32xf32>
    %52 = math.sqrt %51 : vector<16x32xf32>
    %cst_20 = arith.constant 1.000000e-24 : f32
    %53 = vector.broadcast %cst_20 : f32 to vector<16x32xf32>
    %54 = arith.maximumf %29, %53 : vector<16x32xf32>
    %55 = math.sqrt %54 : vector<16x32xf32>
    %56 = arith.truncf %52 : vector<16x32xf32> to vector<16x32xbf16>
    %57 = arith.truncf %55 : vector<16x32xf32> to vector<16x32xbf16>
    %cst_21 = arith.constant dense<0.000000e+00> : vector<16x16xf32>
    %58 = tpu.matmul %56, %57, %cst_21 {dimension_numbers = #tpu.dot_dimension_numbers<[1], [1], [0], [0], [0, 0, 1, 0], [], []>} : vector<16x32xbf16>, vector<16x32xbf16>, vector<16x16xf32> -> vector<16x16xf32>
    %cst_22 = arith.constant -2.000000e+00 : f32
    %59 = vector.broadcast %cst_22 : f32 to vector<16x16xf32>
    %60 = arith.mulf %59, %58 : vector<16x16xf32>
    %61 = vector.broadcast %47 : vector<16x1xf32> to vector<16x16xf32>
    %62 = arith.addf %60, %61 : vector<16x16xf32>
    %63 = tpu.transpose %49, [1, 0] : vector<16x1xf32> -> vector<1x16xf32>
    %64 = vector.broadcast %63 : vector<1x16xf32> to vector<16x16xf32>
    %65 = arith.addf %62, %64 : vector<16x16xf32>
    %66 = arith.addf %45, %65 : vector<16x16xf32>
    %cst_23 = arith.constant 0.000000e+00 : f32
    %67 = vector.broadcast %cst_23 : f32 to vector<16x16xf32>
    %68 = arith.subf %67, %66 : vector<16x16xf32>
    %cst_24 = arith.constant 0.176776692 : f32
    %69 = vector.broadcast %cst_24 : f32 to vector<16x16xf32>
    %70 = arith.mulf %68, %69 : vector<16x16xf32>
    %c0_25 = arith.constant 0 : index
    %c0_26 = arith.constant 0 : index
    %c0_27 = arith.constant 0 : index
    %71 = vector.load %arg12[%c0_25, %c0_26, %c0_27] : memref<2x16x16xf32, #tpu.memory_space<vmem>>, vector<1x16x16xf32>
    %72 = vector.shape_cast %71 : vector<1x16x16xf32> to vector<16x16xf32>
    %73 = vector.shape_cast %70 : vector<16x16xf32> to vector<1x16x16xf32>
    tpu.vector_store %arg12[%c0_25, %c0_26, %c0_27], %73 {strides = array<i32>} : memref<2x16x16xf32, #tpu.memory_space<vmem>>, vector<1x16x16xf32>,
    %74 = vector.extract_strided_slice %17 {offsets = [0, 32], sizes = [16, 32], strides = [1, 1]} : vector<16x64xbf16> to vector<16x32xbf16>
    %75 = vector.extract_strided_slice %21 {offsets = [0, 32], sizes = [16, 32], strides = [1, 1]} : vector<16x64xbf16> to vector<16x32xbf16>
    %76 = vector.extract_strided_slice %19 {offsets = [0, 32], sizes = [16, 32], strides = [1, 1]} : vector<16x64xbf16> to vector<16x32xbf16>
    %77 = arith.extf %76 : vector<16x32xbf16> to vector<16x32xf32>
    %78 = vector.extract_strided_slice %23 {offsets = [0, 32], sizes = [16, 32], strides = [1, 1]} : vector<16x64xbf16> to vector<16x32xbf16>
    %79 = arith.extf %78 : vector<16x32xbf16> to vector<16x32xf32>
    %80 = arith.extf %74 : vector<16x32xbf16> to vector<16x32xf32>
    %81 = arith.extf %75 : vector<16x32xbf16> to vector<16x32xf32>
    %82 = arith.mulf %80, %80 : vector<16x32xf32>
    %cst_28 = arith.constant dense<0.000000e+00> : vector<16xf32>
    %83 = vector.multi_reduction <add>, %82, %cst_28 [1] : vector<16x32xf32> to vector<16xf32>
    %84 = vector.shape_cast %83 : vector<16xf32> to vector<16x1xf32>
    %85 = arith.mulf %81, %81 : vector<16x32xf32>
    %cst_29 = arith.constant dense<0.000000e+00> : vector<16xf32>
    %86 = vector.multi_reduction <add>, %85, %cst_29 [1] : vector<16x32xf32> to vector<16xf32>
    %87 = vector.shape_cast %86 : vector<16xf32> to vector<16x1xf32>
    %cst_30 = arith.constant dense<0.000000e+00> : vector<16x16xf32>
    %88 = tpu.matmul %74, %75, %cst_30 {dimension_numbers = #tpu.dot_dimension_numbers<[1], [1], [0], [0], [0, 0, 1, 0], [], []>} : vector<16x32xbf16>, vector<16x32xbf16>, vector<16x16xf32> -> vector<16x16xf32>
    %cst_31 = arith.constant -2.000000e+00 : f32
    %89 = vector.broadcast %cst_31 : f32 to vector<16x16xf32>
    %90 = arith.mulf %89, %88 : vector<16x16xf32>
    %91 = vector.broadcast %84 : vector<16x1xf32> to vector<16x16xf32>
    %92 = arith.addf %90, %91 : vector<16x16xf32>
    %93 = tpu.transpose %87, [1, 0] : vector<16x1xf32> -> vector<1x16xf32>
    %94 = vector.broadcast %93 : vector<1x16xf32> to vector<16x16xf32>
    %95 = arith.addf %92, %94 : vector<16x16xf32>
    %cst_32 = arith.constant dense<0.000000e+00> : vector<16xf32>
    %96 = vector.multi_reduction <add>, %77, %cst_32 [1] : vector<16x32xf32> to vector<16xf32>
    %97 = vector.shape_cast %96 : vector<16xf32> to vector<16x1xf32>
    %cst_33 = arith.constant dense<0.000000e+00> : vector<16xf32>
    %98 = vector.multi_reduction <add>, %79, %cst_33 [1] : vector<16x32xf32> to vector<16xf32>
    %99 = vector.shape_cast %98 : vector<16xf32> to vector<16x1xf32>
    %cst_34 = arith.constant 1.000000e-24 : f32
    %100 = vector.broadcast %cst_34 : f32 to vector<16x32xf32>
    %101 = arith.maximumf %77, %100 : vector<16x32xf32>
    %102 = math.sqrt %101 : vector<16x32xf32>
    %cst_35 = arith.constant 1.000000e-24 : f32
    %103 = vector.broadcast %cst_35 : f32 to vector<16x32xf32>
    %104 = arith.maximumf %79, %103 : vector<16x32xf32>
    %105 = math.sqrt %104 : vector<16x32xf32>
    %106 = arith.truncf %102 : vector<16x32xf32> to vector<16x32xbf16>
    %107 = arith.truncf %105 : vector<16x32xf32> to vector<16x32xbf16>
    %cst_36 = arith.constant dense<0.000000e+00> : vector<16x16xf32>
    %108 = tpu.matmul %106, %107, %cst_36 {dimension_numbers = #tpu.dot_dimension_numbers<[1], [1], [0], [0], [0, 0, 1, 0], [], []>} : vector<16x32xbf16>, vector<16x32xbf16>, vector<16x16xf32> -> vector<16x16xf32>
    %cst_37 = arith.constant -2.000000e+00 : f32
    %109 = vector.broadcast %cst_37 : f32 to vector<16x16xf32>
    %110 = arith.mulf %109, %108 : vector<16x16xf32>
    %111 = vector.broadcast %97 : vector<16x1xf32> to vector<16x16xf32>
    %112 = arith.addf %110, %111 : vector<16x16xf32>
    %113 = tpu.transpose %99, [1, 0] : vector<16x1xf32> -> vector<1x16xf32>
    %114 = vector.broadcast %113 : vector<1x16xf32> to vector<16x16xf32>
    %115 = arith.addf %112, %114 : vector<16x16xf32>
    %116 = arith.addf %95, %115 : vector<16x16xf32>
    %cst_38 = arith.constant 0.000000e+00 : f32
    %117 = vector.broadcast %cst_38 : f32 to vector<16x16xf32>
    %118 = arith.subf %117, %116 : vector<16x16xf32>
    %cst_39 = arith.constant 0.176776692 : f32
    %119 = vector.broadcast %cst_39 : f32 to vector<16x16xf32>
    %120 = arith.mulf %118, %119 : vector<16x16xf32>
    %c1 = arith.constant 1 : index
    %c0_40 = arith.constant 0 : index
    %c0_41 = arith.constant 0 : index
    %121 = vector.load %arg12[%c1, %c0_40, %c0_41] : memref<2x16x16xf32, #tpu.memory_space<vmem>>, vector<1x16x16xf32>
    %122 = vector.shape_cast %121 : vector<1x16x16xf32> to vector<16x16xf32>
    %123 = vector.shape_cast %120 : vector<16x16xf32> to vector<1x16x16xf32>
    tpu.vector_store %arg12[%c1, %c0_40, %c0_41], %123 {strides = array<i32>} : memref<2x16x16xf32, #tpu.memory_space<vmem>>, vector<1x16x16xf32>,
    %cst_42 = arith.constant -1.000000e+32 : f32
    %c0_i32 = arith.constant 0 : i32
    %c2_i32 = arith.constant 2 : i32
    %124 = arith.addi %c0_i32, %c2_i32 : i32
    %c1_i32 = arith.constant 1 : i32
    scf.for %arg13 = %c0_i32 to %124 step %c1_i32  : i32 {
      %160 = arith.index_cast %arg13 : i32 to index
      %c0_68 = arith.constant 0 : index
      %c0_69 = arith.constant 0 : index
      %161 = vector.load %arg12[%160, %c0_68, %c0_69] : memref<2x16x16xf32, #tpu.memory_space<vmem>>, vector<1x16x16xf32>
      %162 = vector.shape_cast %161 : vector<1x16x16xf32> to vector<16x16xf32>
      %163 = arith.index_cast %arg13 : i32 to index
      %164 = memref.load %arg2[%163] : memref<2xf32, #tpu.memory_space<smem>>
      %165 = vector.broadcast %cst_42 : f32 to vector<16x16xf32>
      %166 = arith.select %2, %162, %165 : vector<16x16xi1>, vector<16x16xf32>
      %cst_70 = arith.constant dense<0xFF800000> : vector<16xf32>
      %167 = vector.multi_reduction <maximumf>, %166, %cst_70 [1] : vector<16x16xf32> to vector<16xf32>
      %168 = vector.shape_cast %167 : vector<16xf32> to vector<16x1xf32>
      %169 = vector.broadcast %168 : vector<16x1xf32> to vector<16x16xf32>
      %170 = arith.subf %166, %169 : vector<16x16xf32>
      %171 = math.exp %170 : vector<16x16xf32>
      %cst_71 = arith.constant dense<0.000000e+00> : vector<16xf32>
      %172 = vector.multi_reduction <add>, %171, %cst_71 [1] : vector<16x16xf32> to vector<16xf32>
      %173 = vector.shape_cast %172 : vector<16xf32> to vector<16x1xf32>
      %174 = tpu.reciprocal %173 {approx = true} : vector<16x1xf32> -> vector<16x1xf32>
      %175 = vector.broadcast %174 : vector<16x1xf32> to vector<16x16xf32>
      %176 = arith.mulf %171, %175 : vector<16x16xf32>
      %177 = arith.mulf %176, %0 : vector<16x16xf32>
      %cst_72 = arith.constant dense<0.000000e+00> : vector<16x16xf32>
      %178 = tpu.matmul %177, %15, %cst_72 {dimension_numbers = #tpu.dot_dimension_numbers<[1], [0], [0], [1], [0, 0, 1, 1], [], []>} : vector<16x16xf32>, vector<16x16xf32>, vector<16x16xf32> -> vector<16x16xf32>
      %179 = arith.mulf %178, %10 : vector<16x16xf32>
      %cst_73 = arith.constant 0.000000e+00 : f32
      %180 = vector.broadcast %cst_73 : f32 to vector<16x16xf32>
      %181 = arith.maximumf %179, %180 : vector<16x16xf32>
      %182 = math.sqrt %181 : vector<16x16xf32>
      %183 = vector.broadcast %164 : f32 to vector<16x16xf32>
      %184 = arith.mulf %182, %183 : vector<16x16xf32>
      %185 = math.exp %184 : vector<16x16xf32>
      %cst_74 = arith.constant 9.99999974E-6 : f32
      %186 = vector.broadcast %cst_74 : f32 to vector<16x16xf32>
      %187 = arith.maximumf %185, %186 : vector<16x16xf32>
      %188 = arith.mulf %162, %187 : vector<16x16xf32>
      %189 = vector.broadcast %cst_42 : f32 to vector<16x16xf32>
      %190 = arith.select %2, %188, %189 : vector<16x16xi1>, vector<16x16xf32>
      %cst_75 = arith.constant dense<0xFF800000> : vector<16xf32>
      %191 = vector.multi_reduction <maximumf>, %190, %cst_75 [1] : vector<16x16xf32> to vector<16xf32>
      %192 = vector.shape_cast %191 : vector<16xf32> to vector<16x1xf32>
      %193 = vector.broadcast %192 : vector<16x1xf32> to vector<16x16xf32>
      %194 = arith.subf %190, %193 : vector<16x16xf32>
      %195 = math.exp %194 : vector<16x16xf32>
      %cst_76 = arith.constant dense<0.000000e+00> : vector<16xf32>
      %196 = vector.multi_reduction <add>, %195, %cst_76 [1] : vector<16x16xf32> to vector<16xf32>
      %197 = vector.shape_cast %196 : vector<16xf32> to vector<16x1xf32>
      %198 = tpu.reciprocal %197 : vector<16x1xf32> -> vector<16x1xf32>
      %199 = vector.broadcast %198 : vector<16x1xf32> to vector<16x16xf32>
      %200 = arith.mulf %195, %199 : vector<16x16xf32>
      %201 = arith.index_cast %arg13 : i32 to index
      %c0_77 = arith.constant 0 : index
      %c0_78 = arith.constant 0 : index
      %202 = vector.load %arg12[%201, %c0_77, %c0_78] : memref<2x16x16xf32, #tpu.memory_space<vmem>>, vector<1x16x16xf32>
      %203 = vector.shape_cast %202 : vector<1x16x16xf32> to vector<16x16xf32>
      %204 = vector.shape_cast %200 : vector<16x16xf32> to vector<1x16x16xf32>
      tpu.vector_store %arg12[%201, %c0_77, %c0_78], %204 {strides = array<i32>} : memref<2x16x16xf32, #tpu.memory_space<vmem>>, vector<1x16x16xf32>,
    }
    %c2_i32_43 = arith.constant 2 : i32
    %c0_44 = arith.constant 0 : index
    %c0_45 = arith.constant 0 : index
    %c0_46 = arith.constant 0 : index
    %125 = vector.load %arg8[%c0_44, %c0_45, %c0_46] : memref<1x16x64xbf16, #tpu.memory_space<vmem>>, vector<1x16x64xbf16>
    %126 = vector.shape_cast %125 : vector<1x16x64xbf16> to vector<16x64xbf16>
    %c0_47 = arith.constant 0 : index
    %c0_48 = arith.constant 0 : index
    %c0_49 = arith.constant 0 : index
    %127 = vector.load %arg9[%c0_47, %c0_48, %c0_49] : memref<1x16x64xbf16, #tpu.memory_space<vmem>>, vector<1x16x64xbf16>
    %128 = vector.shape_cast %127 : vector<1x16x64xbf16> to vector<16x64xbf16>
    %c0_50 = arith.constant 0 : index
    %c0_51 = arith.constant 0 : index
    %c0_52 = arith.constant 0 : index
    %129 = vector.load %arg12[%c0_50, %c0_51, %c0_52] : memref<2x16x16xf32, #tpu.memory_space<vmem>>, vector<1x16x16xf32>
    %130 = vector.shape_cast %129 : vector<1x16x16xf32> to vector<16x16xf32>
    %131 = vector.extract_strided_slice %126 {offsets = [0, 0], sizes = [16, 32], strides = [1, 1]} : vector<16x64xbf16> to vector<16x32xbf16>
    %132 = arith.truncf %130 : vector<16x16xf32> to vector<16x16xbf16>
    %cst_53 = arith.constant dense<0.000000e+00> : vector<16x32xf32>
    %133 = tpu.matmul %132, %131, %cst_53 {dimension_numbers = #tpu.dot_dimension_numbers<[1], [0], [0], [1], [0, 0, 1, 1], [], []>} : vector<16x16xbf16>, vector<16x32xbf16>, vector<16x32xf32> -> vector<16x32xf32>
    %134 = arith.mulf %130, %130 : vector<16x16xf32>
    %135 = vector.extract_strided_slice %128 {offsets = [0, 0], sizes = [16, 32], strides = [1, 1]} : vector<16x64xbf16> to vector<16x32xbf16>
    %136 = arith.truncf %134 : vector<16x16xf32> to vector<16x16xbf16>
    %cst_54 = arith.constant dense<0.000000e+00> : vector<16x32xf32>
    %137 = tpu.matmul %136, %135, %cst_54 {dimension_numbers = #tpu.dot_dimension_numbers<[1], [0], [0], [1], [0, 0, 1, 1], [], []>} : vector<16x16xbf16>, vector<16x32xbf16>, vector<16x32xf32> -> vector<16x32xf32>
    %c1_55 = arith.constant 1 : index
    %c0_56 = arith.constant 0 : index
    %c0_57 = arith.constant 0 : index
    %138 = vector.load %arg12[%c1_55, %c0_56, %c0_57] : memref<2x16x16xf32, #tpu.memory_space<vmem>>, vector<1x16x16xf32>
    %139 = vector.shape_cast %138 : vector<1x16x16xf32> to vector<16x16xf32>
    %140 = vector.extract_strided_slice %126 {offsets = [0, 32], sizes = [16, 32], strides = [1, 1]} : vector<16x64xbf16> to vector<16x32xbf16>
    %141 = arith.truncf %139 : vector<16x16xf32> to vector<16x16xbf16>
    %cst_58 = arith.constant dense<0.000000e+00> : vector<16x32xf32>
    %142 = tpu.matmul %141, %140, %cst_58 {dimension_numbers = #tpu.dot_dimension_numbers<[1], [0], [0], [1], [0, 0, 1, 1], [], []>} : vector<16x16xbf16>, vector<16x32xbf16>, vector<16x32xf32> -> vector<16x32xf32>
    %143 = arith.mulf %139, %139 : vector<16x16xf32>
    %144 = vector.extract_strided_slice %128 {offsets = [0, 32], sizes = [16, 32], strides = [1, 1]} : vector<16x64xbf16> to vector<16x32xbf16>
    %145 = arith.truncf %143 : vector<16x16xf32> to vector<16x16xbf16>
    %cst_59 = arith.constant dense<0.000000e+00> : vector<16x32xf32>
    %146 = tpu.matmul %145, %144, %cst_59 {dimension_numbers = #tpu.dot_dimension_numbers<[1], [0], [0], [1], [0, 0, 1, 1], [], []>} : vector<16x16xbf16>, vector<16x32xbf16>, vector<16x32xf32> -> vector<16x32xf32>
    %147 = tpu.concatenate %133, %142 in 1 : vector<16x32xf32>, vector<16x32xf32> -> vector<16x64xf32>
    %148 = arith.truncf %147 : vector<16x64xf32> to vector<16x64xbf16>
    %c0_60 = arith.constant 0 : index
    %c0_61 = arith.constant 0 : index
    %c0_62 = arith.constant 0 : index
    %149 = vector.load %arg10[%c0_60, %c0_61, %c0_62] : memref<1x16x64xbf16, #tpu.memory_space<vmem>>, vector<1x16x64xbf16>
    %150 = vector.shape_cast %149 : vector<1x16x64xbf16> to vector<16x64xbf16>
    %151 = vector.shape_cast %148 : vector<16x64xbf16> to vector<1x16x64xbf16>
    tpu.vector_store %arg10[%c0_60, %c0_61, %c0_62], %151 {strides = array<i32>} : memref<1x16x64xbf16, #tpu.memory_space<vmem>>, vector<1x16x64xbf16>,
    %152 = tpu.concatenate %137, %146 in 1 : vector<16x32xf32>, vector<16x32xf32> -> vector<16x64xf32>
    %153 = arith.truncf %152 : vector<16x64xf32> to vector<16x64xbf16>
    %c0_63 = arith.constant 0 : index
    %c0_64 = arith.constant 0 : index
    %c0_65 = arith.constant 0 : index
    %154 = vector.load %arg11[%c0_63, %c0_64, %c0_65] : memref<1x16x64xbf16, #tpu.memory_space<vmem>>, vector<1x16x64xbf16>
    %155 = vector.shape_cast %154 : vector<1x16x64xbf16> to vector<16x64xbf16>
    %156 = vector.shape_cast %153 : vector<16x64xbf16> to vector<1x16x64xbf16>
    tpu.vector_store %arg11[%c0_63, %c0_64, %c0_65], %156 {strides = array<i32>} : memref<1x16x64xbf16, #tpu.memory_space<vmem>>, vector<1x16x64xbf16>,
    %c0_i32_66 = arith.constant 0 : i32
    %157 = arith.cmpi eq, %arg1, %c0_i32_66 : i32
    %158 = arith.extui %157 : i1 to i32
    %c0_i32_67 = arith.constant 0 : i32
    %159 = arith.cmpi ne, %158, %c0_i32_67 : i32
    scf.if %159 {
      %cst_68 = arith.constant 0.000000e+00 : bf16
      %160 = vector.broadcast %cst_68 : bf16 to vector<1x64xbf16>
      %c0_69 = arith.constant 0 : index
      %c0_70 = arith.constant 0 : index
      %c0_71 = arith.constant 0 : index
      %161 = vector.load %arg10[%c0_69, %c0_70, %c0_71] : memref<1x16x64xbf16, #tpu.memory_space<vmem>>, vector<1x1x64xbf16>
      %162 = vector.shape_cast %161 : vector<1x1x64xbf16> to vector<1x64xbf16>
      %163 = vector.shape_cast %160 : vector<1x64xbf16> to vector<1x1x64xbf16>
      tpu.vector_store %arg10[%c0_69, %c0_70, %c0_71], %163 {strides = array<i32>} : memref<1x16x64xbf16, #tpu.memory_space<vmem>>, vector<1x1x64xbf16>,
      %cst_72 = arith.constant 0.000000e+00 : bf16
      %164 = vector.broadcast %cst_72 : bf16 to vector<1x64xbf16>
      %c0_73 = arith.constant 0 : index
      %c0_74 = arith.constant 0 : index
      %c0_75 = arith.constant 0 : index
      %165 = vector.load %arg11[%c0_73, %c0_74, %c0_75] : memref<1x16x64xbf16, #tpu.memory_space<vmem>>, vector<1x1x64xbf16>
      %166 = vector.shape_cast %165 : vector<1x1x64xbf16> to vector<1x64xbf16>
      %167 = vector.shape_cast %164 : vector<1x64xbf16> to vector<1x1x64xbf16>
      tpu.vector_store %arg11[%c0_73, %c0_74, %c0_75], %167 {strides = array<i32>} : memref<1x16x64xbf16, #tpu.memory_space<vmem>>, vector<1x1x64xbf16>,
    } else {
    }
    return
  }
  func.func @transform_0(%arg0: i32, %arg1: i32) -> i32 {
    %c0_i32 = arith.constant 0 : i32
    %c0_i32_0 = arith.constant 0 : i32
    return %c0_i32 : i32
  }
  func.func @transform_1(%arg0: i32, %arg1: i32) -> (i32, i32) {
    %c0_i32 = arith.constant 0 : i32
    %c0_i32_0 = arith.constant 0 : i32
    return %arg1, %c0_i32 : i32, i32
  }
  func.func @transform_2(%arg0: i32, %arg1: i32) -> (i32, i32, i32) {
    %c0_i32 = arith.constant 0 : i32
    %c0_i32_0 = arith.constant 0 : i32
    return %arg0, %arg1, %c0_i32 : i32, i32, i32
  }
  func.func @transform_3(%arg0: i32, %arg1: i32) -> (i32, i32, i32) {
    %c0_i32 = arith.constant 0 : i32
    %c0_i32_0 = arith.constant 0 : i32
    return %arg0, %arg1, %c0_i32 : i32, i32, i32
  }
  func.func @transform_4(%arg0: i32, %arg1: i32) -> (i32, i32, i32) {
    %c0_i32 = arith.constant 0 : i32
    %c0_i32_0 = arith.constant 0 : i32
    %c0_i32_1 = arith.constant 0 : i32
    return %arg0, %c0_i32, %c0_i32_0 : i32, i32, i32
  }
  func.func @transform_5(%arg0: i32, %arg1: i32) -> (i32, i32, i32) {
    %c0_i32 = arith.constant 0 : i32
    %c0_i32_0 = arith.constant 0 : i32
    %c0_i32_1 = arith.constant 0 : i32
    return %arg0, %c0_i32, %c0_i32_0 : i32, i32, i32
  }
  func.func @transform_6(%arg0: i32, %arg1: i32) -> (i32, i32, i32) {
    %c0_i32 = arith.constant 0 : i32
    %c0_i32_0 = arith.constant 0 : i32
    %c0_i32_1 = arith.constant 0 : i32
    return %arg0, %c0_i32, %c0_i32_0 : i32, i32, i32
  }
  func.func @transform_7(%arg0: i32, %arg1: i32) -> (i32, i32, i32) {
    %c0_i32 = arith.constant 0 : i32
    %c0_i32_0 = arith.constant 0 : i32
    %c0_i32_1 = arith.constant 0 : i32
    return %arg0, %c0_i32, %c0_i32_0 : i32, i32, i32
  }
  func.func @transform_8(%arg0: i32, %arg1: i32) -> (i32, i32, i32) {
    %c0_i32 = arith.constant 0 : i32
    %c0_i32_0 = arith.constant 0 : i32
    return %arg0, %arg1, %c0_i32 : i32, i32, i32
  }
  func.func @transform_9(%arg0: i32, %arg1: i32) -> (i32, i32, i32) {
    %c0_i32 = arith.constant 0 : i32
    %c0_i32_0 = arith.constant 0 : i32
    return %arg0, %arg1, %c0_i32 : i32, i32, i32
  }
}

</mosaic_0001>

<llo_original>
// kernel: multi_head_attention.5
$region0: #{multi_head_attention.5}
  #allocation0 [shape = 'u32[]', space=smem, size = 0x4, offset = 0x4, fixed_abs, tag = 'smem constant byte address 0x4 - core index']
  #allocation1 [shape = 'u32[72,128]{1,0:T(1,128)}', space=vmem, size = 0x9000, scoped, tag = 'internal scratch']
  %s0 = inlined_call_operand.hbm [shape: bf16[2,64,64], index: 0, kind: input, shape index: {}]
  %s1 = inlined_call_operand.vmem [shape: f32[2,1,64], index: 1, kind: input, shape index: {}]
  %s2 = inlined_call_operand.vmem [shape: bf16[32,64], index: 2, kind: input, shape index: {}]
  %s3 = inlined_call_operand.vmem [shape: bf16[32,64], index: 3, kind: input, shape index: {}]
  %s4 = inlined_call_operand.hbm [shape: f32[32,64], index: 4, kind: output, shape index: {0}]
  %s5 = inlined_call_operand.hbm [shape: f32[32,64], index: 5, kind: output, shape index: {1}]
  %6 = xla_tuple %s4, %s5
  %s7 = sld [smem:[#allocation0]]
  $region38: #{multi_head_attention.5} parent=0
    _
  %s9 = ssub.s32 1, %s7
  %s10 = scalar_select 0, %s9, %s7
  $region1: #{multi_head_attention.5} parent=0
    #allocation2 [shape = 'u8[32768]{0}', space=vmem, size = 0x8000, scoped, tag = 'input window, operand 0, single buffered']
    #allocation3 [shape = 's32[1]{0}', space=sflag, size = 0x4, scoped, tag = 'scoped memory for multi_head_attention.5']
    #allocation4 [shape = 's32[1]{0}', space=sflag, size = 0x4, scoped, tag = 'scoped memory for multi_head_attention.5']
    #allocation5 [shape = 'u8[16384]{0}', space=vmem, size = 0x4000, scoped, tag = 'output window, operand 0, single buffered']
    #allocation6 [shape = 'u8[16384]{0}', space=vmem, size = 0x4000, scoped, tag = 'output window, operand 1, single buffered']
    #allocation7 [shape = 's32[1]{0}', space=sflag, size = 0x4, scoped, tag = 'scoped memory for multi_head_attention.5']
    %11 = vsyncpa [#allocation3], 0
    %12 = vsyncpa [#allocation4], 0
    %13 = vsyncpa [#allocation7], 0
    // Predicated region
    $region2: #{multi_head_attention.5} parent=1 // pred_check
      _
    $region3: #{multi_head_attention.5} parent=1 // pred_check_branch
      %15 = sbr.rel (0) target = $region5
    $region4: #{multi_head_attention.5} parent=1 // pred_region
      %17 = vsyncadd [#allocation3], 0
      %s18 = sshll.u32 %s0, 4
      %s19 = int_to_ptr.hbm [resolvable:$true] %s18
      %s20 = sshll.u32 [#allocation2], 4
      %s21 = int_to_ptr.vmem [resolvable:$true] %s20
      %26 = dma.hbm_to_vmem [thread:$0]  %s19, 1024, %s21, [#allocation3], 64, 64, 4
    $region5: #{multi_head_attention.5} parent=1 // pred_fallthru
      _
    // Predicated region
    $region6: #{multi_head_attention.5} parent=1 // pred_check
      _
    $region7: #{multi_head_attention.5} parent=1 // pred_check_branch
      %28 = sbr.rel (0) target = $region9
    $region8: #{multi_head_attention.5} parent=1 // pred_region
      _
    $region9: #{multi_head_attention.5} parent=1 // pred_fallthru
      _
    // Predicated region
    $region10: #{multi_head_attention.5} parent=1 // pred_check
      _
    $region11: #{multi_head_attention.5} parent=1 // pred_check_branch
      %30 = sbr.rel (0) target = $region13
    $region12: #{multi_head_attention.5} parent=1 // pred_region
      _
    $region13: #{multi_head_attention.5} parent=1 // pred_fallthru
      _
    // Predicated region
    $region14: #{multi_head_attention.5} parent=1 // pred_check
      _
    $region15: #{multi_head_attention.5} parent=1 // pred_check_branch
      %32 = sbr.rel (0) target = $region17
    $region16: #{multi_head_attention.5} parent=1 // pred_region
      _
    $region17: #{multi_head_attention.5} parent=1 // pred_fallthru
      _
    // Predicated region
    $region18: #{multi_head_attention.5} parent=1 // pred_check
      _
    $region19: #{multi_head_attention.5} parent=1 // pred_check_branch
      %34 = sbr.rel (0) target = $region21
    $region20: #{multi_head_attention.5} parent=1 // pred_region
      %36 = dma.done [#allocation3], 1024
    $region21: #{multi_head_attention.5} parent=1 // pred_fallthru
      _
    %v38 = vld [vmem:[%s2] sm:$0xf]
    %v39 = vld [vmem:[%s2 + $0x4] sm:$0xf]
    %v40 = vld [vmem:[%s2 + $0x8] sm:$0xf]
    %v41 = vld [vmem:[%s2 + $0xc] sm:$0xf]
    %v42 = vld [vmem:[#allocation2] sm:$0xf]
    %v43 = vld [vmem:[#allocation2 + $0x4] sm:$0xf]
    %v44 = vld [vmem:[#allocation2 + $0x8] sm:$0xf]
    %v45 = vld [vmem:[#allocation2 + $0xc] sm:$0xf]
    %v46 = vld [vmem:[#allocation2 + $0x10] sm:$0xf]
    %v47 = vld [vmem:[#allocation2 + $0x14] sm:$0xf]
    %v48 = vld [vmem:[#allocation2 + $0x18] sm:$0xf]
    %v49 = vld [vmem:[#allocation2 + $0x1c] sm:$0xf]
    %v50 = vld [vmem:[%s1] sm:$0x1]
    %v52 = vperm.slane %v50, 0
    %v58 = vunpack.c.l.b16 %v38
    %v59 = vunpack.c.l.b16 %v39
    %v60 = vunpack.c.l.b16 %v40
    %v61 = vunpack.c.l.b16 %v41
    %v62 = vpack.c.b16 %v59, %v58
    %v63 = vpack.c.b16 %v61, %v60
    %v72 = vunpack.c.l.b16 %v42
    %v73 = vunpack.c.l.b16 %v43
    %v74 = vunpack.c.l.b16 %v44
    %v75 = vunpack.c.l.b16 %v45
    %v76 = vunpack.c.l.b16 %v46
    %v77 = vunpack.c.l.b16 %v47
    %v78 = vunpack.c.l.b16 %v48
    %v79 = vunpack.c.l.b16 %v49
    %v80 = vpack.c.b16 %v73, %v72
    %v81 = vpack.c.b16 %v75, %v74
    %v82 = vpack.c.b16 %v77, %v76
    %v83 = vpack.c.b16 %v79, %v78
    %vm88 = vcmask 523264
    %v90 = vsel %vm88, %v62, 0
    %v93 = vsel %vm88, %v63, 0
    %95 = vmatpush.bf16.msra.mxu0 0
    %96 = vmatpush.bf16.msra.mxu0 0
    %97 = vmatpush.bf16.msra.mxu0 0
    %98 = vmatpush.bf16.msra.mxu0 0
    %99 = vmatpush.bf16.msra.mxu0 %v83
    %100 = vmatpush.bf16.msra.mxu0 %v82
    %101 = vmatpush.bf16.msra.mxu0 %v81
    %102 = vmatpush.bf16.msra.mxu0 %v80
    %103 = vmatmul.bf16.gmra.mxu0 %v90
    %v104 = vpop.f32.mrf.mxu0
    %v105 = vadd.f32 %v52, %v104
    %v106 = vpop.f32.mrf.mxu0
    %v107 = vadd.f32 %v52, %v106
    %108 = vmatmul.bf16.gmra.mxu0 %v93
    %v109 = vpop.f32.mrf.mxu0
    %v110 = vadd.f32 %v52, %v109
    %v111 = vpop.f32.mrf.mxu0
    %v112 = vadd.f32 %v52, %v111
    %113 = vdwg.mxu0
    %114 = vst.msk [vmem:[#allocation5] sm:$0xff] %vm88, %v105
    %115 = vst.msk [vmem:[#allocation5 + $0x8] sm:$0xff] %vm88, %v107
    %116 = vst.msk [vmem:[#allocation5 + $0x10] sm:$0xff] %vm88, %v110
    %117 = vst.msk [vmem:[#allocation5 + $0x18] sm:$0xff] %vm88, %v112
    %v118 = vld [vmem:[%s3] sm:$0xf]
    %v119 = vld [vmem:[%s3 + $0x4] sm:$0xf]
    %v120 = vld [vmem:[%s3 + $0x8] sm:$0xf]
    %v121 = vld [vmem:[%s3 + $0xc] sm:$0xf]
    %s122 = scalar_lea.vmem [#allocation2], 32
    %v123 = vld [vmem:[%s122] sm:$0xf]
    %v124 = vld [vmem:[%s122 + $0x4] sm:$0xf]
    %v125 = vld [vmem:[%s122 + $0x8] sm:$0xf]
    %v126 = vld [vmem:[%s122 + $0xc] sm:$0xf]
    %v127 = vld [vmem:[%s122 + $0x10] sm:$0xf]
    %v128 = vld [vmem:[%s122 + $0x14] sm:$0xf]
    %v129 = vld [vmem:[%s122 + $0x18] sm:$0xf]
    %v130 = vld [vmem:[%s122 + $0x1c] sm:$0xf]
    %s131 = scalar_lea.vmem %s1, 1
    %v132 = vld [vmem:[%s131] sm:$0x1]
    %v134 = vperm.slane %v132, 0
    %v140 = vunpack.c.l.b16 %v118
    %v141 = vunpack.c.l.b16 %v119
    %v142 = vunpack.c.l.b16 %v120
    %v143 = vunpack.c.l.b16 %v121
    %v144 = vpack.c.b16 %v141, %v140
    %v145 = vpack.c.b16 %v143, %v142
    %v154 = vunpack.c.l.b16 %v123
    %v155 = vunpack.c.l.b16 %v124
    %v156 = vunpack.c.l.b16 %v125
    %v157 = vunpack.c.l.b16 %v126
    %v158 = vunpack.c.l.b16 %v127
    %v159 = vunpack.c.l.b16 %v128
    %v160 = vunpack.c.l.b16 %v129
    %v161 = vunpack.c.l.b16 %v130
    %v162 = vpack.c.b16 %v155, %v154
    %v163 = vpack.c.b16 %v157, %v156
    %v164 = vpack.c.b16 %v159, %v158
    %v165 = vpack.c.b16 %v161, %v160
    %v171 = vsel %vm88, %v144, 0
    %v174 = vsel %vm88, %v145, 0
    %176 = vmatpush.bf16.msra.mxu0 0
    %177 = vmatpush.bf16.msra.mxu0 0
    %178 = vmatpush.bf16.msra.mxu0 0
    %179 = vmatpush.bf16.msra.mxu0 0
    %180 = vmatpush.bf16.msra.mxu0 %v165
    %181 = vmatpush.bf16.msra.mxu0 %v164
    %182 = vmatpush.bf16.msra.mxu0 %v163
    %183 = vmatpush.bf16.msra.mxu0 %v162
    %184 = vmatmul.bf16.gmra.mxu0 %v171
    %v185 = vpop.f32.mrf.mxu0
    %v186 = vadd.f32 %v134, %v185
    %v187 = vpop.f32.mrf.mxu0
    %v188 = vadd.f32 %v134, %v187
    %189 = vmatmul.bf16.gmra.mxu0 %v174
    %v190 = vpop.f32.mrf.mxu0
    %v191 = vadd.f32 %v134, %v190
    %v192 = vpop.f32.mrf.mxu0
    %v193 = vadd.f32 %v134, %v192
    %194 = vdwg.mxu0
    %195 = vst.msk [vmem:[#allocation6] sm:$0xff] %vm88, %v186
    %196 = vst.msk [vmem:[#allocation6 + $0x8] sm:$0xff] %vm88, %v188
    %197 = vst.msk [vmem:[#allocation6 + $0x10] sm:$0xff] %vm88, %v191
    %198 = vst.msk [vmem:[#allocation6 + $0x18] sm:$0xff] %vm88, %v193
    // Predicated region
    $region22: #{multi_head_attention.5} parent=1 // pred_check
      _
    $region23: #{multi_head_attention.5} parent=1 // pred_check_branch
      %200 = sbr.rel (0) target = $region25
    $region24: #{multi_head_attention.5} parent=1 // pred_region
      %202 = vsyncadd [#allocation4], 0
      %s203 = sshll.u32 [#allocation5], 4
      %s204 = int_to_ptr.vmem [resolvable:$true] %s203
      %s205 = sshll.u32 %s4, 4
      %s206 = int_to_ptr.hbm [resolvable:$true] %s205
      %211 = dma.vmem_to_hbm [thread:$0]  %s204, 512, %s206, [#allocation4], 128, 128, 8
    $region25: #{multi_head_attention.5} parent=1 // pred_fallthru
      _
    // Predicated region
    $region26: #{multi_head_attention.5} parent=1 // pred_check
      _
    $region27: #{multi_head_attention.5} parent=1 // pred_check_branch
      %213 = sbr.rel (0) target = $region29
    $region28: #{multi_head_attention.5} parent=1 // pred_region
      %215 = vsyncadd [#allocation7], 0
      %s216 = sshll.u32 [#allocation6], 4
      %s217 = int_to_ptr.vmem [resolvable:$true] %s216
      %s218 = sshll.u32 %s5, 4
      %s219 = int_to_ptr.hbm [resolvable:$true] %s218
      %224 = dma.vmem_to_hbm [thread:$0]  %s217, 512, %s219, [#allocation7], 128, 128, 8
    $region29: #{multi_head_attention.5} parent=1 // pred_fallthru
      _
    // Predicated region
    $region30: #{multi_head_attention.5} parent=1 // pred_check
      _
    $region31: #{multi_head_attention.5} parent=1 // pred_check_branch
      %226 = sbr.rel (0) target = $region33
    $region32: #{multi_head_attention.5} parent=1 // pred_region
      %228 = dma.done [#allocation4], 512
    $region33: #{multi_head_attention.5} parent=1 // pred_fallthru
      _
    // Predicated region
    $region34: #{multi_head_attention.5} parent=1 // pred_check
      _
    $region35: #{multi_head_attention.5} parent=1 // pred_check_branch
      %230 = sbr.rel (0) target = $region37
    $region36: #{multi_head_attention.5} parent=1 // pred_region
      %232 = dma.done [#allocation7], 512
    $region37: #{multi_head_attention.5} parent=1 // pred_fallthru
      _
    %233 = vsyncpa [#allocation3], 1
    %234 = vsyncpa [#allocation4], 1
    %235 = vsyncpa [#allocation7], 1

// kernel: multi_head_attention.3
$region0: #{multi_head_attention.3}
  #allocation0 [shape = 'u32[]', space=smem, size = 0x4, offset = 0x4, fixed_abs, tag = 'smem constant byte address 0x4 - core index']
  #allocation1 [shape = 'u32[72,128]{1,0:T(1,128)}', space=vmem, size = 0x9000, scoped, tag = 'internal scratch']
  %s0 = inlined_call_operand.hbm [shape: bf16[6,64,64], index: 0, kind: input, shape index: {}]
  %s1 = inlined_call_operand.hbm [shape: f32[6,1,64], index: 1, kind: input, shape index: {}]
  %s2 = inlined_call_operand.hbm [shape: f32[32,64], index: 2, kind: input, shape index: {}]
  %s3 = inlined_call_operand.hbm [shape: f32[32,64], index: 3, kind: input, shape index: {}]
  %s4 = inlined_call_operand.hbm [shape: f32[32,64], index: 4, kind: input, shape index: {}]
  %s5 = inlined_call_operand.hbm [shape: f32[32,64], index: 5, kind: input, shape index: {}]
  %s6 = inlined_call_operand.hbm [shape: f32[32,64], index: 6, kind: input, shape index: {}]
  %s7 = inlined_call_operand.hbm [shape: f32[32,64], index: 7, kind: input, shape index: {}]
  %s8 = inlined_call_operand.vmem [shape: bf16[32,64], index: 8, kind: output, shape index: {0}]
  %s9 = inlined_call_operand.vmem [shape: bf16[32,64], index: 9, kind: output, shape index: {1}]
  %s10 = inlined_call_operand.vmem [shape: bf16[32,64], index: 10, kind: output, shape index: {2}]
  %s11 = inlined_call_operand.vmem [shape: bf16[32,64], index: 11, kind: output, shape index: {3}]
  %s12 = inlined_call_operand.vmem [shape: bf16[32,64], index: 12, kind: output, shape index: {4}]
  %s13 = inlined_call_operand.vmem [shape: bf16[32,64], index: 13, kind: output, shape index: {5}]
  %14 = xla_tuple %s8, %s9, %s10, %s11, %s12, %s13
  %s15 = sld [smem:[#allocation0]]
  $region114: #{multi_head_attention.3} parent=0
    _
  %s17 = ssub.s32 1, %s15
  %s18 = scalar_select 0, %s17, %s15
  $region1: #{multi_head_attention.3} parent=0
    #allocation2 [shape = 'u8[98304]{0}', space=vmem, size = 0x18000, scoped, tag = 'input window, operand 0, single buffered']
    #allocation3 [shape = 's32[1]{0}', space=sflag, size = 0x4, scoped, tag = 'scoped memory for multi_head_attention.3']
    #allocation4 [shape = 'u8[3072]{0}', space=vmem, size = 0xc00, scoped, tag = 'input window, operand 1, single buffered']
    #allocation5 [shape = 's32[1]{0}', space=sflag, size = 0x4, scoped, tag = 'scoped memory for multi_head_attention.3']
    #allocation6 [shape = 'u8[16384]{0}', space=vmem, size = 0x4000, scoped, tag = 'input window, operand 2, single buffered']
    #allocation7 [shape = 'u8[16384]{0}', space=vmem, size = 0x4000, scoped, tag = 'input window, operand 3, single buffered']
    #allocation8 [shape = 's32[1]{0}', space=sflag, size = 0x4, scoped, tag = 'scoped memory for multi_head_attention.3']
    #allocation9 [shape = 'u8[16384]{0}', space=vmem, size = 0x4000, scoped, tag = 'input window, operand 4, single buffered']
    #allocation10 [shape = 'u8[16384]{0}', space=vmem, size = 0x4000, scoped, tag = 'input window, operand 5, single buffered']
    #allocation11 [shape = 's32[1]{0}', space=sflag, size = 0x4, scoped, tag = 'scoped memory for multi_head_attention.3']
    #allocation12 [shape = 'u8[16384]{0}', space=vmem, size = 0x4000, scoped, tag = 'input window, operand 6, single buffered']
    #allocation13 [shape = 'u8[16384]{0}', space=vmem, size = 0x4000, scoped, tag = 'input window, operand 7, single buffered']
    #allocation14 [shape = 's32[1]{0}', space=sflag, size = 0x4, scoped, tag = 'scoped memory for multi_head_attention.3']
    %19 = vsyncpa [#allocation3], 0
    %20 = vsyncpa [#allocation5], 0
    %21 = vsyncpa [#allocation8], 0
    %22 = vsyncpa [#allocation11], 0
    %23 = vsyncpa [#allocation14], 0
    // Predicated region
    $region2: #{multi_head_attention.3} parent=1 // pred_check
      _
    $region3: #{multi_head_attention.3} parent=1 // pred_check_branch
      %25 = sbr.rel (0) target = $region5
    $region4: #{multi_head_attention.3} parent=1 // pred_region
      %27 = vsyncadd [#allocation3], 0
      %s28 = sshll.u32 %s0, 4
      %s29 = int_to_ptr.hbm [resolvable:$true] %s28
      %s30 = sshll.u32 [#allocation2], 4
      %s31 = int_to_ptr.vmem [resolvable:$true] %s30
      %36 = dma.hbm_to_vmem [thread:$0]  %s29, 3072, %s31, [#allocation3], 64, 64, 4
    $region5: #{multi_head_attention.3} parent=1 // pred_fallthru
      _
    // Predicated region
    $region6: #{multi_head_attention.3} parent=1 // pred_check
      _
    $region7: #{multi_head_attention.3} parent=1 // pred_check_branch
      %38 = sbr.rel (0) target = $region9
    $region8: #{multi_head_attention.3} parent=1 // pred_region
      %40 = vsyncadd [#allocation5], 0
      %s41 = sshll.u32 %s1, 4
      %s42 = int_to_ptr.hbm [resolvable:$true] %s41
      %s43 = sshll.u32 [#allocation4], 4
      %s44 = int_to_ptr.vmem [resolvable:$true] %s43
      %49 = dma.hbm_to_vmem [thread:$0]  %s42, 96, %s44, [#allocation5], 16, 16, 1
    $region9: #{multi_head_attention.3} parent=1 // pred_fallthru
      _
    // Predicated region
    $region10: #{multi_head_attention.3} parent=1 // pred_check
      _
    $region11: #{multi_head_attention.3} parent=1 // pred_check_branch
      %51 = sbr.rel (0) target = $region13
    $region12: #{multi_head_attention.3} parent=1 // pred_region
      %53 = vsyncadd [#allocation5], 0
      %s54 = sshll.u32 %s2, 4
      %s55 = int_to_ptr.hbm [resolvable:$true] %s54
      %s56 = sshll.u32 [#allocation6], 4
      %s57 = int_to_ptr.vmem [resolvable:$true] %s56
      %62 = dma.hbm_to_vmem [thread:$0]  %s55, 512, %s57, [#allocation5], 128, 128, 8
    $region13: #{multi_head_attention.3} parent=1 // pred_fallthru
      _
    // Predicated region
    $region14: #{multi_head_attention.3} parent=1 // pred_check
      _
    $region15: #{multi_head_attention.3} parent=1 // pred_check_branch
      %64 = sbr.rel (0) target = $region17
    $region16: #{multi_head_attention.3} parent=1 // pred_region
      %66 = vsyncadd [#allocation8], 0
      %s67 = sshll.u32 %s3, 4
      %s68 = int_to_ptr.hbm [resolvable:$true] %s67
      %s69 = sshll.u32 [#allocation7], 4
      %s70 = int_to_ptr.vmem [resolvable:$true] %s69
      %75 = dma.hbm_to_vmem [thread:$0]  %s68, 512, %s70, [#allocation8], 128, 128, 8
    $region17: #{multi_head_attention.3} parent=1 // pred_fallthru
      _
    // Predicated region
    $region18: #{multi_head_attention.3} parent=1 // pred_check
      _
    $region19: #{multi_head_attention.3} parent=1 // pred_check_branch
      %77 = sbr.rel (0) target = $region21
    $region20: #{multi_head_attention.3} parent=1 // pred_region
      %79 = vsyncadd [#allocation8], 0
      %s80 = sshll.u32 %s4, 4
      %s81 = int_to_ptr.hbm [resolvable:$true] %s80
      %s82 = sshll.u32 [#allocation9], 4
      %s83 = int_to_ptr.vmem [resolvable:$true] %s82
      %88 = dma.hbm_to_vmem [thread:$0]  %s81, 512, %s83, [#allocation8], 128, 128, 8
    $region21: #{multi_head_attention.3} parent=1 // pred_fallthru
      _
    // Predicated region
    $region22: #{multi_head_attention.3} parent=1 // pred_check
      _
    $region23: #{multi_head_attention.3} parent=1 // pred_check_branch
      %90 = sbr.rel (0) target = $region25
    $region24: #{multi_head_attention.3} parent=1 // pred_region
      %92 = vsyncadd [#allocation11], 0
      %s93 = sshll.u32 %s5, 4
      %s94 = int_to_ptr.hbm [resolvable:$true] %s93
      %s95 = sshll.u32 [#allocation10], 4
      %s96 = int_to_ptr.vmem [resolvable:$true] %s95
      %101 = dma.hbm_to_vmem [thread:$0]  %s94, 512, %s96, [#allocation11], 128, 128, 8
    $region25: #{multi_head_attention.3} parent=1 // pred_fallthru
      _
    // Predicated region
    $region26: #{multi_head_attention.3} parent=1 // pred_check
      _
    $region27: #{multi_head_attention.3} parent=1 // pred_check_branch
      %103 = sbr.rel (0) target = $region29
    $region28: #{multi_head_attention.3} parent=1 // pred_region
      %105 = vsyncadd [#allocation11], 0
      %s106 = sshll.u32 %s6, 4
      %s107 = int_to_ptr.hbm [resolvable:$true] %s106
      %s108 = sshll.u32 [#allocation12], 4
      %s109 = int_to_ptr.vmem [resolvable:$true] %s108
      %114 = dma.hbm_to_vmem [thread:$0]  %s107, 512, %s109, [#allocation11], 128, 128, 8
    $region29: #{multi_head_attention.3} parent=1 // pred_fallthru
      _
    // Predicated region
    $region30: #{multi_head_attention.3} parent=1 // pred_check
      _
    $region31: #{multi_head_attention.3} parent=1 // pred_check_branch
      %116 = sbr.rel (0) target = $region33
    $region32: #{multi_head_attention.3} parent=1 // pred_region
      %118 = vsyncadd [#allocation14], 0
      %s119 = sshll.u32 %s7, 4
      %s120 = int_to_ptr.hbm [resolvable:$true] %s119
      %s121 = sshll.u32 [#allocation13], 4
      %s122 = int_to_ptr.vmem [resolvable:$true] %s121
      %127 = dma.hbm_to_vmem [thread:$0]  %s120, 512, %s122, [#allocation14], 128, 128, 8
    $region33: #{multi_head_attention.3} parent=1 // pred_fallthru
      _
    // Predicated region
    $region34: #{multi_head_attention.3} parent=1 // pred_check
      _
    $region35: #{multi_head_attention.3} parent=1 // pred_check_branch
      %129 = sbr.rel (0) target = $region37
    $region36: #{multi_head_attention.3} parent=1 // pred_region
      %131 = dma.done [#allocation3], 3072
    $region37: #{multi_head_attention.3} parent=1 // pred_fallthru
      _
    // Predicated region
    $region38: #{multi_head_attention.3} parent=1 // pred_check
      _
    $region39: #{multi_head_attention.3} parent=1 // pred_check_branch
      %133 = sbr.rel (0) target = $region41
    $region40: #{multi_head_attention.3} parent=1 // pred_region
      %135 = dma.done [#allocation5], 96
    $region41: #{multi_head_attention.3} parent=1 // pred_fallthru
      _
    // Predicated region
    $region42: #{multi_head_attention.3} parent=1 // pred_check
      _
    $region43: #{multi_head_attention.3} parent=1 // pred_check_branch
      %137 = sbr.rel (0) target = $region45
    $region44: #{multi_head_attention.3} parent=1 // pred_region
      %139 = dma.done [#allocation5], 512
    $region45: #{multi_head_attention.3} parent=1 // pred_fallthru
      _
    // Predicated region
    $region46: #{multi_head_attention.3} parent=1 // pred_check
      _
    $region47: #{multi_head_attention.3} parent=1 // pred_check_branch
      %141 = sbr.rel (0) target = $region49
    $region48: #{multi_head_attention.3} parent=1 // pred_region
      %143 = dma.done [#allocation8], 512
    $region49: #{multi_head_attention.3} parent=1 // pred_fallthru
      _
    // Predicated region
    $region50: #{multi_head_attention.3} parent=1 // pred_check
      _
    $region51: #{multi_head_attention.3} parent=1 // pred_check_branch
      %145 = sbr.rel (0) target = $region53
    $region52: #{multi_head_attention.3} parent=1 // pred_region
      %147 = dma.done [#allocation8], 512
    $region53: #{multi_head_attention.3} parent=1 // pred_fallthru
      _
    // Predicated region
    $region54: #{multi_head_attention.3} parent=1 // pred_check
      _
    $region55: #{multi_head_attention.3} parent=1 // pred_check_branch
      %149 = sbr.rel (0) target = $region57
    $region56: #{multi_head_attention.3} parent=1 // pred_region
      %151 = dma.done [#allocation11], 512
    $region57: #{multi_head_attention.3} parent=1 // pred_fallthru
      _
    // Predicated region
    $region58: #{multi_head_attention.3} parent=1 // pred_check
      _
    $region59: #{multi_head_attention.3} parent=1 // pred_check_branch
      %153 = sbr.rel (0) target = $region61
    $region60: #{multi_head_attention.3} parent=1 // pred_region
      %155 = dma.done [#allocation11], 512
    $region61: #{multi_head_attention.3} parent=1 // pred_fallthru
      _
    // Predicated region
    $region62: #{multi_head_attention.3} parent=1 // pred_check
      _
    $region63: #{multi_head_attention.3} parent=1 // pred_check_branch
      %157 = sbr.rel (0) target = $region65
    $region64: #{multi_head_attention.3} parent=1 // pred_region
      %159 = dma.done [#allocation14], 512
    $region65: #{multi_head_attention.3} parent=1 // pred_fallthru
      _
    %v161 = vld [vmem:[#allocation6] sm:$0xff]
    %v162 = vld [vmem:[#allocation6 + $0x8] sm:$0xff]
    %v163 = vld [vmem:[#allocation6 + $0x10] sm:$0xff]
    %v164 = vld [vmem:[#allocation6 + $0x18] sm:$0xff]
    %v165 = vpack.c.bf16 %v162, %v161
    %v166 = vpack.c.bf16 %v164, %v163
    %v167 = vld [vmem:[#allocation2] sm:$0xf]
    %v168 = vld [vmem:[#allocation2 + $0x4] sm:$0xf]
    %v169 = vld [vmem:[#allocation2 + $0x8] sm:$0xf]
    %v170 = vld [vmem:[#allocation2 + $0xc] sm:$0xf]
    %v171 = vld [vmem:[#allocation2 + $0x10] sm:$0xf]
    %v172 = vld [vmem:[#allocation2 + $0x14] sm:$0xf]
    %v173 = vld [vmem:[#allocation2 + $0x18] sm:$0xf]
    %v174 = vld [vmem:[#allocation2 + $0x1c] sm:$0xf]
    %v175 = vld [vmem:[#allocation4] sm:$0x1]
    %v177 = vperm.slane %v175, 0
    %v187 = vunpack.c.l.b16 %v167
    %v188 = vunpack.c.l.b16 %v168
    %v189 = vunpack.c.l.b16 %v169
    %v190 = vunpack.c.l.b16 %v170
    %v191 = vunpack.c.l.b16 %v171
    %v192 = vunpack.c.l.b16 %v172
    %v193 = vunpack.c.l.b16 %v173
    %v194 = vunpack.c.l.b16 %v174
    %v195 = vpack.c.b16 %v188, %v187
    %v196 = vpack.c.b16 %v190, %v189
    %v197 = vpack.c.b16 %v192, %v191
    %v198 = vpack.c.b16 %v194, %v193
    %vm203 = vcmask 523264
    %v205 = vsel %vm203, %v165, 0
    %v208 = vsel %vm203, %v166, 0
    %210 = vmatpush.bf16.msra.mxu0 0
    %211 = vmatpush.bf16.msra.mxu0 0
    %212 = vmatpush.bf16.msra.mxu0 0
    %213 = vmatpush.bf16.msra.mxu0 0
    %214 = vmatpush.bf16.msra.mxu0 %v198
    %215 = vmatpush.bf16.msra.mxu0 %v197
    %216 = vmatpush.bf16.msra.mxu0 %v196
    %217 = vmatpush.bf16.msra.mxu0 %v195
    %218 = vmatmul.bf16.gmra.mxu0 %v205
    %v219 = vpop.f32.mrf.mxu0
    %v220 = vadd.f32 %v177, %v219
    %v221 = vpop.f32.mrf.mxu0
    %v222 = vadd.f32 %v177, %v221
    %223 = vmatmul.bf16.gmra.mxu0 %v208
    %v224 = vpop.f32.mrf.mxu0
    %v225 = vadd.f32 %v177, %v224
    %v226 = vpop.f32.mrf.mxu0
    %v227 = vadd.f32 %v177, %v226
    %228 = vdwg.mxu0
    %v229 = vpack.c.bf16 %v220, %v220
    %v230 = vpack.c.bf16 %v222, %v222
    %v231 = vpack.c.bf16 %v225, %v225
    %v232 = vpack.c.bf16 %v227, %v227
    %vm233 = vcmask 519168
    %234 = vst.msk [vmem:[%s8] sm:$0xf] %vm233, %v229
    %235 = vst.msk [vmem:[%s8 + $0x4] sm:$0xf] %vm233, %v230
    %236 = vst.msk [vmem:[%s8 + $0x8] sm:$0xf] %vm233, %v231
    %237 = vst.msk [vmem:[%s8 + $0xc] sm:$0xf] %vm233, %v232
    %v238 = vld [vmem:[#allocation7] sm:$0xff]
    %v239 = vld [vmem:[#allocation7 + $0x8] sm:$0xff]
    %v240 = vld [vmem:[#allocation7 + $0x10] sm:$0xff]
    %v241 = vld [vmem:[#allocation7 + $0x18] sm:$0xff]
    %v242 = vpack.c.bf16 %v239, %v238
    %v243 = vpack.c.bf16 %v241, %v240
    %s244 = scalar_lea.vmem [#allocation2], 32
    %v245 = vld [vmem:[%s244] sm:$0xf]
    %v246 = vld [vmem:[%s244 + $0x4] sm:$0xf]
    %v247 = vld [vmem:[%s244 + $0x8] sm:$0xf]
    %v248 = vld [vmem:[%s244 + $0xc] sm:$0xf]
    %v249 = vld [vmem:[%s244 + $0x10] sm:$0xf]
    %v250 = vld [vmem:[%s244 + $0x14] sm:$0xf]
    %v251 = vld [vmem:[%s244 + $0x18] sm:$0xf]
    %v252 = vld [vmem:[%s244 + $0x1c] sm:$0xf]
    %s253 = scalar_lea.vmem [#allocation4], 1
    %v254 = vld [vmem:[%s253] sm:$0x1]
    %v256 = vperm.slane %v254, 0
    %v266 = vunpack.c.l.b16 %v245
    %v267 = vunpack.c.l.b16 %v246
    %v268 = vunpack.c.l.b16 %v247
    %v269 = vunpack.c.l.b16 %v248
    %v270 = vunpack.c.l.b16 %v249
    %v271 = vunpack.c.l.b16 %v250
    %v272 = vunpack.c.l.b16 %v251
    %v273 = vunpack.c.l.b16 %v252
    %v274 = vpack.c.b16 %v267, %v266
    %v275 = vpack.c.b16 %v269, %v268
    %v276 = vpack.c.b16 %v271, %v270
    %v277 = vpack.c.b16 %v273, %v272
    %v283 = vsel %vm203, %v242, 0
    %v286 = vsel %vm203, %v243, 0
    %288 = vmatpush.bf16.msra.mxu0 0
    %289 = vmatpush.bf16.msra.mxu0 0
    %290 = vmatpush.bf16.msra.mxu0 0
    %291 = vmatpush.bf16.msra.mxu0 0
    %292 = vmatpush.bf16.msra.mxu0 %v277
    %293 = vmatpush.bf16.msra.mxu0 %v276
    %294 = vmatpush.bf16.msra.mxu0 %v275
    %295 = vmatpush.bf16.msra.mxu0 %v274
    %296 = vmatmul.bf16.gmra.mxu0 %v283
    %v297 = vpop.f32.mrf.mxu0
    %v298 = vadd.f32 %v256, %v297
    %v299 = vpop.f32.mrf.mxu0
    %v300 = vadd.f32 %v256, %v299
    %301 = vmatmul.bf16.gmra.mxu0 %v286
    %v302 = vpop.f32.mrf.mxu0
    %v303 = vadd.f32 %v256, %v302
    %v304 = vpop.f32.mrf.mxu0
    %v305 = vadd.f32 %v256, %v304
    %306 = vdwg.mxu0
    %v307 = vpack.c.bf16 %v298, %v298
    %v308 = vpack.c.bf16 %v300, %v300
    %v309 = vpack.c.bf16 %v303, %v303
    %v310 = vpack.c.bf16 %v305, %v305
    %311 = vst.msk [vmem:[%s9] sm:$0xf] %vm233, %v307
    %312 = vst.msk [vmem:[%s9 + $0x4] sm:$0xf] %vm233, %v308
    %313 = vst.msk [vmem:[%s9 + $0x8] sm:$0xf] %vm233, %v309
    %314 = vst.msk [vmem:[%s9 + $0xc] sm:$0xf] %vm233, %v310
    %v315 = vld [vmem:[#allocation9] sm:$0xff]
    %v316 = vld [vmem:[#allocation9 + $0x8] sm:$0xff]
    %v317 = vld [vmem:[#allocation9 + $0x10] sm:$0xff]
    %v318 = vld [vmem:[#allocation9 + $0x18] sm:$0xff]
    %v319 = vpack.c.bf16 %v316, %v315
    %v320 = vpack.c.bf16 %v318, %v317
    %s321 = scalar_lea.vmem [#allocation2], 64
    %v322 = vld [vmem:[%s321] sm:$0xf]
    %v323 = vld [vmem:[%s321 + $0x4] sm:$0xf]
    %v324 = vld [vmem:[%s321 + $0x8] sm:$0xf]
    %v325 = vld [vmem:[%s321 + $0xc] sm:$0xf]
    %v326 = vld [vmem:[%s321 + $0x10] sm:$0xf]
    %v327 = vld [vmem:[%s321 + $0x14] sm:$0xf]
    %v328 = vld [vmem:[%s321 + $0x18] sm:$0xf]
    %v329 = vld [vmem:[%s321 + $0x1c] sm:$0xf]
    %s330 = scalar_lea.vmem [#allocation4], 2
    %v331 = vld [vmem:[%s330] sm:$0x1]
    %v333 = vperm.slane %v331, 0
    %v343 = vunpack.c.l.b16 %v322
    %v344 = vunpack.c.l.b16 %v323
    %v345 = vunpack.c.l.b16 %v324
    %v346 = vunpack.c.l.b16 %v325
    %v347 = vunpack.c.l.b16 %v326
    %v348 = vunpack.c.l.b16 %v327
    %v349 = vunpack.c.l.b16 %v328
    %v350 = vunpack.c.l.b16 %v329
    %v351 = vpack.c.b16 %v344, %v343
    %v352 = vpack.c.b16 %v346, %v345
    %v353 = vpack.c.b16 %v348, %v347
    %v354 = vpack.c.b16 %v350, %v349
    %v360 = vsel %vm203, %v319, 0
    %v363 = vsel %vm203, %v320, 0
    %365 = vmatpush.bf16.msra.mxu0 0
    %366 = vmatpush.bf16.msra.mxu0 0
    %367 = vmatpush.bf16.msra.mxu0 0
    %368 = vmatpush.bf16.msra.mxu0 0
    %369 = vmatpush.bf16.msra.mxu0 %v354
    %370 = vmatpush.bf16.msra.mxu0 %v353
    %371 = vmatpush.bf16.msra.mxu0 %v352
    %372 = vmatpush.bf16.msra.mxu0 %v351
    %373 = vmatmul.bf16.gmra.mxu0 %v360
    %v374 = vpop.f32.mrf.mxu0
    %v375 = vadd.f32 %v333, %v374
    %v376 = vpop.f32.mrf.mxu0
    %v377 = vadd.f32 %v333, %v376
    %378 = vmatmul.bf16.gmra.mxu0 %v363
    %v379 = vpop.f32.mrf.mxu0
    %v380 = vadd.f32 %v333, %v379
    %v381 = vpop.f32.mrf.mxu0
    %v382 = vadd.f32 %v333, %v381
    %383 = vdwg.mxu0
    %v384 = vpack.c.bf16 %v375, %v375
    %v385 = vpack.c.bf16 %v377, %v377
    %v386 = vpack.c.bf16 %v380, %v380
    %v387 = vpack.c.bf16 %v382, %v382
    %388 = vst.msk [vmem:[%s10] sm:$0xf] %vm233, %v384
    %389 = vst.msk [vmem:[%s10 + $0x4] sm:$0xf] %vm233, %v385
    %390 = vst.msk [vmem:[%s10 + $0x8] sm:$0xf] %vm233, %v386
    %391 = vst.msk [vmem:[%s10 + $0xc] sm:$0xf] %vm233, %v387
    %v392 = vld [vmem:[#allocation10] sm:$0xff]
    %v393 = vld [vmem:[#allocation10 + $0x8] sm:$0xff]
    %v394 = vld [vmem:[#allocation10 + $0x10] sm:$0xff]
    %v395 = vld [vmem:[#allocation10 + $0x18] sm:$0xff]
    %v396 = vpack.c.bf16 %v393, %v392
    %v397 = vpack.c.bf16 %v395, %v394
    %s398 = scalar_lea.vmem [#allocation2], 96
    %v399 = vld [vmem:[%s398] sm:$0xf]
    %v400 = vld [vmem:[%s398 + $0x4] sm:$0xf]
    %v401 = vld [vmem:[%s398 + $0x8] sm:$0xf]
    %v402 = vld [vmem:[%s398 + $0xc] sm:$0xf]
    %v403 = vld [vmem:[%s398 + $0x10] sm:$0xf]
    %v404 = vld [vmem:[%s398 + $0x14] sm:$0xf]
    %v405 = vld [vmem:[%s398 + $0x18] sm:$0xf]
    %v406 = vld [vmem:[%s398 + $0x1c] sm:$0xf]
    %s407 = scalar_lea.vmem [#allocation4], 3
    %v408 = vld [vmem:[%s407] sm:$0x1]
    %v410 = vperm.slane %v408, 0
    %v420 = vunpack.c.l.b16 %v399
    %v421 = vunpack.c.l.b16 %v400
    %v422 = vunpack.c.l.b16 %v401
    %v423 = vunpack.c.l.b16 %v402
    %v424 = vunpack.c.l.b16 %v403
    %v425 = vunpack.c.l.b16 %v404
    %v426 = vunpack.c.l.b16 %v405
    %v427 = vunpack.c.l.b16 %v406
    %v428 = vpack.c.b16 %v421, %v420
    %v429 = vpack.c.b16 %v423, %v422
    %v430 = vpack.c.b16 %v425, %v424
    %v431 = vpack.c.b16 %v427, %v426
    %v437 = vsel %vm203, %v396, 0
    %v440 = vsel %vm203, %v397, 0
    %442 = vmatpush.bf16.msra.mxu0 0
    %443 = vmatpush.bf16.msra.mxu0 0
    %444 = vmatpush.bf16.msra.mxu0 0
    %445 = vmatpush.bf16.msra.mxu0 0
    %446 = vmatpush.bf16.msra.mxu0 %v431
    %447 = vmatpush.bf16.msra.mxu0 %v430
    %448 = vmatpush.bf16.msra.mxu0 %v429
    %449 = vmatpush.bf16.msra.mxu0 %v428
    %450 = vmatmul.bf16.gmra.mxu0 %v437
    %v451 = vpop.f32.mrf.mxu0
    %v452 = vadd.f32 %v410, %v451
    %v453 = vpop.f32.mrf.mxu0
    %v454 = vadd.f32 %v410, %v453
    %455 = vmatmul.bf16.gmra.mxu0 %v440
    %v456 = vpop.f32.mrf.mxu0
    %v457 = vadd.f32 %v410, %v456
    %v458 = vpop.f32.mrf.mxu0
    %v459 = vadd.f32 %v410, %v458
    %460 = vdwg.mxu0
    %v461 = vpack.c.bf16 %v452, %v452
    %v462 = vpack.c.bf16 %v454, %v454
    %v463 = vpack.c.bf16 %v457, %v457
    %v464 = vpack.c.bf16 %v459, %v459
    %465 = vst.msk [vmem:[%s11] sm:$0xf] %vm233, %v461
    %466 = vst.msk [vmem:[%s11 + $0x4] sm:$0xf] %vm233, %v462
    %467 = vst.msk [vmem:[%s11 + $0x8] sm:$0xf] %vm233, %v463
    %468 = vst.msk [vmem:[%s11 + $0xc] sm:$0xf] %vm233, %v464
    %v469 = vld [vmem:[#allocation12] sm:$0xff]
    %v470 = vld [vmem:[#allocation12 + $0x8] sm:$0xff]
    %v471 = vld [vmem:[#allocation12 + $0x10] sm:$0xff]
    %v472 = vld [vmem:[#allocation12 + $0x18] sm:$0xff]
    %v473 = vpack.c.bf16 %v470, %v469
    %v474 = vpack.c.bf16 %v472, %v471
    %s475 = scalar_lea.vmem [#allocation2], 128
    %v476 = vld [vmem:[%s475] sm:$0xf]
    %v477 = vld [vmem:[%s475 + $0x4] sm:$0xf]
    %v478 = vld [vmem:[%s475 + $0x8] sm:$0xf]
    %v479 = vld [vmem:[%s475 + $0xc] sm:$0xf]
    %v480 = vld [vmem:[%s475 + $0x10] sm:$0xf]
    %v481 = vld [vmem:[%s475 + $0x14] sm:$0xf]
    %v482 = vld [vmem:[%s475 + $0x18] sm:$0xf]
    %v483 = vld [vmem:[%s475 + $0x1c] sm:$0xf]
    %s484 = scalar_lea.vmem [#allocation4], 4
    %v485 = vld [vmem:[%s484] sm:$0x1]
    %v487 = vperm.slane %v485, 0
    %v497 = vunpack.c.l.b16 %v476
    %v498 = vunpack.c.l.b16 %v477
    %v499 = vunpack.c.l.b16 %v478
    %v500 = vunpack.c.l.b16 %v479
    %v501 = vunpack.c.l.b16 %v480
    %v502 = vunpack.c.l.b16 %v481
    %v503 = vunpack.c.l.b16 %v482
    %v504 = vunpack.c.l.b16 %v483
    %v505 = vpack.c.b16 %v498, %v497
    %v506 = vpack.c.b16 %v500, %v499
    %v507 = vpack.c.b16 %v502, %v501
    %v508 = vpack.c.b16 %v504, %v503
    %v514 = vsel %vm203, %v473, 0
    %v517 = vsel %vm203, %v474, 0
    %519 = vmatpush.bf16.msra.mxu0 0
    %520 = vmatpush.bf16.msra.mxu0 0
    %521 = vmatpush.bf16.msra.mxu0 0
    %522 = vmatpush.bf16.msra.mxu0 0
    %523 = vmatpush.bf16.msra.mxu0 %v508
    %524 = vmatpush.bf16.msra.mxu0 %v507
    %525 = vmatpush.bf16.msra.mxu0 %v506
    %526 = vmatpush.bf16.msra.mxu0 %v505
    %527 = vmatmul.bf16.gmra.mxu0 %v514
    %v528 = vpop.f32.mrf.mxu0
    %v529 = vadd.f32 %v487, %v528
    %v530 = vpop.f32.mrf.mxu0
    %v531 = vadd.f32 %v487, %v530
    %532 = vmatmul.bf16.gmra.mxu0 %v517
    %v533 = vpop.f32.mrf.mxu0
    %v534 = vadd.f32 %v487, %v533
    %v535 = vpop.f32.mrf.mxu0
    %v536 = vadd.f32 %v487, %v535
    %537 = vdwg.mxu0
    %v538 = vpack.c.bf16 %v529, %v529
    %v539 = vpack.c.bf16 %v531, %v531
    %v540 = vpack.c.bf16 %v534, %v534
    %v541 = vpack.c.bf16 %v536, %v536
    %542 = vst.msk [vmem:[%s12] sm:$0xf] %vm233, %v538
    %543 = vst.msk [vmem:[%s12 + $0x4] sm:$0xf] %vm233, %v539
    %544 = vst.msk [vmem:[%s12 + $0x8] sm:$0xf] %vm233, %v540
    %545 = vst.msk [vmem:[%s12 + $0xc] sm:$0xf] %vm233, %v541
    %v546 = vld [vmem:[#allocation13] sm:$0xff]
    %v547 = vld [vmem:[#allocation13 + $0x8] sm:$0xff]
    %v548 = vld [vmem:[#allocation13 + $0x10] sm:$0xff]
    %v549 = vld [vmem:[#allocation13 + $0x18] sm:$0xff]
    %v550 = vpack.c.bf16 %v547, %v546
    %v551 = vpack.c.bf16 %v549, %v548
    %s552 = scalar_lea.vmem [#allocation2], 160
    %v553 = vld [vmem:[%s552] sm:$0xf]
    %v554 = vld [vmem:[%s552 + $0x4] sm:$0xf]
    %v555 = vld [vmem:[%s552 + $0x8] sm:$0xf]
    %v556 = vld [vmem:[%s552 + $0xc] sm:$0xf]
    %v557 = vld [vmem:[%s552 + $0x10] sm:$0xf]
    %v558 = vld [vmem:[%s552 + $0x14] sm:$0xf]
    %v559 = vld [vmem:[%s552 + $0x18] sm:$0xf]
    %v560 = vld [vmem:[%s552 + $0x1c] sm:$0xf]
    %s561 = scalar_lea.vmem [#allocation4], 5
    %v562 = vld [vmem:[%s561] sm:$0x1]
    %v564 = vperm.slane %v562, 0
    %v574 = vunpack.c.l.b16 %v553
    %v575 = vunpack.c.l.b16 %v554
    %v576 = vunpack.c.l.b16 %v555
    %v577 = vunpack.c.l.b16 %v556
    %v578 = vunpack.c.l.b16 %v557
    %v579 = vunpack.c.l.b16 %v558
    %v580 = vunpack.c.l.b16 %v559
    %v581 = vunpack.c.l.b16 %v560
    %v582 = vpack.c.b16 %v575, %v574
    %v583 = vpack.c.b16 %v577, %v576
    %v584 = vpack.c.b16 %v579, %v578
    %v585 = vpack.c.b16 %v581, %v580
    %v591 = vsel %vm203, %v550, 0
    %v594 = vsel %vm203, %v551, 0
    %596 = vmatpush.bf16.msra.mxu0 0
    %597 = vmatpush.bf16.msra.mxu0 0
    %598 = vmatpush.bf16.msra.mxu0 0
    %599 = vmatpush.bf16.msra.mxu0 0
    %600 = vmatpush.bf16.msra.mxu0 %v585
    %601 = vmatpush.bf16.msra.mxu0 %v584
    %602 = vmatpush.bf16.msra.mxu0 %v583
    %603 = vmatpush.bf16.msra.mxu0 %v582
    %604 = vmatmul.bf16.gmra.mxu0 %v591
    %v605 = vpop.f32.mrf.mxu0
    %v606 = vadd.f32 %v564, %v605
    %v607 = vpop.f32.mrf.mxu0
    %v608 = vadd.f32 %v564, %v607
    %609 = vmatmul.bf16.gmra.mxu0 %v594
    %v610 = vpop.f32.mrf.mxu0
    %v611 = vadd.f32 %v564, %v610
    %v612 = vpop.f32.mrf.mxu0
    %v613 = vadd.f32 %v564, %v612
    %614 = vdwg.mxu0
    %v615 = vpack.c.bf16 %v606, %v606
    %v616 = vpack.c.bf16 %v608, %v608
    %v617 = vpack.c.bf16 %v611, %v611
    %v618 = vpack.c.bf16 %v613, %v613
    %619 = vst.msk [vmem:[%s13] sm:$0xf] %vm233, %v615
    %620 = vst.msk [vmem:[%s13 + $0x4] sm:$0xf] %vm233, %v616
    %621 = vst.msk [vmem:[%s13 + $0x8] sm:$0xf] %vm233, %v617
    %622 = vst.msk [vmem:[%s13 + $0xc] sm:$0xf] %vm233, %v618
    // Predicated region
    $region66: #{multi_head_attention.3} parent=1 // pred_check
      _
    $region67: #{multi_head_attention.3} parent=1 // pred_check_branch
      %624 = sbr.rel (0) target = $region69
    $region68: #{multi_head_attention.3} parent=1 // pred_region
      _
    $region69: #{multi_head_attention.3} parent=1 // pred_fallthru
      _
    // Predicated region
    $region70: #{multi_head_attention.3} parent=1 // pred_check
      _
    $region71: #{multi_head_attention.3} parent=1 // pred_check_branch
      %626 = sbr.rel (0) target = $region73
    $region72: #{multi_head_attention.3} parent=1 // pred_region
      _
    $region73: #{multi_head_attention.3} parent=1 // pred_fallthru
      _
    // Predicated region
    $region74: #{multi_head_attention.3} parent=1 // pred_check
      _
    $region75: #{multi_head_attention.3} parent=1 // pred_check_branch
      %628 = sbr.rel (0) target = $region77
    $region76: #{multi_head_attention.3} parent=1 // pred_region
      _
    $region77: #{multi_head_attention.3} parent=1 // pred_fallthru
      _
    // Predicated region
    $region78: #{multi_head_attention.3} parent=1 // pred_check
      _
    $region79: #{multi_head_attention.3} parent=1 // pred_check_branch
      %630 = sbr.rel (0) target = $region81
    $region80: #{multi_head_attention.3} parent=1 // pred_region
      _
    $region81: #{multi_head_attention.3} parent=1 // pred_fallthru
      _
    // Predicated region
    $region82: #{multi_head_attention.3} parent=1 // pred_check
      _
    $region83: #{multi_head_attention.3} parent=1 // pred_check_branch
      %632 = sbr.rel (0) target = $region85
    $region84: #{multi_head_attention.3} parent=1 // pred_region
      _
    $region85: #{multi_head_attention.3} parent=1 // pred_fallthru
      _
    // Predicated region
    $region86: #{multi_head_attention.3} parent=1 // pred_check
      _
    $region87: #{multi_head_attention.3} parent=1 // pred_check_branch
      %634 = sbr.rel (0) target = $region89
    $region88: #{multi_head_attention.3} parent=1 // pred_region
      _
    $region89: #{multi_head_attention.3} parent=1 // pred_fallthru
      _
    // Predicated region
    $region90: #{multi_head_attention.3} parent=1 // pred_check
      _
    $region91: #{multi_head_attention.3} parent=1 // pred_check_branch
      %636 = sbr.rel (0) target = $region93
    $region92: #{multi_head_attention.3} parent=1 // pred_region
      _
    $region93: #{multi_head_attention.3} parent=1 // pred_fallthru
      _
    // Predicated region
    $region94: #{multi_head_attention.3} parent=1 // pred_check
      _
    $region95: #{multi_head_attention.3} parent=1 // pred_check_branch
      %638 = sbr.rel (0) target = $region97
    $region96: #{multi_head_attention.3} parent=1 // pred_region
      _
    $region97: #{multi_head_attention.3} parent=1 // pred_fallthru
      _
    // Predicated region
    $region98: #{multi_head_attention.3} parent=1 // pred_check
      _
    $region99: #{multi_head_attention.3} parent=1 // pred_check_branch
      %640 = sbr.rel (0) target = $region101
    $region100: #{multi_head_attention.3} parent=1 // pred_region
      _
    $region101: #{multi_head_attention.3} parent=1 // pred_fallthru
      _
    // Predicated region
    $region102: #{multi_head_attention.3} parent=1 // pred_check
      _
    $region103: #{multi_head_attention.3} parent=1 // pred_check_branch
      %642 = sbr.rel (0) target = $region105
    $region104: #{multi_head_attention.3} parent=1 // pred_region
      _
    $region105: #{multi_head_attention.3} parent=1 // pred_fallthru
      _
    // Predicated region
    $region106: #{multi_head_attention.3} parent=1 // pred_check
      _
    $region107: #{multi_head_attention.3} parent=1 // pred_check_branch
      %644 = sbr.rel (0) target = $region109
    $region108: #{multi_head_attention.3} parent=1 // pred_region
      _
    $region109: #{multi_head_attention.3} parent=1 // pred_fallthru
      _
    // Predicated region
    $region110: #{multi_head_attention.3} parent=1 // pred_check
      _
    $region111: #{multi_head_attention.3} parent=1 // pred_check_branch
      %646 = sbr.rel (0) target = $region113
    $region112: #{multi_head_attention.3} parent=1 // pred_region
      _
    $region113: #{multi_head_attention.3} parent=1 // pred_fallthru
      _
    %647 = vsyncpa [#allocation3], 1
    %648 = vsyncpa [#allocation5], 1
    %649 = vsyncpa [#allocation8], 1
    %650 = vsyncpa [#allocation11], 1
    %651 = vsyncpa [#allocation14], 1

// kernel: multi_head_attention.4
$region0: #{multi_head_attention.4}
  #allocation0 [shape = 'u32[]', space=smem, size = 0x4, offset = 0x4, fixed_abs, tag = 'smem constant byte address 0x4 - core index']
  #allocation1 [shape = 'u32[72,128]{1,0:T(1,128)}', space=vmem, size = 0x9000, scoped, tag = 'internal scratch']
  #allocation2 [shape = 'f32[2,16,16]{2,1,0:T(8,128)}', space=vmem, size = 0x4000, scoped, tag = 'scratch operand']
  %s0 = inlined_call_operand.vmem [shape: f32[2], index: 0, kind: input, shape index: {}]
  %s1 = inlined_call_operand.hbm [shape: f32[16,16], index: 1, kind: input, shape index: {}]
  %s2 = inlined_call_operand.vmem [shape: bf16[2,16,64], index: 2, kind: input, shape index: {}]
  %s3 = inlined_call_operand.vmem [shape: bf16[2,16,64], index: 3, kind: input, shape index: {}]
  %s4 = inlined_call_operand.vmem [shape: bf16[2,16,64], index: 4, kind: input, shape index: {}]
  %s5 = inlined_call_operand.vmem [shape: bf16[2,16,64], index: 5, kind: input, shape index: {}]
  %s6 = inlined_call_operand.vmem [shape: bf16[2,16,64], index: 6, kind: input, shape index: {}]
  %s7 = inlined_call_operand.vmem [shape: bf16[2,16,64], index: 7, kind: input, shape index: {}]
  %s8 = inlined_call_operand.vmem [shape: bf16[2,16,64], index: 8, kind: output, shape index: {0}]
  %s9 = inlined_call_operand.vmem [shape: bf16[2,16,64], index: 9, kind: output, shape index: {1}]
  %10 = xla_tuple %s8, %s9
  %s11 = sld [smem:[#allocation0]]
  $region92: #{multi_head_attention.4} parent=0
    _
  %s13 = ssub.s32 1, %s11
  %s14 = scalar_select 0, %s13, %s11
  $region1: #{multi_head_attention.4} parent=0
    #allocation3 [shape = 'u8[512]{0}', space=smem, size = 0x200, scoped, tag = 'input window, operand 0, single buffered']
    #allocation4 [shape = 's32[2]{0}', space=sflag, size = 0x8, scoped, tag = 'scoped memory for multi_head_attention.4']
    #allocation5 [shape = 's32[2]{0}', space=sflag, size = 0x8, scoped, tag = 'scoped memory for multi_head_attention.4']
    #allocation6 [shape = 'u8[8192]{0}', space=vmem, size = 0x2000, scoped, tag = 'input window, operand 1, single buffered']
    %15 = vsyncpa [#allocation5], 0
    %16 = vsyncpa [#allocation4], 0
    loop: start=0, step=1, limit=4
    $region2: #{multi_head_attention.4} parent=1 // loop_pre_header
      _
    $region3: #{multi_head_attention.4} parent=1 // loop_header
      %s18 = sphi 0, %s22
      %p19 = scmp.ge.s32.totalorder %s18, 4
      %s25 = sphi 0, %s37
      %s26 = sphi 0, %s33
      %s27 = sphi 0, %s25
      %s28 = sphi 0, %s26
      %s29 = sphi 0, %s27
      %s30 = sphi 0, %s28
      %s38 = sphi 0, %s38
      %s40 = sphi 0, %s38
      %s41 = sphi 0, %s40
      %s55 = sphi 0, %s41
      %s61 = sphi 0, %s63
      %s64 = sphi 0, %s61
      %s65 = sphi 0, %s64
      %s81 = sphi 0, %s65
      %s89 = sphi 0, %s91
      %s92 = sphi 0, %s89
      %s93 = sphi 0, %s92
      %s109 = sphi 0, %s93
      %s117 = sphi 0, %s119
      %s120 = sphi 0, %s117
      %s121 = sphi 0, %s120
      %s137 = sphi 0, %s121
      %s143 = sphi 0, %s145
      %s146 = sphi 0, %s143
      %s147 = sphi 0, %s146
      %s163 = sphi 0, %s147
      %s169 = sphi 0, %s171
      %s172 = sphi 0, %s169
      %s173 = sphi 0, %s172
      %s189 = sphi 0, %s173
      %s195 = sphi 0, %s197
      %s198 = sphi 0, %s195
      %s199 = sphi 0, %s198
      %s215 = sphi 0, %s199
      %s221 = sphi 0, %s223
      %s224 = sphi 0, %s221
      %s225 = sphi 0, %s224
      %s241 = sphi 0, %s225
      %s249 = sphi 0, %s251
      %s252 = sphi 0, %s249
      %s253 = sphi 0, %s252
      %s269 = sphi 0, %s253
      %s277 = sphi 0, %s279
      %s280 = sphi 0, %s277
      %s281 = sphi 0, %s280
      %s297 = sphi 0, %s281
    $region4: #{multi_head_attention.4} parent=1 // loop_header_branch
      %21 = sbr.rel (%p19) target = $region8
    $region5: #{multi_head_attention.4} parent=1 // loop_body
      %s23 = ssub.s32 %s18, 1
      %s24 = ssub.s32 %s18, 2
      %s31 = sadd.s32 1, %s26
      %p32 = scmp.ge.s32.totalorder %s31, 1
      %s33 = scalar_select %p32, 0, %s31
      %s34 = sadd.s32 1, %s25
      %s35 = scalar_select %p32, %s34, %s25
      %p36 = scmp.ge.s32.totalorder %s35, 2
      %s37 = scalar_select %p36, 0, %s35
      %s39 = sadd.s32 %s38, 1
      %p42 = scmp.eq.s32.totalorder %s18, 1
      %p43 = scmp.ne.s32.totalorder %s38, %s40
      %p44 = scmp.eq.s32.totalorder %s18, 0
      %p45 = por %p43, %p44
      %p46 = scmp.ne.s32.totalorder %s38, %s40
      %p47 = scmp.eq.s32.totalorder %s23, 1
      %p48 = por %p46, %p47
      %p49 = scmp.ne.s32.totalorder %s40, %s41
      %p50 = scmp.eq.s32.totalorder %s23, 0
      %p51 = por %p49, %p50
      %p52 = scmp.ne.s32.totalorder %s40, %s41
      %p53 = scmp.eq.s32.totalorder %s24, 1
      %p54 = por %p52, %p53
      %p56 = scmp.ne.s32.totalorder %s41, %s55
      %p57 = scmp.eq.s32.totalorder %s24, 0
      %p58 = por %p56, %p57
      %s59 = ssub.s32 %s26, %s33
      %p60 = scmp.eq.s32.totalorder %s59, 0
      %s62 = sadd.s32 %s61, 1
      %s63 = scalar_select %p60, %s61, %s62
      %p66 = pneg %p60
      %p67 = scmp.eq.s32.totalorder %s18, 1
      %p68 = por %p66, %p67
      %p69 = scmp.ne.s32.totalorder %s61, %s64
      %p70 = scmp.eq.s32.totalorder %s18, 0
      %p71 = por %p69, %p70
      %p72 = scmp.ne.s32.totalorder %s61, %s64
      %p73 = scmp.eq.s32.totalorder %s23, 1
      %p74 = por %p72, %p73
      %p75 = scmp.ne.s32.totalorder %s64, %s65
      %p76 = scmp.eq.s32.totalorder %s23, 0
      %p77 = por %p75, %p76
      %p78 = scmp.ne.s32.totalorder %s64, %s65
      %p79 = scmp.eq.s32.totalorder %s24, 1
      %p80 = por %p78, %p79
      %p82 = scmp.ne.s32.totalorder %s65, %s81
      %p83 = scmp.eq.s32.totalorder %s24, 0
      %p84 = por %p82, %p83
      %s85 = ssub.s32 %s25, %s37
      %s86 = ssub.s32 %s26, %s33
      %s87 = sor.u32 %s85, %s86
      %p88 = scmp.eq.s32.totalorder %s87, 0
      %s90 = sadd.s32 %s89, 1
      %s91 = scalar_select %p88, %s89, %s90
      %p94 = pneg %p88
      %p95 = scmp.eq.s32.totalorder %s18, 1
      %p96 = por %p94, %p95
      %p97 = scmp.ne.s32.totalorder %s89, %s92
      %p98 = scmp.eq.s32.totalorder %s18, 0
      %p99 = por %p97, %p98
      %p100 = scmp.ne.s32.totalorder %s89, %s92
      %p101 = scmp.eq.s32.totalorder %s23, 1
      %p102 = por %p100, %p101
      %p103 = scmp.ne.s32.totalorder %s92, %s93
      %p104 = scmp.eq.s32.totalorder %s23, 0
      %p105 = por %p103, %p104
      %p106 = scmp.ne.s32.totalorder %s92, %s93
      %p107 = scmp.eq.s32.totalorder %s24, 1
      %p108 = por %p106, %p107
      %p110 = scmp.ne.s32.totalorder %s93, %s109
      %p111 = scmp.eq.s32.totalorder %s24, 0
      %p112 = por %p110, %p111
      %s113 = ssub.s32 %s25, %s37
      %s114 = ssub.s32 %s26, %s33
      %s115 = sor.u32 %s113, %s114
      %p116 = scmp.eq.s32.totalorder %s115, 0
      %s118 = sadd.s32 %s117, 1
      %s119 = scalar_select %p116, %s117, %s118
      %p122 = pneg %p116
      %p123 = scmp.eq.s32.totalorder %s18, 1
      %p124 = por %p122, %p123
      %p125 = scmp.ne.s32.totalorder %s117, %s120
      %p126 = scmp.eq.s32.totalorder %s18, 0
      %p127 = por %p125, %p126
      %p128 = scmp.ne.s32.totalorder %s117, %s120
      %p129 = scmp.eq.s32.totalorder %s23, 1
      %p130 = por %p128, %p129
      %p131 = scmp.ne.s32.totalorder %s120, %s121
      %p132 = scmp.eq.s32.totalorder %s23, 0
      %p133 = por %p131, %p132
      %p134 = scmp.ne.s32.totalorder %s120, %s121
      %p135 = scmp.eq.s32.totalorder %s24, 1
      %p136 = por %p134, %p135
      %p138 = scmp.ne.s32.totalorder %s121, %s137
      %p139 = scmp.eq.s32.totalorder %s24, 0
      %p140 = por %p138, %p139
      %s141 = ssub.s32 %s25, %s37
      %p142 = scmp.eq.s32.totalorder %s141, 0
      %s144 = sadd.s32 %s143, 1
      %s145 = scalar_select %p142, %s143, %s144
      %p148 = pneg %p142
      %p149 = scmp.eq.s32.totalorder %s18, 1
      %p150 = por %p148, %p149
      %p151 = scmp.ne.s32.totalorder %s143, %s146
      %p152 = scmp.eq.s32.totalorder %s18, 0
      %p153 = por %p151, %p152
      %p154 = scmp.ne.s32.totalorder %s143, %s146
      %p155 = scmp.eq.s32.totalorder %s23, 1
      %p156 = por %p154, %p155
      %p157 = scmp.ne.s32.totalorder %s146, %s147
      %p158 = scmp.eq.s32.totalorder %s23, 0
      %p159 = por %p157, %p158
      %p160 = scmp.ne.s32.totalorder %s146, %s147
      %p161 = scmp.eq.s32.totalorder %s24, 1
      %p162 = por %p160, %p161
      %p164 = scmp.ne.s32.totalorder %s147, %s163
      %p165 = scmp.eq.s32.totalorder %s24, 0
      %p166 = por %p164, %p165
      %s167 = ssub.s32 %s25, %s37
      %p168 = scmp.eq.s32.totalorder %s167, 0
      %s170 = sadd.s32 %s169, 1
      %s171 = scalar_select %p168, %s169, %s170
      %p174 = pneg %p168
      %p175 = scmp.eq.s32.totalorder %s18, 1
      %p176 = por %p174, %p175
      %p177 = scmp.ne.s32.totalorder %s169, %s172
      %p178 = scmp.eq.s32.totalorder %s18, 0
      %p179 = por %p177, %p178
      %p180 = scmp.ne.s32.totalorder %s169, %s172
      %p181 = scmp.eq.s32.totalorder %s23, 1
      %p182 = por %p180, %p181
      %p183 = scmp.ne.s32.totalorder %s172, %s173
      %p184 = scmp.eq.s32.totalorder %s23, 0
      %p185 = por %p183, %p184
      %p186 = scmp.ne.s32.totalorder %s172, %s173
      %p187 = scmp.eq.s32.totalorder %s24, 1
      %p188 = por %p186, %p187
      %p190 = scmp.ne.s32.totalorder %s173, %s189
      %p191 = scmp.eq.s32.totalorder %s24, 0
      %p192 = por %p190, %p191
      %s193 = ssub.s32 %s25, %s37
      %p194 = scmp.eq.s32.totalorder %s193, 0
      %s196 = sadd.s32 %s195, 1
      %s197 = scalar_select %p194, %s195, %s196
      %p200 = pneg %p194
      %p201 = scmp.eq.s32.totalorder %s18, 1
      %p202 = por %p200, %p201
      %p203 = scmp.ne.s32.totalorder %s195, %s198
      %p204 = scmp.eq.s32.totalorder %s18, 0
      %p205 = por %p203, %p204
      %p206 = scmp.ne.s32.totalorder %s195, %s198
      %p207 = scmp.eq.s32.totalorder %s23, 1
      %p208 = por %p206, %p207
      %p209 = scmp.ne.s32.totalorder %s198, %s199
      %p210 = scmp.eq.s32.totalorder %s23, 0
      %p211 = por %p209, %p210
      %p212 = scmp.ne.s32.totalorder %s198, %s199
      %p213 = scmp.eq.s32.totalorder %s24, 1
      %p214 = por %p212, %p213
      %p216 = scmp.ne.s32.totalorder %s199, %s215
      %p217 = scmp.eq.s32.totalorder %s24, 0
      %p218 = por %p216, %p217
      %s219 = ssub.s32 %s25, %s37
      %p220 = scmp.eq.s32.totalorder %s219, 0
      %s222 = sadd.s32 %s221, 1
      %s223 = scalar_select %p220, %s221, %s222
      %p226 = pneg %p220
      %p227 = scmp.eq.s32.totalorder %s18, 1
      %p228 = por %p226, %p227
      %p229 = scmp.ne.s32.totalorder %s221, %s224
      %p230 = scmp.eq.s32.totalorder %s18, 0
      %p231 = por %p229, %p230
      %p232 = scmp.ne.s32.totalorder %s221, %s224
      %p233 = scmp.eq.s32.totalorder %s23, 1
      %p234 = por %p232, %p233
      %p235 = scmp.ne.s32.totalorder %s224, %s225
      %p236 = scmp.eq.s32.totalorder %s23, 0
      %p237 = por %p235, %p236
      %p238 = scmp.ne.s32.totalorder %s224, %s225
      %p239 = scmp.eq.s32.totalorder %s24, 1
      %p240 = por %p238, %p239
      %p242 = scmp.ne.s32.totalorder %s225, %s241
      %p243 = scmp.eq.s32.totalorder %s24, 0
      %p244 = por %p242, %p243
      %s245 = ssub.s32 %s25, %s37
      %s246 = ssub.s32 %s26, %s33
      %s247 = sor.u32 %s245, %s246
      %p248 = scmp.eq.s32.totalorder %s247, 0
      %s250 = sadd.s32 %s249, 1
      %s251 = scalar_select %p248, %s249, %s250
      %p254 = pneg %p248
      %p255 = scmp.eq.s32.totalorder %s18, 1
      %p256 = por %p254, %p255
      %p257 = scmp.ne.s32.totalorder %s249, %s252
      %p258 = scmp.eq.s32.totalorder %s18, 0
      %p259 = por %p257, %p258
      %p260 = scmp.ne.s32.totalorder %s249, %s252
      %p261 = scmp.eq.s32.totalorder %s23, 1
      %p262 = por %p260, %p261
      %p263 = scmp.ne.s32.totalorder %s252, %s253
      %p264 = scmp.eq.s32.totalorder %s23, 0
      %p265 = por %p263, %p264
      %p266 = scmp.ne.s32.totalorder %s252, %s253
      %p267 = scmp.eq.s32.totalorder %s24, 1
      %p268 = por %p266, %p267
      %p270 = scmp.ne.s32.totalorder %s253, %s269
      %p271 = scmp.eq.s32.totalorder %s24, 0
      %p272 = por %p270, %p271
      %s273 = ssub.s32 %s25, %s37
      %s274 = ssub.s32 %s26, %s33
      %s275 = sor.u32 %s273, %s274
      %p276 = scmp.eq.s32.totalorder %s275, 0
      %s278 = sadd.s32 %s277, 1
      %s279 = scalar_select %p276, %s277, %s278
      %p282 = pneg %p276
      %p283 = scmp.eq.s32.totalorder %s18, 1
      %p284 = por %p282, %p283
      %p285 = scmp.ne.s32.totalorder %s277, %s280
      %p286 = scmp.eq.s32.totalorder %s18, 0
      %p287 = por %p285, %p286
      %p288 = scmp.ne.s32.totalorder %s277, %s280
      %p289 = scmp.eq.s32.totalorder %s23, 1
      %p290 = por %p288, %p289
      %p291 = scmp.ne.s32.totalorder %s280, %s281
      %p292 = scmp.eq.s32.totalorder %s23, 0
      %p293 = por %p291, %p292
      %p294 = scmp.ne.s32.totalorder %s280, %s281
      %p295 = scmp.eq.s32.totalorder %s24, 1
      %p296 = por %p294, %p295
      %p298 = scmp.ne.s32.totalorder %s281, %s297
      %p299 = scmp.eq.s32.totalorder %s24, 0
      %p300 = por %p298, %p299
      %p301 = scmp.le.s32.totalorder 1, %s18
      %p302 = scmp.lt.s32.totalorder %s18, 3
      %p303 = pnand %p301, %p302
      %p304 = pneg %p303
      // Predicated region
      $region9: #{multi_head_attention.4} parent=5 // pred_check
        _
      $region10: #{multi_head_attention.4} parent=5 // pred_check_branch
        %306 = sbr.rel (%p303) target = $region12
      $region11: #{multi_head_attention.4} parent=5 // pred_region
        %s307 = ssub.s32 %s18, 1
        // Predicated region
        $region13: #{multi_head_attention.4} parent=11 // pred_check
          %p308 = pneg %p51
        $region14: #{multi_head_attention.4} parent=11 // pred_check_branch
          %310 = sbr.rel (%p308) target = $region16
        $region15: #{multi_head_attention.4} parent=11 // pred_region
          %312 = vsyncadd [#allocation5], 0
          %s314 = sshll.u32 %s0, 4
          %s315 = int_to_ptr.vmem [resolvable:$true] %s314
          %317 = dma.vmem_to_smem %s315, 16, [#allocation3], [#allocation5]
        $region16: #{multi_head_attention.4} parent=11 // pred_fallthru
          _
        // Predicated region
        $region17: #{multi_head_attention.4} parent=11 // pred_check
          %p318 = pneg %p77
        $region18: #{multi_head_attention.4} parent=11 // pred_check_branch
          %320 = sbr.rel (%p318) target = $region20
        $region19: #{multi_head_attention.4} parent=11 // pred_region
          %s321 = smul.u32 2, %s28
          %323 = vsyncadd [#allocation4], 0
          %s324 = smul.addr %s321, 8
          %s325 = scalar_lea.hbm %s1, %s324
          %s326 = sshll.u32 %s325, 4
          %s327 = int_to_ptr.hbm [resolvable:$true] %s326
          %s328 = sshll.u32 [#allocation6], 4
          %s329 = int_to_ptr.vmem [resolvable:$true] %s328
          %334 = dma.hbm_to_vmem [thread:$0]  %s327, 256, %s329, [#allocation4], 128, 128, 8
        $region20: #{multi_head_attention.4} parent=11 // pred_fallthru
          _
      $region12: #{multi_head_attention.4} parent=5 // pred_fallthru
        _
      %p335 = scmp.lt.s32.totalorder %s18, 2
      // Predicated region
      $region21: #{multi_head_attention.4} parent=5 // pred_check
        %p336 = pneg %p335
      $region22: #{multi_head_attention.4} parent=5 // pred_check_branch
        %338 = sbr.rel (%p336) target = $region24
      $region23: #{multi_head_attention.4} parent=5 // pred_region
        // Predicated region
        $region25: #{multi_head_attention.4} parent=23 // pred_check
          %p339 = pneg %p99
        $region26: #{multi_head_attention.4} parent=23 // pred_check_branch
          %341 = sbr.rel (%p339) target = $region28
        $region27: #{multi_head_attention.4} parent=23 // pred_region
          %s342 = smul.u32 2, %s26
          %p343 = scmp.lt.s32.totalorder %s25, 1
          %s344 = scalar_select %p343, %s25, 1
          %p345 = scmp.lt.s32.totalorder %s342, 1
          %s346 = scalar_select %p345, %s342, 1
          %s347 = smul.addr %s344, 2
          %s348 = sadd.s32 %s346, %s347
          %s349 = smul.addr %s348, 4
          %s350 = scalar_lea.vmem %s2, %s349
          %s351 = smul.u32 2, %s26
        $region28: #{multi_head_attention.4} parent=23 // pred_fallthru
          _
        // Predicated region
        $region29: #{multi_head_attention.4} parent=23 // pred_check
          %p352 = pneg %p127
        $region30: #{multi_head_attention.4} parent=23 // pred_check_branch
          %354 = sbr.rel (%p352) target = $region32
        $region31: #{multi_head_attention.4} parent=23 // pred_region
          %s355 = smul.u32 2, %s26
          %p356 = scmp.lt.s32.totalorder %s25, 1
          %s357 = scalar_select %p356, %s25, 1
          %p358 = scmp.lt.s32.totalorder %s355, 1
          %s359 = scalar_select %p358, %s355, 1
          %s360 = smul.addr %s357, 2
          %s361 = sadd.s32 %s359, %s360
          %s362 = smul.addr %s361, 4
          %s363 = scalar_lea.vmem %s3, %s362
          %s364 = smul.u32 2, %s26
        $region32: #{multi_head_attention.4} parent=23 // pred_fallthru
          _
        // Predicated region
        $region33: #{multi_head_attention.4} parent=23 // pred_check
          %p365 = pneg %p153
        $region34: #{multi_head_attention.4} parent=23 // pred_check_branch
          %367 = sbr.rel (%p365) target = $region36
        $region35: #{multi_head_attention.4} parent=23 // pred_region
          %p368 = scmp.lt.s32.totalorder %s25, 1
          %s369 = scalar_select %p368, %s25, 1
          %s370 = smul.addr %s369, 2
          %s371 = smul.addr %s370, 4
          %s372 = scalar_lea.vmem %s4, %s371
        $region36: #{multi_head_attention.4} parent=23 // pred_fallthru
          _
        // Predicated region
        $region37: #{multi_head_attention.4} parent=23 // pred_check
          %p373 = pneg %p179
        $region38: #{multi_head_attention.4} parent=23 // pred_check_branch
          %375 = sbr.rel (%p373) target = $region40
        $region39: #{multi_head_attention.4} parent=23 // pred_region
          %p376 = scmp.lt.s32.totalorder %s25, 1
          %s377 = scalar_select %p376, %s25, 1
          %s378 = smul.addr %s377, 2
          %s379 = smul.addr %s378, 4
          %s380 = scalar_lea.vmem %s5, %s379
        $region40: #{multi_head_attention.4} parent=23 // pred_fallthru
          _
        // Predicated region
        $region41: #{multi_head_attention.4} parent=23 // pred_check
          %p381 = pneg %p205
        $region42: #{multi_head_attention.4} parent=23 // pred_check_branch
          %383 = sbr.rel (%p381) target = $region44
        $region43: #{multi_head_attention.4} parent=23 // pred_region
          %p384 = scmp.lt.s32.totalorder %s25, 1
          %s385 = scalar_select %p384, %s25, 1
          %s386 = smul.addr %s385, 2
          %s387 = smul.addr %s386, 4
          %s388 = scalar_lea.vmem %s6, %s387
        $region44: #{multi_head_attention.4} parent=23 // pred_fallthru
          _
        // Predicated region
        $region45: #{multi_head_attention.4} parent=23 // pred_check
          %p389 = pneg %p231
        $region46: #{multi_head_attention.4} parent=23 // pred_check_branch
          %391 = sbr.rel (%p389) target = $region48
        $region47: #{multi_head_attention.4} parent=23 // pred_region
          %p392 = scmp.lt.s32.totalorder %s25, 1
          %s393 = scalar_select %p392, %s25, 1
          %s394 = smul.addr %s393, 2
          %s395 = smul.addr %s394, 4
          %s396 = scalar_lea.vmem %s7, %s395
        $region48: #{multi_head_attention.4} parent=23 // pred_fallthru
          _
      $region24: #{multi_head_attention.4} parent=5 // pred_fallthru
        _
      %p397 = scmp.le.s32.totalorder 1, %s18
      %p398 = scmp.lt.s32.totalorder %s18, 3
      %p399 = pnand %p397, %p398
      %p400 = pneg %p399
      // Predicated region
      $region49: #{multi_head_attention.4} parent=5 // pred_check
        _
      $region50: #{multi_head_attention.4} parent=5 // pred_check_branch
        %402 = sbr.rel (%p399) target = $region52
      $region51: #{multi_head_attention.4} parent=5 // pred_region
        %s403 = ssub.s32 %s18, 1
        // Predicated region
        $region53: #{multi_head_attention.4} parent=51 // pred_check
          %p404 = pneg %p51
        $region54: #{multi_head_attention.4} parent=51 // pred_check_branch
          %406 = sbr.rel (%p404) target = $region56
        $region55: #{multi_head_attention.4} parent=51 // pred_region
          %408 = dma.done [#allocation5], 16
        $region56: #{multi_head_attention.4} parent=51 // pred_fallthru
          _
        // Predicated region
        $region57: #{multi_head_attention.4} parent=51 // pred_check
          %p409 = pneg %p77
        $region58: #{multi_head_attention.4} parent=51 // pred_check_branch
          %411 = sbr.rel (%p409) target = $region60
        $region59: #{multi_head_attention.4} parent=51 // pred_region
          %413 = dma.done [#allocation4], 256
        $region60: #{multi_head_attention.4} parent=51 // pred_fallthru
          _
        %414 = sfence
        %p415 = pneg %p51
        %p416 = pneg %p48
        %p417 = pneg %p77
        %p418 = pneg %p74
        %s419 = smul.u32 2, %s28
        %p420 = scmp.lt.s32.totalorder %s27, 1
        %s421 = scalar_select %p420, %s27, 1
        %p422 = scmp.lt.s32.totalorder %s419, 1
        %s423 = scalar_select %p422, %s419, 1
        %s424 = smul.addr %s421, 2
        %s425 = sadd.s32 %s423, %s424
        %s426 = smul.addr %s425, 4
        %s427 = scalar_lea.vmem %s2, %s426
        %p428 = pneg %p105
        %p429 = pneg %p102
        %s430 = smul.u32 2, %s28
        %p431 = scmp.lt.s32.totalorder %s27, 1
        %s432 = scalar_select %p431, %s27, 1
        %p433 = scmp.lt.s32.totalorder %s430, 1
        %s434 = scalar_select %p433, %s430, 1
        %s435 = smul.addr %s432, 2
        %s436 = sadd.s32 %s434, %s435
        %s437 = smul.addr %s436, 4
        %s438 = scalar_lea.vmem %s3, %s437
        %p439 = pneg %p133
        %p440 = pneg %p130
        %p441 = scmp.lt.s32.totalorder %s27, 1
        %s442 = scalar_select %p441, %s27, 1
        %s443 = smul.addr %s442, 2
        %s444 = smul.addr %s443, 4
        %s445 = scalar_lea.vmem %s4, %s444
        %p446 = pneg %p159
        %p447 = pneg %p156
        %p448 = scmp.lt.s32.totalorder %s27, 1
        %s449 = scalar_select %p448, %s27, 1
        %s450 = smul.addr %s449, 2
        %s451 = smul.addr %s450, 4
        %s452 = scalar_lea.vmem %s5, %s451
        %p453 = pneg %p185
        %p454 = pneg %p182
        %p455 = scmp.lt.s32.totalorder %s27, 1
        %s456 = scalar_select %p455, %s27, 1
        %s457 = smul.addr %s456, 2
        %s458 = smul.addr %s457, 4
        %s459 = scalar_lea.vmem %s6, %s458
        %p460 = pneg %p211
        %p461 = pneg %p208
        %p462 = scmp.lt.s32.totalorder %s27, 1
        %s463 = scalar_select %p462, %s27, 1
        %s464 = smul.addr %s463, 2
        %s465 = smul.addr %s464, 4
        %s466 = scalar_lea.vmem %s7, %s465
        %p467 = pneg %p237
        %p468 = pneg %p234
        %p469 = pneg %p265
        %p470 = pneg %p262
        %s471 = smul.u32 2, %s28
        %p472 = scmp.lt.s32.totalorder %s27, 1
        %s473 = scalar_select %p472, %s27, 1
        %p474 = scmp.lt.s32.totalorder %s471, 1
        %s475 = scalar_select %p474, %s471, 1
        %s476 = smul.addr %s473, 2
        %s477 = sadd.s32 %s475, %s476
        %s478 = smul.addr %s477, 4
        %s479 = scalar_lea.vmem %s8, %s478
        %p480 = pneg %p293
        %p481 = pneg %p290
        %s482 = smul.u32 2, %s28
        %p483 = scmp.lt.s32.totalorder %s27, 1
        %s484 = scalar_select %p483, %s27, 1
        %p485 = scmp.lt.s32.totalorder %s482, 1
        %s486 = scalar_select %p485, %s482, 1
        %s487 = smul.addr %s484, 2
        %s488 = sadd.s32 %s486, %s487
        %s489 = smul.addr %s488, 4
        %s490 = scalar_lea.vmem %s9, %s489
        %s491 = smul.u32 2, %s28
        %s492 = smul.u32 2, %s28
        %p493 = scmp.lt.s32.totalorder %s27, 1
        %s494 = scalar_select %p493, %s27, 1
        %p495 = scmp.lt.s32.totalorder %s492, 1
        %s496 = scalar_select %p495, %s492, 1
        %s497 = smul.addr %s494, 2
        %s498 = sadd.s32 %s496, %s497
        %s499 = smul.addr %s498, 4
        %s500 = scalar_lea.vmem %s2, %s499
        %s501 = smul.u32 2, %s28
        %s502 = smul.u32 2, %s28
        %p503 = scmp.lt.s32.totalorder %s27, 1
        %s504 = scalar_select %p503, %s27, 1
        %p505 = scmp.lt.s32.totalorder %s502, 1
        %s506 = scalar_select %p505, %s502, 1
        %s507 = smul.addr %s504, 2
        %s508 = sadd.s32 %s506, %s507
        %s509 = smul.addr %s508, 4
        %s510 = scalar_lea.vmem %s3, %s509
        %s511 = smul.u32 2, %s28
        %p512 = scmp.lt.s32.totalorder %s27, 1
        %s513 = scalar_select %p512, %s27, 1
        %s514 = smul.addr %s513, 2
        %s515 = smul.addr %s514, 4
        %s516 = scalar_lea.vmem %s4, %s515
        %p517 = scmp.lt.s32.totalorder %s27, 1
        %s518 = scalar_select %p517, %s27, 1
        %s519 = smul.addr %s518, 2
        %s520 = smul.addr %s519, 4
        %s521 = scalar_lea.vmem %s5, %s520
        %p522 = scmp.lt.s32.totalorder %s27, 1
        %s523 = scalar_select %p522, %s27, 1
        %s524 = smul.addr %s523, 2
        %s525 = smul.addr %s524, 4
        %s526 = scalar_lea.vmem %s6, %s525
        %p527 = scmp.lt.s32.totalorder %s27, 1
        %s528 = scalar_select %p527, %s27, 1
        %s529 = smul.addr %s528, 2
        %s530 = smul.addr %s529, 4
        %s531 = scalar_lea.vmem %s7, %s530
        %s532 = smul.u32 2, %s28
        %p533 = scmp.lt.s32.totalorder %s27, 1
        %s534 = scalar_select %p533, %s27, 1
        %p535 = scmp.lt.s32.totalorder %s532, 1
        %s536 = scalar_select %p535, %s532, 1
        %s537 = smul.addr %s534, 2
        %s538 = sadd.s32 %s536, %s537
        %s539 = smul.addr %s538, 4
        %s540 = scalar_lea.vmem %s8, %s539
        %s541 = smul.u32 2, %s28
        %s542 = smul.u32 2, %s28
        %p543 = scmp.lt.s32.totalorder %s27, 1
        %s544 = scalar_select %p543, %s27, 1
        %p545 = scmp.lt.s32.totalorder %s542, 1
        %s546 = scalar_select %p545, %s542, 1
        %s547 = smul.addr %s544, 2
        %s548 = sadd.s32 %s546, %s547
        %s549 = smul.addr %s548, 4
        %s550 = scalar_lea.vmem %s9, %s549
        %s551 = smul.u32 2, %s28
        %v553 = vld [vmem:[#allocation6] sm:$0xff]
        %v554 = vld [vmem:[#allocation6 + $0x8] sm:$0xff]
        %vm555 = vcmp.ne.f32.partialorder %v553, 0.0
        %vm556 = vcmp.ne.f32.partialorder %v554, 0.0
        %v557 = vlaneseq
        %v558 = vshrl.u32 %v557, 7
        %v559 = vadd.s32 %v558, 8
        %s560 = smul.u32 %s28, 16
        %v561 = vstv %s560
        %v562 = vadd.s32 %v558, %v561
        %v563 = vadd.s32 %v559, %v561
        %v564 = vlaneseq
        %v565 = vand.u32 %v564, 127
        %v566 = vsub.s32 %v565, %v562
        %v567 = vsub.s32 %v565, %v563
        %vm568 = vcmp.lt.s32.totalorder %v566, 0
        %v569 = vsub.s32 0, %v566
        %v570 = vsel %vm568, %v569, %v566
        %vm571 = vcmp.lt.s32.totalorder %v567, 0
        %v572 = vsub.s32 0, %v567
        %v573 = vsel %vm571, %v572, %v567
        %v574 = vcvt.s32.f32 %v570
        %v575 = vcvt.s32.f32 %v573
        %vm576 = vcmp.gt.s32.totalorder %v558, %v565
        %vm577 = vcmp.gt.s32.totalorder %v559, %v565
        %v578 = vsel %vm576, 1, 0
        %v579 = vsel %vm577, 1, 0
        %v580 = vcvt.s32.f32 %v578
        %v581 = vcvt.s32.f32 %v579
        %v582 = vld [vmem:[%s500] sm:$0xf]
        %v583 = vld [vmem:[%s500 + $0x4] sm:$0xf]
        %v584 = vld [vmem:[%s510] sm:$0xf]
        %v585 = vld [vmem:[%s510 + $0x4] sm:$0xf]
        %v586 = vld [vmem:[%s516] sm:$0xf]
        %v587 = vld [vmem:[%s516 + $0x4] sm:$0xf]
        %v588 = vld [vmem:[%s521] sm:$0xf]
        %v589 = vld [vmem:[%s521 + $0x4] sm:$0xf]
        %v590 = vunpack.c.l.bf16 %v584
        %v591 = vunpack.c.l.bf16 %v585
        %v592 = vunpack.c.l.bf16 %v588
        %v593 = vunpack.c.l.bf16 %v589
        %v594 = vunpack.c.l.bf16 %v582
        %v595 = vunpack.c.l.bf16 %v583
        %v596 = vunpack.c.l.bf16 %v586
        %v597 = vunpack.c.l.bf16 %v587
        %v598 = vmul.f32 %v594, %v594
        %v599 = vmul.f32 %v595, %v595
        %vm600 = vcmask 261120
        %v601 = vsel %vm600, %v598, 0.0
        %602 = vadd.xlane.f32.xlu0 %v601
        %v603 = vpop.xlane.xlu0 %602
        %v604 = vsel %vm600, %v599, 0.0
        %605 = vadd.xlane.f32.xlu0 %v604
        %v606 = vpop.xlane.xlu0 %605
        %v607 = vmul.f32 %v596, %v596
        %v608 = vmul.f32 %v597, %v597
        %v609 = vsel %vm600, %v607, 0.0
        %610 = vadd.xlane.f32.xlu0 %v609
        %v611 = vpop.xlane.xlu0 %610
        %v612 = vsel %vm600, %v608, 0.0
        %613 = vadd.xlane.f32.xlu0 %v612
        %v614 = vpop.xlane.xlu0 %613
        %v617 = vunpack.c.l.b16 %v582
        %v618 = vunpack.c.l.b16 %v583
        %v619 = vpack.c.b16 %v618, %v617
        %v622 = vunpack.c.l.b16 %v586
        %v623 = vunpack.c.l.b16 %v587
        %v624 = vpack.c.b16 %v623, %v622
        %v626 = vsel %vm600, %v619, 0
        %v629 = vsel %vm600, %v624, 0
        %631 = vmatpush.bf16.xpose.msra.mxu0 0
        %632 = vmatpush.bf16.xpose.msra.mxu0 0
        %633 = vmatpush.bf16.xpose.msra.mxu0 0
        %634 = vmatpush.bf16.xpose.msra.mxu0 0
        %635 = vmatpush.bf16.xpose.msra.mxu0 0
        %636 = vmatpush.bf16.xpose.msra.mxu0 0
        %637 = vmatpush.bf16.xpose.msra.mxu0 0
        %638 = vmatpush.bf16.xpose.msra.mxu0 %v629
        %639 = vmatmul.bf16.gmra.mxu0 %v626
        %v640 = vpop.f32.mrf.mxu0
        %v641 = vadd.f32 0.0, %v640
        %v642 = vpop.f32.mrf.mxu0
        %v643 = vadd.f32 0.0, %v642
        %644 = vdwg.mxu0
        %v645 = vmul.f32 %v641, -2.0
        %v646 = vmul.f32 %v643, -2.0
        %v647 = vadd.f32 %v645, %v603
        %v648 = vadd.f32 %v646, %v606
        %649 = vxpose.xlu0.b32.start [1/16] %v611, 128
        %650 = vxpose.xlu0.b32.cont [2/16] %v614, 128
        %651 = vxpose.xlu0.b32.cont [3/16] 0.0, 128
        %652 = vxpose.xlu0.b32.cont [4/16] 0.0, 128
        %653 = vxpose.xlu0.b32.cont [5/16] 0.0, 128
        %654 = vxpose.xlu0.b32.cont [6/16] 0.0, 128
        %655 = vxpose.xlu0.b32.cont [7/16] 0.0, 128
        %656 = vxpose.xlu0.b32.cont [8/16] 0.0, 128
        %657 = vxpose.xlu0.b32.cont [9/16] 0.0, 128
        %658 = vxpose.xlu0.b32.cont [10/16] 0.0, 128
        %659 = vxpose.xlu0.b32.cont [11/16] 0.0, 128
        %660 = vxpose.xlu0.b32.cont [12/16] 0.0, 128
        %661 = vxpose.xlu0.b32.cont [13/16] 0.0, 128
        %662 = vxpose.xlu0.b32.cont [14/16] 0.0, 128
        %663 = vxpose.xlu0.b32.cont [15/16] 0.0, 128
        %664 = vxpose.xlu0.b32.end [16/16] 0.0, 128
        %v665 = vpop.trf.xlu0
        %v666 = vpop.trf.xlu0
        %v667 = vpop.trf.xlu0
        %v668 = vpop.trf.xlu0
        %v669 = vpop.trf.xlu0
        %v670 = vpop.trf.xlu0
        %v671 = vpop.trf.xlu0
        %v672 = vpop.trf.xlu0
        %v673 = vpop.trf.xlu0
        %v674 = vpop.trf.xlu0
        %v675 = vpop.trf.xlu0
        %v676 = vpop.trf.xlu0
        %v677 = vpop.trf.xlu0
        %v678 = vpop.trf.xlu0
        %v679 = vpop.trf.xlu0
        %v680 = vpop.trf.xlu0
        %v681 = vperm.slane %v665, 0
        %v682 = vadd.f32 %v647, %v681
        %v683 = vadd.f32 %v648, %v681
        %v684 = vsel %vm600, %v590, 0.0
        %685 = vadd.xlane.f32.xlu0 %v684
        %v686 = vpop.xlane.xlu0 %685
        %v687 = vsel %vm600, %v591, 0.0
        %688 = vadd.xlane.f32.xlu0 %v687
        %v689 = vpop.xlane.xlu0 %688
        %v690 = vsel %vm600, %v592, 0.0
        %691 = vadd.xlane.f32.xlu0 %v690
        %v692 = vpop.xlane.xlu0 %691
        %v693 = vsel %vm600, %v593, 0.0
        %694 = vadd.xlane.f32.xlu0 %v693
        %v695 = vpop.xlane.xlu0 %694
        %v696 = vmax.f32 %v590, 1e-24
        %v697 = vmax.f32 %v591, 1e-24
        %v698 = vrsqrt.pop %v696
        %v699 = vmul.f32 %v698, %v696
        %v700 = vmul.f32 %v699, %v698
        %v701 = vmul.f32 0.5, %v700
        %v702 = vsub.f32 1.5, %v701
        %v703 = vmul.f32 %v698, %v702
        %v704 = vmul.f32 %v696, %v703
        %vm705 = vcmp.eq.f32.partialorder %v696, inf
        %v706 = vsel %vm705, %v696, %v704
        %vm707 = vcmp.eq.f32.partialorder %v696, 0.0
        %v708 = vand.u32 %v696, 2147483648
        %v709 = vsel %vm707, %v708, %v706
        %v710 = vrsqrt.pop %v697
        %v711 = vmul.f32 %v710, %v697
        %v712 = vmul.f32 %v711, %v710
        %v713 = vmul.f32 0.5, %v712
        %v714 = vsub.f32 1.5, %v713
        %v715 = vmul.f32 %v710, %v714
        %v716 = vmul.f32 %v697, %v715
        %vm717 = vcmp.eq.f32.partialorder %v697, inf
        %v718 = vsel %vm717, %v697, %v716
        %vm719 = vcmp.eq.f32.partialorder %v697, 0.0
        %v720 = vand.u32 %v697, 2147483648
        %v721 = vsel %vm719, %v720, %v718
        %v722 = vmax.f32 %v592, 1e-24
        %v723 = vmax.f32 %v593, 1e-24
        %v724 = vrsqrt.pop %v722
        %v725 = vmul.f32 %v724, %v722
        %v726 = vmul.f32 %v725, %v724
        %v727 = vmul.f32 0.5, %v726
        %v728 = vsub.f32 1.5, %v727
        %v729 = vmul.f32 %v724, %v728
        %v730 = vmul.f32 %v722, %v729
        %vm731 = vcmp.eq.f32.partialorder %v722, inf
        %v732 = vsel %vm731, %v722, %v730
        %vm733 = vcmp.eq.f32.partialorder %v722, 0.0
        %v734 = vand.u32 %v722, 2147483648
        %v735 = vsel %vm733, %v734, %v732
        %v736 = vrsqrt.pop %v723
        %v737 = vmul.f32 %v736, %v723
        %v738 = vmul.f32 %v737, %v736
        %v739 = vmul.f32 0.5, %v738
        %v740 = vsub.f32 1.5, %v739
        %v741 = vmul.f32 %v736, %v740
        %v742 = vmul.f32 %v723, %v741
        %vm743 = vcmp.eq.f32.partialorder %v723, inf
        %v744 = vsel %vm743, %v723, %v742
        %vm745 = vcmp.eq.f32.partialorder %v723, 0.0
        %v746 = vand.u32 %v723, 2147483648
        %v747 = vsel %vm745, %v746, %v744
        %v748 = vpack.c.bf16 %v721, %v709
        %v749 = vpack.c.bf16 %v747, %v735
        %v751 = vsel %vm600, %v748, 0
        %v754 = vsel %vm600, %v749, 0
        %756 = vmatpush.bf16.xpose.msra.mxu0 0
        %757 = vmatpush.bf16.xpose.msra.mxu0 0
        %758 = vmatpush.bf16.xpose.msra.mxu0 0
        %759 = vmatpush.bf16.xpose.msra.mxu0 0
        %760 = vmatpush.bf16.xpose.msra.mxu0 0
        %761 = vmatpush.bf16.xpose.msra.mxu0 0
        %762 = vmatpush.bf16.xpose.msra.mxu0 0
        %763 = vmatpush.bf16.xpose.msra.mxu0 %v754
        %764 = vmatmul.bf16.gmra.mxu0 %v751
        %v765 = vpop.f32.mrf.mxu0
        %v766 = vadd.f32 0.0, %v765
        %v767 = vpop.f32.mrf.mxu0
        %v768 = vadd.f32 0.0, %v767
        %769 = vdwg.mxu0
        %v770 = vmul.f32 %v766, -2.0
        %v771 = vmul.f32 %v768, -2.0
        %v772 = vadd.f32 %v770, %v686
        %v773 = vadd.f32 %v771, %v689
        %774 = vxpose.xlu0.b32.start [1/16] %v692, 128
        %775 = vxpose.xlu0.b32.cont [2/16] %v695, 128
        %776 = vxpose.xlu0.b32.cont [3/16] 0.0, 128
        %777 = vxpose.xlu0.b32.cont [4/16] 0.0, 128
        %778 = vxpose.xlu0.b32.cont [5/16] 0.0, 128
        %779 = vxpose.xlu0.b32.cont [6/16] 0.0, 128
        %780 = vxpose.xlu0.b32.cont [7/16] 0.0, 128
        %781 = vxpose.xlu0.b32.cont [8/16] 0.0, 128
        %782 = vxpose.xlu0.b32.cont [9/16] 0.0, 128
        %783 = vxpose.xlu0.b32.cont [10/16] 0.0, 128
        %784 = vxpose.xlu0.b32.cont [11/16] 0.0, 128
        %785 = vxpose.xlu0.b32.cont [12/16] 0.0, 128
        %786 = vxpose.xlu0.b32.cont [13/16] 0.0, 128
        %787 = vxpose.xlu0.b32.cont [14/16] 0.0, 128
        %788 = vxpose.xlu0.b32.cont [15/16] 0.0, 128
        %789 = vxpose.xlu0.b32.end [16/16] 0.0, 128
        %v790 = vpop.trf.xlu0
        %v791 = vpop.trf.xlu0
        %v792 = vpop.trf.xlu0
        %v793 = vpop.trf.xlu0
        %v794 = vpop.trf.xlu0
        %v795 = vpop.trf.xlu0
        %v796 = vpop.trf.xlu0
        %v797 = vpop.trf.xlu0
        %v798 = vpop.trf.xlu0
        %v799 = vpop.trf.xlu0
        %v800 = vpop.trf.xlu0
        %v801 = vpop.trf.xlu0
        %v802 = vpop.trf.xlu0
        %v803 = vpop.trf.xlu0
        %v804 = vpop.trf.xlu0
        %v805 = vpop.trf.xlu0
        %v806 = vperm.slane %v790, 0
        %v807 = vadd.f32 %v772, %v806
        %v808 = vadd.f32 %v773, %v806
        %v809 = vadd.f32 %v682, %v807
        %v810 = vadd.f32 %v683, %v808
        %v811 = vsub.f32 0.0, %v809
        %v812 = vsub.f32 0.0, %v810
        %v813 = vmul.f32 %v811, 0.17677669
        %v814 = vmul.f32 %v812, 0.17677669
        %vm815 = vcmask 130048
        %816 = vst.msk [vmem:[#allocation2] sm:$0xff] %vm815, %v813
        %817 = vst.msk [vmem:[#allocation2 + $0x8] sm:$0xff] %vm815, %v814
        %820 = vrot.lane.b32.xlu0 %v598, 96
        %v821 = vpop.permute.xlu0 %820
        %822 = vrot.lane.b32.xlu0 %v599, 96
        %v823 = vpop.permute.xlu0 %822
        %v826 = vsel %vm600, %v821, 0.0
        %827 = vadd.xlane.f32.xlu0 %v826
        %v828 = vpop.xlane.xlu0 %827
        %v829 = vsel %vm600, %v823, 0.0
        %830 = vadd.xlane.f32.xlu0 %v829
        %v831 = vpop.xlane.xlu0 %830
        %834 = vrot.lane.b32.xlu0 %v607, 96
        %v835 = vpop.permute.xlu0 %834
        %836 = vrot.lane.b32.xlu0 %v608, 96
        %v837 = vpop.permute.xlu0 %836
        %v840 = vsel %vm600, %v835, 0.0
        %841 = vadd.xlane.f32.xlu0 %v840
        %v842 = vpop.xlane.xlu0 %841
        %v843 = vsel %vm600, %v837, 0.0
        %844 = vadd.xlane.f32.xlu0 %v843
        %v845 = vpop.xlane.xlu0 %844
        %846 = vrot.lane.b32.xlu0 %v619, 96
        %v847 = vpop.permute.xlu0 %846
        %848 = vrot.lane.b32.xlu0 %v624, 96
        %v849 = vpop.permute.xlu0 %848
        %v851 = vsel %vm600, %v847, 0
        %v854 = vsel %vm600, %v849, 0
        %856 = vmatpush.bf16.xpose.msra.mxu0 0
        %857 = vmatpush.bf16.xpose.msra.mxu0 0
        %858 = vmatpush.bf16.xpose.msra.mxu0 0
        %859 = vmatpush.bf16.xpose.msra.mxu0 0
        %860 = vmatpush.bf16.xpose.msra.mxu0 0
        %861 = vmatpush.bf16.xpose.msra.mxu0 0
        %862 = vmatpush.bf16.xpose.msra.mxu0 0
        %863 = vmatpush.bf16.xpose.msra.mxu0 %v854
        %864 = vmatmul.bf16.gmra.mxu0 %v851
        %v865 = vpop.f32.mrf.mxu0
        %v866 = vadd.f32 0.0, %v865
        %v867 = vpop.f32.mrf.mxu0
        %v868 = vadd.f32 0.0, %v867
        %869 = vdwg.mxu0
        %v870 = vmul.f32 %v866, -2.0
        %v871 = vmul.f32 %v868, -2.0
        %v872 = vadd.f32 %v870, %v828
        %v873 = vadd.f32 %v871, %v831
        %874 = vxpose.xlu0.b32.start [1/16] %v842, 128
        %875 = vxpose.xlu0.b32.cont [2/16] %v845, 128
        %876 = vxpose.xlu0.b32.cont [3/16] 0.0, 128
        %877 = vxpose.xlu0.b32.cont [4/16] 0.0, 128
        %878 = vxpose.xlu0.b32.cont [5/16] 0.0, 128
        %879 = vxpose.xlu0.b32.cont [6/16] 0.0, 128
        %880 = vxpose.xlu0.b32.cont [7/16] 0.0, 128
        %881 = vxpose.xlu0.b32.cont [8/16] 0.0, 128
        %882 = vxpose.xlu0.b32.cont [9/16] 0.0, 128
        %883 = vxpose.xlu0.b32.cont [10/16] 0.0, 128
        %884 = vxpose.xlu0.b32.cont [11/16] 0.0, 128
        %885 = vxpose.xlu0.b32.cont [12/16] 0.0, 128
        %886 = vxpose.xlu0.b32.cont [13/16] 0.0, 128
        %887 = vxpose.xlu0.b32.cont [14/16] 0.0, 128
        %888 = vxpose.xlu0.b32.cont [15/16] 0.0, 128
        %889 = vxpose.xlu0.b32.end [16/16] 0.0, 128
        %v890 = vpop.trf.xlu0
        %v891 = vpop.trf.xlu0
        %v892 = vpop.trf.xlu0
        %v893 = vpop.trf.xlu0
        %v894 = vpop.trf.xlu0
        %v895 = vpop.trf.xlu0
        %v896 = vpop.trf.xlu0
        %v897 = vpop.trf.xlu0
        %v898 = vpop.trf.xlu0
        %v899 = vpop.trf.xlu0
        %v900 = vpop.trf.xlu0
        %v901 = vpop.trf.xlu0
        %v902 = vpop.trf.xlu0
        %v903 = vpop.trf.xlu0
        %v904 = vpop.trf.xlu0
        %v905 = vpop.trf.xlu0
        %v906 = vperm.slane %v890, 0
        %v907 = vadd.f32 %v872, %v906
        %v908 = vadd.f32 %v873, %v906
        %911 = vrot.lane.b32.xlu0 %v590, 96
        %v912 = vpop.permute.xlu0 %911
        %913 = vrot.lane.b32.xlu0 %v591, 96
        %v914 = vpop.permute.xlu0 %913
        %v917 = vsel %vm600, %v912, 0.0
        %918 = vadd.xlane.f32.xlu0 %v917
        %v919 = vpop.xlane.xlu0 %918
        %v920 = vsel %vm600, %v914, 0.0
        %921 = vadd.xlane.f32.xlu0 %v920
        %v922 = vpop.xlane.xlu0 %921
        %925 = vrot.lane.b32.xlu0 %v592, 96
        %v926 = vpop.permute.xlu0 %925
        %927 = vrot.lane.b32.xlu0 %v593, 96
        %v928 = vpop.permute.xlu0 %927
        %v931 = vsel %vm600, %v926, 0.0
        %932 = vadd.xlane.f32.xlu0 %v931
        %v933 = vpop.xlane.xlu0 %932
        %v934 = vsel %vm600, %v928, 0.0
        %935 = vadd.xlane.f32.xlu0 %v934
        %v936 = vpop.xlane.xlu0 %935
        %938 = vrot.lane.b32.xlu0 %v748, 96
        %v939 = vpop.permute.xlu0 %938
        %941 = vrot.lane.b32.xlu0 %v749, 96
        %v942 = vpop.permute.xlu0 %941
        %v944 = vsel %vm600, %v939, 0
        %v947 = vsel %vm600, %v942, 0
        %949 = vmatpush.bf16.xpose.msra.mxu0 0
        %950 = vmatpush.bf16.xpose.msra.mxu0 0
        %951 = vmatpush.bf16.xpose.msra.mxu0 0
        %952 = vmatpush.bf16.xpose.msra.mxu0 0
        %953 = vmatpush.bf16.xpose.msra.mxu0 0
        %954 = vmatpush.bf16.xpose.msra.mxu0 0
        %955 = vmatpush.bf16.xpose.msra.mxu0 0
        %956 = vmatpush.bf16.xpose.msra.mxu0 %v947
        %957 = vmatmul.bf16.gmra.mxu0 %v944
        %v958 = vpop.f32.mrf.mxu0
        %v959 = vadd.f32 0.0, %v958
        %v960 = vpop.f32.mrf.mxu0
        %v961 = vadd.f32 0.0, %v960
        %962 = vdwg.mxu0
        %v963 = vmul.f32 %v959, -2.0
        %v964 = vmul.f32 %v961, -2.0
        %v965 = vadd.f32 %v963, %v919
        %v966 = vadd.f32 %v964, %v922
        %967 = vxpose.xlu0.b32.start [1/16] %v933, 128
        %968 = vxpose.xlu0.b32.cont [2/16] %v936, 128
        %969 = vxpose.xlu0.b32.cont [3/16] 0.0, 128
        %970 = vxpose.xlu0.b32.cont [4/16] 0.0, 128
        %971 = vxpose.xlu0.b32.cont [5/16] 0.0, 128
        %972 = vxpose.xlu0.b32.cont [6/16] 0.0, 128
        %973 = vxpose.xlu0.b32.cont [7/16] 0.0, 128
        %974 = vxpose.xlu0.b32.cont [8/16] 0.0, 128
        %975 = vxpose.xlu0.b32.cont [9/16] 0.0, 128
        %976 = vxpose.xlu0.b32.cont [10/16] 0.0, 128
        %977 = vxpose.xlu0.b32.cont [11/16] 0.0, 128
        %978 = vxpose.xlu0.b32.cont [12/16] 0.0, 128
        %979 = vxpose.xlu0.b32.cont [13/16] 0.0, 128
        %980 = vxpose.xlu0.b32.cont [14/16] 0.0, 128
        %981 = vxpose.xlu0.b32.cont [15/16] 0.0, 128
        %982 = vxpose.xlu0.b32.end [16/16] 0.0, 128
        %v983 = vpop.trf.xlu0
        %v984 = vpop.trf.xlu0
        %v985 = vpop.trf.xlu0
        %v986 = vpop.trf.xlu0
        %v987 = vpop.trf.xlu0
        %v988 = vpop.trf.xlu0
        %v989 = vpop.trf.xlu0
        %v990 = vpop.trf.xlu0
        %v991 = vpop.trf.xlu0
        %v992 = vpop.trf.xlu0
        %v993 = vpop.trf.xlu0
        %v994 = vpop.trf.xlu0
        %v995 = vpop.trf.xlu0
        %v996 = vpop.trf.xlu0
        %v997 = vpop.trf.xlu0
        %v998 = vpop.trf.xlu0
        %v999 = vperm.slane %v983, 0
        %v1000 = vadd.f32 %v965, %v999
        %v1001 = vadd.f32 %v966, %v999
        %v1002 = vadd.f32 %v907, %v1000
        %v1003 = vadd.f32 %v908, %v1001
        %v1004 = vsub.f32 0.0, %v1002
        %v1005 = vsub.f32 0.0, %v1003
        %v1006 = vmul.f32 %v1004, 0.17677669
        %v1007 = vmul.f32 %v1005, 0.17677669
        %s1008 = scalar_lea.vmem [#allocation2], 16
        %1009 = vst.msk [vmem:[%s1008] sm:$0xff] %vm815, %v1006
        %1010 = vst.msk [vmem:[%s1008 + $0x8] sm:$0xff] %vm815, %v1007
        loop: start=0, step=1, limit=2
        $region61: #{multi_head_attention.4} parent=51 // loop_pre_header
          _
        $region62: #{multi_head_attention.4} parent=51 // loop_header
          %s1012 = sphi 0, %s1016
          %p1013 = scmp.ge.s32.totalorder %s1012, 2
        $region63: #{multi_head_attention.4} parent=51 // loop_header_branch
          %1015 = sbr.rel (%p1013) target = $region67
        $region64: #{multi_head_attention.4} parent=51 // loop_body
          %s1017 = smul.u32 %s1012, 16
          %s1018 = scalar_lea.vmem [#allocation2], %s1017
          %v1019 = vld [vmem:[%s1018] sm:$0xff]
          %v1020 = vld [vmem:[%s1018 + $0x8] sm:$0xff]
          %s1021 = sld [smem:[#allocation3 + %s1012]]
          %v1022 = vsel %vm555, %v1019, -1e+32
          %v1023 = vsel %vm556, %v1020, -1e+32
          %v1024 = vsel %vm815, %v1022, -inf
          %1025 = vmax.xlane.f32.xlu0 %v1024
          %v1026 = vpop.xlane.xlu0 %1025
          %v1027 = vsel %vm815, %v1023, -inf
          %1028 = vmax.xlane.f32.xlu0 %v1027
          %v1029 = vpop.xlane.xlu0 %1028
          %v1030 = vsub.f32 %v1022, %v1026
          %v1031 = vsub.f32 %v1023, %v1029
          %v1032 = vmul.f32 %v1030, 1.442695
          %v1033 = vpow.pop %v1032
          %v1034 = vmul.f32 %v1031, 1.442695
          %v1035 = vpow.pop %v1034
          %v1036 = vsel %vm815, %v1033, 0.0
          %1037 = vadd.xlane.f32.xlu0 %v1036
          %v1038 = vpop.xlane.xlu0 %1037
          %v1039 = vsel %vm815, %v1035, 0.0
          %1040 = vadd.xlane.f32.xlu0 %v1039
          %v1041 = vpop.xlane.xlu0 %1040
          %v1042 = vrcp.pop %v1038
          %v1043 = vrcp.pop %v1041
          %v1044 = vmul.f32 %v1033, %v1042
          %v1045 = vmul.f32 %v1035, %v1043
          %v1046 = vmul.f32 %v1044, %v553
          %v1047 = vmul.f32 %v1045, %v554
          %v1049 = vsel %vm815, %v1046, 0
          %v1052 = vsel %vm815, %v1047, 0
          %1054 = vmatpush.msra.mxu0 0.0
          %1055 = vmatpush.msra.mxu0 0.0
          %1056 = vmatpush.msra.mxu0 0.0
          %1057 = vmatpush.msra.mxu0 0.0
          %1058 = vmatpush.msra.mxu0 0.0
          %1059 = vmatpush.msra.mxu0 0.0
          %1060 = vmatpush.msra.mxu0 0.0
          %1061 = vmatpush.msra.mxu0 0.0
          %1062 = vmatpush.msra.mxu0 0.0
          %1063 = vmatpush.msra.mxu0 0.0
          %1064 = vmatpush.msra.mxu0 0.0
          %1065 = vmatpush.msra.mxu0 0.0
          %1066 = vmatpush.msra.mxu0 0.0
          %1067 = vmatpush.msra.mxu0 0.0
          %1068 = vmatpush.msra.mxu0 %v581
          %1069 = vmatpush.msra.mxu0 %v580
          %1070 = vmatmul.f32.gmra.mxu0 %v1049
          %v1071 = vpop.f32.mrf.mxu0
          %v1072 = vadd.f32 0.0, %v1071
          %1073 = vmatmul.f32.gmra.mxu0 %v1052
          %v1074 = vpop.f32.mrf.mxu0
          %v1075 = vadd.f32 0.0, %v1074
          %1076 = vdwg.mxu0
          %v1077 = vmul.f32 %v1072, %v574
          %v1078 = vmul.f32 %v1075, %v575
          %v1079 = vmax.f32 %v1077, 0.0
          %v1080 = vmax.f32 %v1078, 0.0
          %v1081 = vrsqrt.pop %v1079
          %v1082 = vmul.f32 %v1081, %v1079
          %v1083 = vmul.f32 %v1082, %v1081
          %v1084 = vmul.f32 0.5, %v1083
          %v1085 = vsub.f32 1.5, %v1084
          %v1086 = vmul.f32 %v1081, %v1085
          %v1087 = vmul.f32 %v1079, %v1086
          %vm1088 = vcmp.eq.f32.partialorder %v1079, inf
          %v1089 = vsel %vm1088, %v1079, %v1087
          %vm1090 = vcmp.eq.f32.partialorder %v1079, 0.0
          %v1091 = vand.u32 %v1079, 2147483648
          %v1092 = vsel %vm1090, %v1091, %v1089
          %v1093 = vrsqrt.pop %v1080
          %v1094 = vmul.f32 %v1093, %v1080
          %v1095 = vmul.f32 %v1094, %v1093
          %v1096 = vmul.f32 0.5, %v1095
          %v1097 = vsub.f32 1.5, %v1096
          %v1098 = vmul.f32 %v1093, %v1097
          %v1099 = vmul.f32 %v1080, %v1098
          %vm1100 = vcmp.eq.f32.partialorder %v1080, inf
          %v1101 = vsel %vm1100, %v1080, %v1099
          %vm1102 = vcmp.eq.f32.partialorder %v1080, 0.0
          %v1103 = vand.u32 %v1080, 2147483648
          %v1104 = vsel %vm1102, %v1103, %v1101
          %v1105 = vstv %s1021
          %v1106 = vmul.f32 %v1092, %v1105
          %v1107 = vmul.f32 %v1104, %v1105
          %v1108 = vmul.f32 %v1106, 1.442695
          %v1109 = vpow.pop %v1108
          %v1110 = vmul.f32 %v1107, 1.442695
          %v1111 = vpow.pop %v1110
          %v1112 = vmax.f32 %v1109, 1e-05
          %v1113 = vmax.f32 %v1111, 1e-05
          %v1114 = vmul.f32 %v1019, %v1112
          %v1115 = vmul.f32 %v1020, %v1113
          %v1116 = vsel %vm555, %v1114, -1e+32
          %v1117 = vsel %vm556, %v1115, -1e+32
          %v1118 = vsel %vm815, %v1116, -inf
          %1119 = vmax.xlane.f32.xlu0 %v1118
          %v1120 = vpop.xlane.xlu0 %1119
          %v1121 = vsel %vm815, %v1117, -inf
          %1122 = vmax.xlane.f32.xlu0 %v1121
          %v1123 = vpop.xlane.xlu0 %1122
          %v1124 = vsub.f32 %v1116, %v1120
          %v1125 = vsub.f32 %v1117, %v1123
          %v1126 = vmul.f32 %v1124, 1.442695
          %v1127 = vpow.pop %v1126
          %v1128 = vmul.f32 %v1125, 1.442695
          %v1129 = vpow.pop %v1128
          %v1130 = vsel %vm815, %v1127, 0.0
          %1131 = vadd.xlane.f32.xlu0 %v1130
          %v1132 = vpop.xlane.xlu0 %1131
          %v1133 = vsel %vm815, %v1129, 0.0
          %1134 = vadd.xlane.f32.xlu0 %v1133
          %v1135 = vpop.xlane.xlu0 %1134
          %v1136 = vrcp.pop %v1132
          %v1137 = vmul.f32 %v1132, %v1136
          %v1138 = vsub.f32 1.0, %v1137
          %v1139 = vmul.f32 %v1136, %v1138
          %v1140 = vadd.f32 %v1136, %v1139
          %vm1141 = vweird.f32 %v1132
          %vm1142 = vweird.f32 %v1136
          %vm1143 = vmor %vm1141, %vm1142
          %v1144 = vsel %vm1143, %v1136, %v1140
          %v1145 = vand.u32 2147483647, %v1132
          %vm1146 = vcmp.eq.f32.partialorder %v1145, 8.507059e+37
          %v1147 = vand.u32 %v1132, 2147483648
          %v1148 = vor.u32 1.1754944e-38, %v1147
          %v1149 = vsel %vm1146, %v1148, %v1144
          %v1150 = vrcp.pop %v1135
          %v1151 = vmul.f32 %v1135, %v1150
          %v1152 = vsub.f32 1.0, %v1151
          %v1153 = vmul.f32 %v1150, %v1152
          %v1154 = vadd.f32 %v1150, %v1153
          %vm1155 = vweird.f32 %v1135
          %vm1156 = vweird.f32 %v1150
          %vm1157 = vmor %vm1155, %vm1156
          %v1158 = vsel %vm1157, %v1150, %v1154
          %v1159 = vand.u32 2147483647, %v1135
          %vm1160 = vcmp.eq.f32.partialorder %v1159, 8.507059e+37
          %v1161 = vand.u32 %v1135, 2147483648
          %v1162 = vor.u32 1.1754944e-38, %v1161
          %v1163 = vsel %vm1160, %v1162, %v1158
          %v1164 = vmul.f32 %v1127, %v1149
          %v1165 = vmul.f32 %v1129, %v1163
          %1166 = vst.msk [vmem:[%s1018] sm:$0xff] %vm815, %v1164
          %1167 = vst.msk [vmem:[%s1018 + $0x8] sm:$0xff] %vm815, %v1165
        $region65: #{multi_head_attention.4} parent=51 // loop_footer
          %s1016 = sadd.s32 1, %s1012
        $region66: #{multi_head_attention.4} parent=51 // loop_footer_branch
          %1011 = sbr.rel target = $region62
        $region67: #{multi_head_attention.4} parent=51 // loop_exit
          _
        %v1168 = vld [vmem:[%s526] sm:$0xf]
        %v1169 = vld [vmem:[%s526 + $0x4] sm:$0xf]
        %v1170 = vld [vmem:[%s531] sm:$0xf]
        %v1171 = vld [vmem:[%s531 + $0x4] sm:$0xf]
        %v1172 = vld [vmem:[#allocation2] sm:$0xff]
        %v1173 = vld [vmem:[#allocation2 + $0x8] sm:$0xff]
        %v1174 = vpack.c.bf16 %v1173, %v1172
        %v1177 = vunpack.c.l.b16 %v1168
        %v1178 = vunpack.c.l.b16 %v1169
        %v1179 = vpack.c.b16 %v1178, %v1177
        %v1182 = vsel %vm815, %v1174, 0
        %1184 = vmatpush.bf16.msra.mxu0 0
        %1185 = vmatpush.bf16.msra.mxu0 0
        %1186 = vmatpush.bf16.msra.mxu0 0
        %1187 = vmatpush.bf16.msra.mxu0 0
        %1188 = vmatpush.bf16.msra.mxu0 0
        %1189 = vmatpush.bf16.msra.mxu0 0
        %1190 = vmatpush.bf16.msra.mxu0 0
        %1191 = vmatpush.bf16.msra.mxu0 %v1179
        %1192 = vmatmul.bf16.gmra.mxu0 %v1182
        %v1193 = vpop.f32.mrf.mxu0
        %v1194 = vadd.f32 0.0, %v1193
        %v1195 = vpop.f32.mrf.mxu0
        %v1196 = vadd.f32 0.0, %v1195
        %1197 = vdwg.mxu0
        %v1198 = vmul.f32 %v1172, %v1172
        %v1199 = vmul.f32 %v1173, %v1173
        %v1200 = vpack.c.bf16 %v1199, %v1198
        %v1203 = vunpack.c.l.b16 %v1170
        %v1204 = vunpack.c.l.b16 %v1171
        %v1205 = vpack.c.b16 %v1204, %v1203
        %v1208 = vsel %vm815, %v1200, 0
        %1210 = vmatpush.bf16.msra.mxu0 0
        %1211 = vmatpush.bf16.msra.mxu0 0
        %1212 = vmatpush.bf16.msra.mxu0 0
        %1213 = vmatpush.bf16.msra.mxu0 0
        %1214 = vmatpush.bf16.msra.mxu0 0
        %1215 = vmatpush.bf16.msra.mxu0 0
        %1216 = vmatpush.bf16.msra.mxu0 0
        %1217 = vmatpush.bf16.msra.mxu0 %v1205
        %1218 = vmatmul.bf16.gmra.mxu0 %v1208
        %v1219 = vpop.f32.mrf.mxu0
        %v1220 = vadd.f32 0.0, %v1219
        %v1221 = vpop.f32.mrf.mxu0
        %v1222 = vadd.f32 0.0, %v1221
        %1223 = vdwg.mxu0
        %v1224 = vld [vmem:[%s1008] sm:$0xff]
        %v1225 = vld [vmem:[%s1008 + $0x8] sm:$0xff]
        %v1226 = vpack.c.bf16 %v1225, %v1224
        %1227 = vrot.lane.b32.xlu0 %v1179, 96
        %v1228 = vpop.permute.xlu0 %1227
        %v1231 = vsel %vm815, %v1226, 0
        %1233 = vmatpush.bf16.msra.mxu0 0
        %1234 = vmatpush.bf16.msra.mxu0 0
        %1235 = vmatpush.bf16.msra.mxu0 0
        %1236 = vmatpush.bf16.msra.mxu0 0
        %1237 = vmatpush.bf16.msra.mxu0 0
        %1238 = vmatpush.bf16.msra.mxu0 0
        %1239 = vmatpush.bf16.msra.mxu0 0
        %1240 = vmatpush.bf16.msra.mxu0 %v1228
        %1241 = vmatmul.bf16.gmra.mxu0 %v1231
        %v1242 = vpop.f32.mrf.mxu0
        %v1243 = vadd.f32 0.0, %v1242
        %v1244 = vpop.f32.mrf.mxu0
        %v1245 = vadd.f32 0.0, %v1244
        %1246 = vdwg.mxu0
        %v1247 = vmul.f32 %v1224, %v1224
        %v1248 = vmul.f32 %v1225, %v1225
        %v1249 = vpack.c.bf16 %v1248, %v1247
        %1250 = vrot.lane.b32.xlu0 %v1205, 96
        %v1251 = vpop.permute.xlu0 %1250
        %v1254 = vsel %vm815, %v1249, 0
        %1256 = vmatpush.bf16.msra.mxu0 0
        %1257 = vmatpush.bf16.msra.mxu0 0
        %1258 = vmatpush.bf16.msra.mxu0 0
        %1259 = vmatpush.bf16.msra.mxu0 0
        %1260 = vmatpush.bf16.msra.mxu0 0
        %1261 = vmatpush.bf16.msra.mxu0 0
        %1262 = vmatpush.bf16.msra.mxu0 0
        %1263 = vmatpush.bf16.msra.mxu0 %v1251
        %1264 = vmatmul.bf16.gmra.mxu0 %v1254
        %v1265 = vpop.f32.mrf.mxu0
        %v1266 = vadd.f32 0.0, %v1265
        %v1267 = vpop.f32.mrf.mxu0
        %v1268 = vadd.f32 0.0, %v1267
        %1269 = vdwg.mxu0
        %1272 = vrot.lane.b32.xlu0 %v1243, 32
        %v1273 = vpop.permute.xlu0 %1272
        %1274 = vrot.lane.b32.xlu0 %v1245, 32
        %v1275 = vpop.permute.xlu0 %1274
        %v1278 = vsel %vm600, %v1194, %v1273
        %v1279 = vsel %vm600, %v1196, %v1275
        %v1280 = vpack.c.bf16 %v1278, %v1278
        %v1281 = vpack.c.bf16 %v1279, %v1279
        %vm1282 = vcmask 519168
        %1283 = vst.msk [vmem:[%s540] sm:$0xf] %vm1282, %v1280
        %1284 = vst.msk [vmem:[%s540 + $0x4] sm:$0xf] %vm1282, %v1281
        %1287 = vrot.lane.b32.xlu0 %v1266, 32
        %v1288 = vpop.permute.xlu0 %1287
        %1289 = vrot.lane.b32.xlu0 %v1268, 32
        %v1290 = vpop.permute.xlu0 %1289
        %v1293 = vsel %vm600, %v1220, %v1288
        %v1294 = vsel %vm600, %v1222, %v1290
        %v1295 = vpack.c.bf16 %v1293, %v1293
        %v1296 = vpack.c.bf16 %v1294, %v1294
        %1297 = vst.msk [vmem:[%s550] sm:$0xf] %vm1282, %v1295
        %1298 = vst.msk [vmem:[%s550 + $0x4] sm:$0xf] %vm1282, %v1296
        %p1299 = scmp.eq.s32.totalorder %s28, 0
        // Predicated region
        $region68: #{multi_head_attention.4} parent=51 // pred_check
          %p1300 = pneg %p1299
        $region69: #{multi_head_attention.4} parent=51 // pred_check_branch
          %1302 = sbr.rel (%p1300) target = $region71
        $region70: #{multi_head_attention.4} parent=51 // pred_region
          %vm1303 = vcmask 516096
          %vm1304 = vsmask.f32 256
          %vm1305 = vmand %vm1303, %vm1304
          %v1306 = vld [vmem:[%s540] sm:$0x1]
          %v1307 = vsel %vm1305, 0, %v1306
          %1308 = vst [vmem:[%s540] sm:$0x1] %v1307
          %v1309 = vld [vmem:[%s550] sm:$0x1]
          %v1310 = vsel %vm1305, 0, %v1309
          %1311 = vst [vmem:[%s550] sm:$0x1] %v1310
        $region71: #{multi_head_attention.4} parent=51 // pred_fallthru
          _
        %s1312 = smul.u32 2, %s28
        %p1313 = scmp.lt.s32.totalorder %s27, 1
        %s1314 = scalar_select %p1313, %s27, 1
        %p1315 = scmp.lt.s32.totalorder %s1312, 1
        %s1316 = scalar_select %p1315, %s1312, 1
        %s1317 = smul.addr %s1314, 2
        %s1318 = sadd.s32 %s1316, %s1317
        %s1319 = smul.addr %s1318, 4
        %s1320 = scalar_lea.vmem %s8, %s1319
        %s1321 = smul.u32 2, %s28
        %p1322 = scmp.lt.s32.totalorder %s27, 1
        %s1323 = scalar_select %p1322, %s27, 1
        %p1324 = scmp.lt.s32.totalorder %s1321, 1
        %s1325 = scalar_select %p1324, %s1321, 1
        %s1326 = smul.addr %s1323, 2
        %s1327 = sadd.s32 %s1325, %s1326
        %s1328 = smul.addr %s1327, 4
        %s1329 = scalar_lea.vmem %s9, %s1328
        // Predicated region
        $region72: #{multi_head_attention.4} parent=51 // pred_check
          %p1330 = pneg %p262
        $region73: #{multi_head_attention.4} parent=51 // pred_check_branch
          %1332 = sbr.rel (%p1330) target = $region75
        $region74: #{multi_head_attention.4} parent=51 // pred_region
          %s1333 = smul.u32 2, %s28
        $region75: #{multi_head_attention.4} parent=51 // pred_fallthru
          _
        // Predicated region
        $region76: #{multi_head_attention.4} parent=51 // pred_check
          %p1334 = pneg %p290
        $region77: #{multi_head_attention.4} parent=51 // pred_check_branch
          %1336 = sbr.rel (%p1334) target = $region79
        $region78: #{multi_head_attention.4} parent=51 // pred_region
          %s1337 = smul.u32 2, %s28
        $region79: #{multi_head_attention.4} parent=51 // pred_fallthru
          _
      $region52: #{multi_head_attention.4} parent=5 // pred_fallthru
        _
      %p1338 = scmp.le.s32.totalorder 2, %s18
      // Predicated region
      $region80: #{multi_head_attention.4} parent=5 // pred_check
        %p1339 = pneg %p1338
      $region81: #{multi_head_attention.4} parent=5 // pred_check_branch
        %1341 = sbr.rel (%p1339) target = $region83
      $region82: #{multi_head_attention.4} parent=5 // pred_region
        %s1342 = ssub.s32 %s18, 2
        // Predicated region
        $region84: #{multi_head_attention.4} parent=82 // pred_check
          %p1343 = pneg %p268
        $region85: #{multi_head_attention.4} parent=82 // pred_check_branch
          %1345 = sbr.rel (%p1343) target = $region87
        $region86: #{multi_head_attention.4} parent=82 // pred_region
          %s1346 = smul.u32 2, %s30
          %p1347 = scmp.lt.s32.totalorder %s29, 1
          %s1348 = scalar_select %p1347, %s29, 1
          %p1349 = scmp.lt.s32.totalorder %s1346, 1
          %s1350 = scalar_select %p1349, %s1346, 1
          %s1351 = smul.addr %s1348, 2
          %s1352 = sadd.s32 %s1350, %s1351
          %s1353 = smul.addr %s1352, 4
          %s1354 = scalar_lea.vmem %s8, %s1353
        $region87: #{multi_head_attention.4} parent=82 // pred_fallthru
          _
        // Predicated region
        $region88: #{multi_head_attention.4} parent=82 // pred_check
          %p1355 = pneg %p296
        $region89: #{multi_head_attention.4} parent=82 // pred_check_branch
          %1357 = sbr.rel (%p1355) target = $region91
        $region90: #{multi_head_attention.4} parent=82 // pred_region
          %s1358 = smul.u32 2, %s30
          %p1359 = scmp.lt.s32.totalorder %s29, 1
          %s1360 = scalar_select %p1359, %s29, 1
          %p1361 = scmp.lt.s32.totalorder %s1358, 1
          %s1362 = scalar_select %p1361, %s1358, 1
          %s1363 = smul.addr %s1360, 2
          %s1364 = sadd.s32 %s1362, %s1363
          %s1365 = smul.addr %s1364, 4
          %s1366 = scalar_lea.vmem %s9, %s1365
        $region91: #{multi_head_attention.4} parent=82 // pred_fallthru
          _
      $region83: #{multi_head_attention.4} parent=5 // pred_fallthru
        _
    $region6: #{multi_head_attention.4} parent=1 // loop_footer
      %s22 = sadd.s32 1, %s18
    $region7: #{multi_head_attention.4} parent=1 // loop_footer_branch
      %17 = sbr.rel target = $region3
    $region8: #{multi_head_attention.4} parent=1 // loop_exit
      _
    %1367 = vsyncpa [#allocation4], 1
    %s1368 = scalar_lea.sflag [#allocation4], 1
    %1369 = vsyncpa %s1368, 1
    %1370 = vsyncpa [#allocation5], 1
    %s1371 = scalar_lea.sflag [#allocation5], 1
    %1372 = vsyncpa %s1371, 1

</llo_original>
